<compile_context>
chip_gen: v7x
topology: tpu7x:2x2x1
jax: 0.10.0
libtpu: 0.0.40
codegen_flags: <defaults>
</compile_context>

<pallas_src>
import math
import functools

import jax
import jax.numpy as jnp
from jax.experimental import pallas as pl
from jax.experimental.pallas import tpu as pltpu


def _round_up(x, m):
    return (x + m - 1) // m * m


def che_kernel(radius_scale_factor, hidden, node_num,
               # inputs
               children_ref, brothers_ref, parents_ref, bparents_ref,
               unbrothers_ref, table_ref,
               # output (packed [TM, 10*H] slab)
               out_ref):
    h = hidden
    tm = children_ref.shape[0]

    # Resident packed table and a single iota reused by all 5 one-hots.
    table = table_ref[...]                                   # [node_num, 4H]
    iota = jax.lax.broadcasted_iota(jnp.int32, (tm, node_num), 1)

    def gather(idx_ref):
        onehot = (iota == idx_ref[...]).astype(jnp.float32)  # [TM, node_num]
        return jnp.dot(onehot, table,
                       preferred_element_type=jnp.float32,
                       precision=jax.lax.Precision.HIGHEST)  # [TM, 4H]

    g_c = gather(children_ref)
    g_p = gather(parents_ref)
    g_bp = gather(bparents_ref)
    g_b = gather(brothers_ref)
    g_u = gather(unbrothers_ref)

    # Column layout of the packed table: [radius | angle | real | img].
    parents_radii = jnp.maximum(g_p[:, 0:h], 0.0)
    children_radii_true = jnp.maximum(g_c[:, 0:h], 0.0)

    # mod(., 2*pi) dropped (mathematically redundant here).
    diff_angle = g_p[:, h:2 * h] - g_bp[:, h:2 * h]
    children_angles = g_c[:, h:2 * h]

    children_radii = (radius_scale_factor * 0.5) * parents_radii * jnp.abs(
        jnp.sin(0.5 * diff_angle))

    real_p = g_p[:, 2 * h:3 * h]
    img_p = g_p[:, 3 * h:4 * h]
    _real_ = children_radii * jnp.cos(children_angles)
    _img_ = children_radii * jnp.sin(children_angles)

    # Single lane-dense store of all 10 outputs (module return order).
    out_ref[...] = jnp.concatenate([
        _real_ + real_p,           # _real_c
        _img_ + img_p,             # _img_c
        g_c[:, 2 * h:3 * h],       # real_c
        g_c[:, 3 * h:4 * h],       # img_c
        children_radii,            # children_radii
        children_radii_true,       # children_radii_true
        g_u[:, 2 * h:3 * h],       # unbrothers_real
        g_u[:, 3 * h:4 * h],       # unbrothers_img
        g_b[:, 2 * h:3 * h],       # brothers_real
        g_b[:, 3 * h:4 * h],       # brothers_img
    ], axis=-1)


def che_forward(children, brothers, parents, brothers_parents, unbrothers,
                radius_table, angle_table, real_table, img_table,
                radius_scale_factor, *, tm=256):
    """Flatten indices, run the gridded Pallas kernel, unpack the 10 outputs."""
    batch_shape = children.shape
    n = int(math.prod(batch_shape))
    node_num, hidden = radius_table.shape

    # Row tile: multiple of 8, no bigger than (padded) N.
    tm = min(max(8, _round_up(tm, 8)), _round_up(n, 8))
    n_pad = _round_up(n, tm)
    grid = (n_pad // tm,)

    def flat(ix):
        ix = ix.reshape(n).astype(jnp.int32)
        if n_pad != n:
            ix = jnp.pad(ix, (0, n_pad - n))  # padded rows are dropped below
        return ix.reshape(n_pad, 1)

    idxs = [flat(children), flat(brothers), flat(parents),
            flat(brothers_parents), flat(unbrothers)]
    packed_table = jnp.concatenate(
        [radius_table, angle_table, real_table, img_table],
        axis=1).astype(jnp.float32)                          # [node_num, 4H]

    idx_spec = pl.BlockSpec((tm, 1), lambda i: (i, 0))
    tbl_spec = pl.BlockSpec((node_num, 4 * hidden), lambda i: (0, 0))
    out_spec = pl.BlockSpec((tm, 10 * hidden), lambda i: (i, 0))

    cost = pl.CostEstimate(
        flops=2 * 5 * n_pad * node_num * 4 * hidden,
        transcendentals=3 * n_pad * hidden,
        bytes_accessed=(5 * n_pad * 4
                        + node_num * 4 * hidden * 4
                        + n_pad * 10 * hidden * 4),
    )

    out = pl.pallas_call(
        functools.partial(che_kernel, radius_scale_factor, hidden, node_num),
        out_shape=jax.ShapeDtypeStruct((n_pad, 10 * hidden), jnp.float32),
        grid=grid,
        in_specs=[idx_spec] * 5 + [tbl_spec],
        out_specs=out_spec,
        compiler_params=pltpu.CompilerParams(
            dimension_semantics=("parallel",),
            vmem_limit_bytes=32 * 1024 * 1024),
        cost_estimate=cost,
    )(*idxs, packed_table)

    out = out[:n]
    return tuple(out[:, k * hidden:(k + 1) * hidden].reshape(*batch_shape, hidden)
                 for k in range(10))


def _reference(children, brothers, parents, brothers_parents, unbrothers,
               radius_table, angle_table, real_table, img_table, rsf):
    """Pure-JAX reference mirroring the PyTorch module exactly (mods kept)."""
    two_pi = 2.0 * math.pi
    emb = lambda t, ix: t[ix]
    parents_radii = jax.nn.relu(emb(radius_table, parents))
    children_radii_true = jax.nn.relu(emb(radius_table, children))
    parents_angles = jnp.mod(emb(angle_table, parents), two_pi)
    bparents_angles = jnp.mod(emb(angle_table, brothers_parents), two_pi)
    diff_angle = parents_angles - bparents_angles
    children_angles = jnp.mod(emb(angle_table, children), two_pi)
    children_radii = rsf * 0.5 * parents_radii * jnp.abs(jnp.sin(0.5 * diff_angle))
    real_p = emb(real_table, parents)
    img_p = emb(img_table, parents)
    _real_ = children_radii * jnp.cos(children_angles)
    _img_ = children_radii * jnp.sin(children_angles)
    return (_real_ + real_p, _img_ + img_p,
            emb(real_table, children), emb(img_table, children),
            children_radii, children_radii_true,
            emb(real_table, unbrothers), emb(img_table, unbrothers),
            emb(real_table, brothers), emb(img_table, brothers))


if __name__ == "__main__":
    node_num = 32
    hidden_dim = 32
    radius_scale_factor = 0.9
    radius_0 = 1.0  # stored by the module but unused in forward
    pad_id = 0

    key = jax.random.PRNGKey(0)
    k_r, k_a, k_re, k_im, k_i = jax.random.split(key, 5)

    def make_table(k):
        t = jax.random.normal(k, (node_num, hidden_dim), dtype=jnp.float32)
        return t.at[pad_id].set(0.0)  # nn.Embedding padding_idx row is zero

    radius_table = make_table(k_r)
    angle_table = make_table(k_a)
    real_table = make_table(k_re)
    img_table = make_table(k_im)

    def run_case(b, s, tm, seed):
        ki = jax.random.split(jax.random.PRNGKey(seed), 5)
        children = jax.random.randint(ki[0], (b, s), 0, node_num, dtype=jnp.int32)
        brothers = jax.random.randint(ki[1], (b, s), 0, node_num, dtype=jnp.int32)
        parents = jax.random.randint(ki[2], (b, s), 0, node_num, dtype=jnp.int32)
        bparents = jax.random.randint(ki[3], (b, s), 0, node_num, dtype=jnp.int32)
        unbrothers = jax.random.randint(ki[4], (b, s), 0, node_num, dtype=jnp.int32)

        outs = che_forward(children, brothers, parents, bparents, unbrothers,
                           radius_table, angle_table, real_table, img_table,
                           radius_scale_factor, tm=tm)
        outs = jax.block_until_ready(outs)

        refs = _reference(children, brothers, parents, bparents, unbrothers,
                          radius_table, angle_table, real_table, img_table,
                          radius_scale_factor)
        for o, r in zip(outs, refs):
            assert o.shape == (b, s, hidden_dim)
            assert jnp.allclose(o, r, atol=2e-5, rtol=1e-5)

    # Multi-step grid, exact tiling.
    run_case(b=2, s=8, tm=8, seed=1)
    # Ragged N -> exercises the row-padding path.
    run_case(b=2, s=5, tm=8, seed=2)

    print("KERNEL_OK")
</pallas_src>

<mosaic_0001>
module attributes {stable_mosaic.version = 11 : i64} {
  func.func @che_kernel(%arg0: i32, %arg1: memref<8x1xi32, #tpu.memory_space<vmem>>, %arg2: memref<8x1xi32, #tpu.memory_space<vmem>>, %arg3: memref<8x1xi32, #tpu.memory_space<vmem>>, %arg4: memref<8x1xi32, #tpu.memory_space<vmem>>, %arg5: memref<8x1xi32, #tpu.memory_space<vmem>>, %arg6: memref<32x128xf32, #tpu.memory_space<vmem>>, %arg7: memref<8x320xf32, #tpu.memory_space<vmem>>) attributes {dimension_semantics = [#tpu.dimension_semantics<parallel>], iteration_bounds = array<i64: 2>, scalar_prefetch = 0 : i64, scratch_operands = 0 : i64, tpu.core_type = #tpu.core_type<tc>, window_params = [{transform_indices = @transform_0, window_bounds = array<i64: 8, 1>}, {transform_indices = @transform_1, window_bounds = array<i64: 8, 1>}, {transform_indices = @transform_2, window_bounds = array<i64: 8, 1>}, {transform_indices = @transform_3, window_bounds = array<i64: 8, 1>}, {transform_indices = @transform_4, window_bounds = array<i64: 8, 1>}, {pipeline_mode = #tpu.pipeline_mode<synchronous>, transform_indices = @transform_5, window_bounds = array<i64: 32, 128>}, {transform_indices = @transform_6, window_bounds = array<i64: 8, 320>}]} {
    %c0 = arith.constant 0 : index
    %c0_0 = arith.constant 0 : index
    %0 = vector.load %arg6[%c0, %c0_0] : memref<32x128xf32, #tpu.memory_space<vmem>>, vector<32x128xf32>
    %1 = tpu.iota {dimensions = array<i32: 1>} : vector<8x32xi32>
    %c0_1 = arith.constant 0 : index
    %c0_2 = arith.constant 0 : index
    %2 = vector.load %arg1[%c0_1, %c0_2] : memref<8x1xi32, #tpu.memory_space<vmem>>, vector<8x1xi32>
    %3 = vector.broadcast %2 : vector<8x1xi32> to vector<8x32xi32>
    %4 = arith.cmpi eq, %1, %3 : vector<8x32xi32>
    %5 = arith.extui %4 : vector<8x32xi1> to vector<8x32xi32>
    %6 = arith.sitofp %5 : vector<8x32xi32> to vector<8x32xf32>
    %cst = arith.constant dense<0.000000e+00> : vector<8x128xf32>
    %7 = tpu.matmul %6, %0, %cst {dimension_numbers = #tpu.dot_dimension_numbers<[1], [0], [0], [1], [0, 0, 1, 1], [], []>, precision = #tpu.contract_precision<fp32>} : vector<8x32xf32>, vector<32x128xf32>, vector<8x128xf32> -> vector<8x128xf32>
    %c0_3 = arith.constant 0 : index
    %c0_4 = arith.constant 0 : index
    %8 = vector.load %arg3[%c0_3, %c0_4] : memref<8x1xi32, #tpu.memory_space<vmem>>, vector<8x1xi32>
    %9 = vector.broadcast %8 : vector<8x1xi32> to vector<8x32xi32>
    %10 = arith.cmpi eq, %1, %9 : vector<8x32xi32>
    %11 = arith.extui %10 : vector<8x32xi1> to vector<8x32xi32>
    %12 = arith.sitofp %11 : vector<8x32xi32> to vector<8x32xf32>
    %cst_5 = arith.constant dense<0.000000e+00> : vector<8x128xf32>
    %13 = tpu.matmul %12, %0, %cst_5 {dimension_numbers = #tpu.dot_dimension_numbers<[1], [0], [0], [1], [0, 0, 1, 1], [], []>, precision = #tpu.contract_precision<fp32>} : vector<8x32xf32>, vector<32x128xf32>, vector<8x128xf32> -> vector<8x128xf32>
    %c0_6 = arith.constant 0 : index
    %c0_7 = arith.constant 0 : index
    %14 = vector.load %arg4[%c0_6, %c0_7] : memref<8x1xi32, #tpu.memory_space<vmem>>, vector<8x1xi32>
    %15 = vector.broadcast %14 : vector<8x1xi32> to vector<8x32xi32>
    %16 = arith.cmpi eq, %1, %15 : vector<8x32xi32>
    %17 = arith.extui %16 : vector<8x32xi1> to vector<8x32xi32>
    %18 = arith.sitofp %17 : vector<8x32xi32> to vector<8x32xf32>
    %cst_8 = arith.constant dense<0.000000e+00> : vector<8x128xf32>
    %19 = tpu.matmul %18, %0, %cst_8 {dimension_numbers = #tpu.dot_dimension_numbers<[1], [0], [0], [1], [0, 0, 1, 1], [], []>, precision = #tpu.contract_precision<fp32>} : vector<8x32xf32>, vector<32x128xf32>, vector<8x128xf32> -> vector<8x128xf32>
    %c0_9 = arith.constant 0 : index
    %c0_10 = arith.constant 0 : index
    %20 = vector.load %arg2[%c0_9, %c0_10] : memref<8x1xi32, #tpu.memory_space<vmem>>, vector<8x1xi32>
    %21 = vector.broadcast %20 : vector<8x1xi32> to vector<8x32xi32>
    %22 = arith.cmpi eq, %1, %21 : vector<8x32xi32>
    %23 = arith.extui %22 : vector<8x32xi1> to vector<8x32xi32>
    %24 = arith.sitofp %23 : vector<8x32xi32> to vector<8x32xf32>
    %cst_11 = arith.constant dense<0.000000e+00> : vector<8x128xf32>
    %25 = tpu.matmul %24, %0, %cst_11 {dimension_numbers = #tpu.dot_dimension_numbers<[1], [0], [0], [1], [0, 0, 1, 1], [], []>, precision = #tpu.contract_precision<fp32>} : vector<8x32xf32>, vector<32x128xf32>, vector<8x128xf32> -> vector<8x128xf32>
    %c0_12 = arith.constant 0 : index
    %c0_13 = arith.constant 0 : index
    %26 = vector.load %arg5[%c0_12, %c0_13] : memref<8x1xi32, #tpu.memory_space<vmem>>, vector<8x1xi32>
    %27 = vector.broadcast %26 : vector<8x1xi32> to vector<8x32xi32>
    %28 = arith.cmpi eq, %1, %27 : vector<8x32xi32>
    %29 = arith.extui %28 : vector<8x32xi1> to vector<8x32xi32>
    %30 = arith.sitofp %29 : vector<8x32xi32> to vector<8x32xf32>
    %cst_14 = arith.constant dense<0.000000e+00> : vector<8x128xf32>
    %31 = tpu.matmul %30, %0, %cst_14 {dimension_numbers = #tpu.dot_dimension_numbers<[1], [0], [0], [1], [0, 0, 1, 1], [], []>, precision = #tpu.contract_precision<fp32>} : vector<8x32xf32>, vector<32x128xf32>, vector<8x128xf32> -> vector<8x128xf32>
    %32 = vector.extract_strided_slice %13 {offsets = [0, 0], sizes = [8, 32], strides = [1, 1]} : vector<8x128xf32> to vector<8x32xf32>
    %cst_15 = arith.constant 0.000000e+00 : f32
    %33 = vector.broadcast %cst_15 : f32 to vector<8x32xf32>
    %34 = arith.maximumf %32, %33 : vector<8x32xf32>
    %35 = vector.extract_strided_slice %7 {offsets = [0, 0], sizes = [8, 32], strides = [1, 1]} : vector<8x128xf32> to vector<8x32xf32>
    %cst_16 = arith.constant 0.000000e+00 : f32
    %36 = vector.broadcast %cst_16 : f32 to vector<8x32xf32>
    %37 = arith.maximumf %35, %36 : vector<8x32xf32>
    %38 = vector.extract_strided_slice %13 {offsets = [0, 32], sizes = [8, 32], strides = [1, 1]} : vector<8x128xf32> to vector<8x32xf32>
    %39 = vector.extract_strided_slice %19 {offsets = [0, 32], sizes = [8, 32], strides = [1, 1]} : vector<8x128xf32> to vector<8x32xf32>
    %40 = arith.subf %38, %39 : vector<8x32xf32>
    %41 = vector.extract_strided_slice %7 {offsets = [0, 32], sizes = [8, 32], strides = [1, 1]} : vector<8x128xf32> to vector<8x32xf32>
    %cst_17 = arith.constant 4.500000e-01 : f32
    %42 = vector.broadcast %cst_17 : f32 to vector<8x32xf32>
    %43 = arith.mulf %42, %34 : vector<8x32xf32>
    %cst_18 = arith.constant 5.000000e-01 : f32
    %44 = vector.broadcast %cst_18 : f32 to vector<8x32xf32>
    %45 = arith.mulf %44, %40 : vector<8x32xf32>
    %46 = math.sin %45 : vector<8x32xf32>
    %47 = math.absf %46 : vector<8x32xf32>
    %48 = arith.mulf %43, %47 : vector<8x32xf32>
    %49 = vector.extract_strided_slice %13 {offsets = [0, 64], sizes = [8, 32], strides = [1, 1]} : vector<8x128xf32> to vector<8x32xf32>
    %50 = vector.extract_strided_slice %13 {offsets = [0, 96], sizes = [8, 32], strides = [1, 1]} : vector<8x128xf32> to vector<8x32xf32>
    %51 = math.cos %41 : vector<8x32xf32>
    %52 = arith.mulf %48, %51 : vector<8x32xf32>
    %53 = math.sin %41 : vector<8x32xf32>
    %54 = arith.mulf %48, %53 : vector<8x32xf32>
    %55 = arith.addf %52, %49 : vector<8x32xf32>
    %56 = arith.addf %54, %50 : vector<8x32xf32>
    %57 = vector.extract_strided_slice %7 {offsets = [0, 64], sizes = [8, 32], strides = [1, 1]} : vector<8x128xf32> to vector<8x32xf32>
    %58 = vector.extract_strided_slice %7 {offsets = [0, 96], sizes = [8, 32], strides = [1, 1]} : vector<8x128xf32> to vector<8x32xf32>
    %59 = vector.extract_strided_slice %31 {offsets = [0, 64], sizes = [8, 32], strides = [1, 1]} : vector<8x128xf32> to vector<8x32xf32>
    %60 = vector.extract_strided_slice %31 {offsets = [0, 96], sizes = [8, 32], strides = [1, 1]} : vector<8x128xf32> to vector<8x32xf32>
    %61 = vector.extract_strided_slice %25 {offsets = [0, 64], sizes = [8, 32], strides = [1, 1]} : vector<8x128xf32> to vector<8x32xf32>
    %62 = vector.extract_strided_slice %25 {offsets = [0, 96], sizes = [8, 32], strides = [1, 1]} : vector<8x128xf32> to vector<8x32xf32>
    %63 = tpu.concatenate %55, %56, %57, %58, %48, %37, %59, %60, %61, %62 in 1 : vector<8x32xf32>, vector<8x32xf32>, vector<8x32xf32>, vector<8x32xf32>, vector<8x32xf32>, vector<8x32xf32>, vector<8x32xf32>, vector<8x32xf32>, vector<8x32xf32>, vector<8x32xf32> -> vector<8x320xf32>
    %c0_19 = arith.constant 0 : index
    %c0_20 = arith.constant 0 : index
    %64 = vector.load %arg7[%c0_19, %c0_20] : memref<8x320xf32, #tpu.memory_space<vmem>>, vector<8x320xf32>
    tpu.vector_store %arg7[%c0_19, %c0_20], %63 {strides = array<i32>} : memref<8x320xf32, #tpu.memory_space<vmem>>, vector<8x320xf32>,
    return
  }
  func.func @transform_0(%arg0: i32) -> (i32, i32) {
    %c0_i32 = arith.constant 0 : i32
    %c0_i32_0 = arith.constant 0 : i32
    return %arg0, %c0_i32 : i32, i32
  }
  func.func @transform_1(%arg0: i32) -> (i32, i32) {
    %c0_i32 = arith.constant 0 : i32
    %c0_i32_0 = arith.constant 0 : i32
    return %arg0, %c0_i32 : i32, i32
  }
  func.func @transform_2(%arg0: i32) -> (i32, i32) {
    %c0_i32 = arith.constant 0 : i32
    %c0_i32_0 = arith.constant 0 : i32
    return %arg0, %c0_i32 : i32, i32
  }
  func.func @transform_3(%arg0: i32) -> (i32, i32) {
    %c0_i32 = arith.constant 0 : i32
    %c0_i32_0 = arith.constant 0 : i32
    return %arg0, %c0_i32 : i32, i32
  }
  func.func @transform_4(%arg0: i32) -> (i32, i32) {
    %c0_i32 = arith.constant 0 : i32
    %c0_i32_0 = arith.constant 0 : i32
    return %arg0, %c0_i32 : i32, i32
  }
  func.func @transform_5(%arg0: i32) -> (i32, i32) {
    %c0_i32 = arith.constant 0 : i32
    %c0_i32_0 = arith.constant 0 : i32
    %c0_i32_1 = arith.constant 0 : i32
    return %c0_i32, %c0_i32_0 : i32, i32
  }
  func.func @transform_6(%arg0: i32) -> (i32, i32) {
    %c0_i32 = arith.constant 0 : i32
    %c0_i32_0 = arith.constant 0 : i32
    return %arg0, %c0_i32 : i32, i32
  }
}

</mosaic_0001>

<llo_original>
// kernel: tpu_custom_call.1
$region0: #{tpu_custom_call.1}
  #allocation0 [shape = 'u32[]', space=smem, size = 0x4, offset = 0x4, fixed_abs, tag = 'smem constant byte address 0x4 - core index']
  #allocation1 [shape = 'u32[144,128]{1,0:T(1,128)}', space=vmem, size = 0x12000, scoped, tag = 'internal scratch']
  %s0 = inlined_call_operand.vmem [shape: s32[16,1], index: 0, kind: input, shape index: {}]
  %s1 = inlined_call_operand.vmem [shape: s32[16,1], index: 1, kind: input, shape index: {}]
  %s2 = inlined_call_operand.vmem [shape: s32[16,1], index: 2, kind: input, shape index: {}]
  %s3 = inlined_call_operand.vmem [shape: s32[16,1], index: 3, kind: input, shape index: {}]
  %s4 = inlined_call_operand.vmem [shape: s32[16,1], index: 4, kind: input, shape index: {}]
  %s5 = inlined_call_operand.vmem [shape: f32[32,128], index: 5, kind: input, shape index: {}]
  %s6 = inlined_call_operand.hbm [shape: f32[16,320], index: 6, kind: output, shape index: {}]
  %s7 = sld [smem:[#allocation0]]
  $region57: #{tpu_custom_call.1} parent=0
    _
  %s9 = ssub.s32 1, %s7
  %s10 = scalar_select 0, %s9, %s7
  $region1: #{tpu_custom_call.1} parent=0
    #allocation2 [shape = 'u8[24576]{0}', space=vmem, size = 0x6000, scoped, tag = 'output window, operand 0']
    #allocation3 [shape = 's32[2]{0}', space=sflag, size = 0x8, scoped, tag = 'scoped memory for tpu_custom_call.1']
    %11 = vsyncpa [#allocation3], 0
    %s12 = scalar_lea.sflag [#allocation3], 1
    %13 = vsyncpa %s12, 0
    loop: start=0, step=1, limit=4
    $region2: #{tpu_custom_call.1} parent=1 // loop_pre_header
      _
    $region3: #{tpu_custom_call.1} parent=1 // loop_header
      %s15 = sphi 0, %s19
      %p16 = scmp.ge.s32.totalorder %s15, 4
      %s25 = sphi 0, %s27
      %s28 = sphi 0, %s25
      %s29 = sphi 0, %s28
      %s45 = sphi 0, %s29
      %s51 = sphi 0, %s53
      %s54 = sphi 0, %s51
      %s55 = sphi 0, %s54
      %s71 = sphi 0, %s55
      %s77 = sphi 0, %s79
      %s80 = sphi 0, %s77
      %s81 = sphi 0, %s80
      %s97 = sphi 0, %s81
      %s103 = sphi 0, %s105
      %s106 = sphi 0, %s103
      %s107 = sphi 0, %s106
      %s123 = sphi 0, %s107
      %s129 = sphi 0, %s131
      %s132 = sphi 0, %s129
      %s133 = sphi 0, %s132
      %s149 = sphi 0, %s133
      %s153 = sphi 0, %s153
      %s155 = sphi 0, %s153
      %s156 = sphi 0, %s155
      %s170 = sphi 0, %s156
      %s176 = sphi 0, %s178
      %s179 = sphi 0, %s176
      %s180 = sphi 0, %s179
      %s196 = sphi 0, %s180
    $region4: #{tpu_custom_call.1} parent=1 // loop_header_branch
      %18 = sbr.rel (%p16) target = $region8
    $region5: #{tpu_custom_call.1} parent=1 // loop_body
      %s20 = ssub.s32 %s15, 1
      %s21 = ssub.s32 %s15, 2
      %s22 = sadd.s32 %s15, 1
      %s23 = ssub.s32 %s15, %s22
      %p24 = scmp.eq.s32.totalorder %s23, 0
      %s26 = sadd.s32 %s25, 1
      %s27 = scalar_select %p24, %s25, %s26
      %p30 = pneg %p24
      %p31 = scmp.eq.s32.totalorder %s15, 1
      %p32 = por %p30, %p31
      %p33 = scmp.ne.s32.totalorder %s25, %s28
      %p34 = scmp.eq.s32.totalorder %s15, 0
      %p35 = por %p33, %p34
      %p36 = scmp.ne.s32.totalorder %s25, %s28
      %p37 = scmp.eq.s32.totalorder %s20, 1
      %p38 = por %p36, %p37
      %p39 = scmp.ne.s32.totalorder %s28, %s29
      %p40 = scmp.eq.s32.totalorder %s20, 0
      %p41 = por %p39, %p40
      %p42 = scmp.ne.s32.totalorder %s28, %s29
      %p43 = scmp.eq.s32.totalorder %s21, 1
      %p44 = por %p42, %p43
      %p46 = scmp.ne.s32.totalorder %s29, %s45
      %p47 = scmp.eq.s32.totalorder %s21, 0
      %p48 = por %p46, %p47
      %s49 = ssub.s32 %s15, %s22
      %p50 = scmp.eq.s32.totalorder %s49, 0
      %s52 = sadd.s32 %s51, 1
      %s53 = scalar_select %p50, %s51, %s52
      %p56 = pneg %p50
      %p57 = scmp.eq.s32.totalorder %s15, 1
      %p58 = por %p56, %p57
      %p59 = scmp.ne.s32.totalorder %s51, %s54
      %p60 = scmp.eq.s32.totalorder %s15, 0
      %p61 = por %p59, %p60
      %p62 = scmp.ne.s32.totalorder %s51, %s54
      %p63 = scmp.eq.s32.totalorder %s20, 1
      %p64 = por %p62, %p63
      %p65 = scmp.ne.s32.totalorder %s54, %s55
      %p66 = scmp.eq.s32.totalorder %s20, 0
      %p67 = por %p65, %p66
      %p68 = scmp.ne.s32.totalorder %s54, %s55
      %p69 = scmp.eq.s32.totalorder %s21, 1
      %p70 = por %p68, %p69
      %p72 = scmp.ne.s32.totalorder %s55, %s71
      %p73 = scmp.eq.s32.totalorder %s21, 0
      %p74 = por %p72, %p73
      %s75 = ssub.s32 %s15, %s22
      %p76 = scmp.eq.s32.totalorder %s75, 0
      %s78 = sadd.s32 %s77, 1
      %s79 = scalar_select %p76, %s77, %s78
      %p82 = pneg %p76
      %p83 = scmp.eq.s32.totalorder %s15, 1
      %p84 = por %p82, %p83
      %p85 = scmp.ne.s32.totalorder %s77, %s80
      %p86 = scmp.eq.s32.totalorder %s15, 0
      %p87 = por %p85, %p86
      %p88 = scmp.ne.s32.totalorder %s77, %s80
      %p89 = scmp.eq.s32.totalorder %s20, 1
      %p90 = por %p88, %p89
      %p91 = scmp.ne.s32.totalorder %s80, %s81
      %p92 = scmp.eq.s32.totalorder %s20, 0
      %p93 = por %p91, %p92
      %p94 = scmp.ne.s32.totalorder %s80, %s81
      %p95 = scmp.eq.s32.totalorder %s21, 1
      %p96 = por %p94, %p95
      %p98 = scmp.ne.s32.totalorder %s81, %s97
      %p99 = scmp.eq.s32.totalorder %s21, 0
      %p100 = por %p98, %p99
      %s101 = ssub.s32 %s15, %s22
      %p102 = scmp.eq.s32.totalorder %s101, 0
      %s104 = sadd.s32 %s103, 1
      %s105 = scalar_select %p102, %s103, %s104
      %p108 = pneg %p102
      %p109 = scmp.eq.s32.totalorder %s15, 1
      %p110 = por %p108, %p109
      %p111 = scmp.ne.s32.totalorder %s103, %s106
      %p112 = scmp.eq.s32.totalorder %s15, 0
      %p113 = por %p111, %p112
      %p114 = scmp.ne.s32.totalorder %s103, %s106
      %p115 = scmp.eq.s32.totalorder %s20, 1
      %p116 = por %p114, %p115
      %p117 = scmp.ne.s32.totalorder %s106, %s107
      %p118 = scmp.eq.s32.totalorder %s20, 0
      %p119 = por %p117, %p118
      %p120 = scmp.ne.s32.totalorder %s106, %s107
      %p121 = scmp.eq.s32.totalorder %s21, 1
      %p122 = por %p120, %p121
      %p124 = scmp.ne.s32.totalorder %s107, %s123
      %p125 = scmp.eq.s32.totalorder %s21, 0
      %p126 = por %p124, %p125
      %s127 = ssub.s32 %s15, %s22
      %p128 = scmp.eq.s32.totalorder %s127, 0
      %s130 = sadd.s32 %s129, 1
      %s131 = scalar_select %p128, %s129, %s130
      %p134 = pneg %p128
      %p135 = scmp.eq.s32.totalorder %s15, 1
      %p136 = por %p134, %p135
      %p137 = scmp.ne.s32.totalorder %s129, %s132
      %p138 = scmp.eq.s32.totalorder %s15, 0
      %p139 = por %p137, %p138
      %p140 = scmp.ne.s32.totalorder %s129, %s132
      %p141 = scmp.eq.s32.totalorder %s20, 1
      %p142 = por %p140, %p141
      %p143 = scmp.ne.s32.totalorder %s132, %s133
      %p144 = scmp.eq.s32.totalorder %s20, 0
      %p145 = por %p143, %p144
      %p146 = scmp.ne.s32.totalorder %s132, %s133
      %p147 = scmp.eq.s32.totalorder %s21, 1
      %p148 = por %p146, %p147
      %p150 = scmp.ne.s32.totalorder %s133, %s149
      %p151 = scmp.eq.s32.totalorder %s21, 0
      %p152 = por %p150, %p151
      %s154 = sadd.s32 %s153, 1
      %p157 = scmp.eq.s32.totalorder %s15, 1
      %p158 = scmp.ne.s32.totalorder %s153, %s155
      %p159 = scmp.eq.s32.totalorder %s15, 0
      %p160 = por %p158, %p159
      %p161 = scmp.ne.s32.totalorder %s153, %s155
      %p162 = scmp.eq.s32.totalorder %s20, 1
      %p163 = por %p161, %p162
      %p164 = scmp.ne.s32.totalorder %s155, %s156
      %p165 = scmp.eq.s32.totalorder %s20, 0
      %p166 = por %p164, %p165
      %p167 = scmp.ne.s32.totalorder %s155, %s156
      %p168 = scmp.eq.s32.totalorder %s21, 1
      %p169 = por %p167, %p168
      %p171 = scmp.ne.s32.totalorder %s156, %s170
      %p172 = scmp.eq.s32.totalorder %s21, 0
      %p173 = por %p171, %p172
      %s174 = ssub.s32 %s15, %s22
      %p175 = scmp.eq.s32.totalorder %s174, 0
      %s177 = sadd.s32 %s176, 1
      %s178 = scalar_select %p175, %s176, %s177
      %p181 = pneg %p175
      %p182 = scmp.eq.s32.totalorder %s15, 1
      %p183 = por %p181, %p182
      %p184 = scmp.ne.s32.totalorder %s176, %s179
      %p185 = scmp.eq.s32.totalorder %s15, 0
      %p186 = por %p184, %p185
      %p187 = scmp.ne.s32.totalorder %s176, %s179
      %p188 = scmp.eq.s32.totalorder %s20, 1
      %p189 = por %p187, %p188
      %p190 = scmp.ne.s32.totalorder %s179, %s180
      %p191 = scmp.eq.s32.totalorder %s20, 0
      %p192 = por %p190, %p191
      %p193 = scmp.ne.s32.totalorder %s179, %s180
      %p194 = scmp.eq.s32.totalorder %s21, 1
      %p195 = por %p193, %p194
      %p197 = scmp.ne.s32.totalorder %s180, %s196
      %p198 = scmp.eq.s32.totalorder %s21, 0
      %p199 = por %p197, %p198
      %p200 = scmp.le.s32.totalorder 1, %s15
      %p201 = scmp.lt.s32.totalorder %s15, 3
      %p202 = pnand %p200, %p201
      %p203 = pneg %p202
      // Predicated region
      $region9: #{tpu_custom_call.1} parent=5 // pred_check
        _
      $region10: #{tpu_custom_call.1} parent=5 // pred_check_branch
        %205 = sbr.rel (%p202) target = $region12
      $region11: #{tpu_custom_call.1} parent=5 // pred_region
        %s206 = ssub.s32 %s15, 1
        // Predicated region
        $region13: #{tpu_custom_call.1} parent=11 // pred_check
          %p207 = pneg %p166
        $region14: #{tpu_custom_call.1} parent=11 // pred_check_branch
          %209 = sbr.rel (%p207) target = $region16
        $region15: #{tpu_custom_call.1} parent=11 // pred_region
          _
        $region16: #{tpu_custom_call.1} parent=11 // pred_fallthru
          _
      $region12: #{tpu_custom_call.1} parent=5 // pred_fallthru
        _
      %p210 = scmp.lt.s32.totalorder %s15, 2
      // Predicated region
      $region17: #{tpu_custom_call.1} parent=5 // pred_check
        %p211 = pneg %p210
      $region18: #{tpu_custom_call.1} parent=5 // pred_check_branch
        %213 = sbr.rel (%p211) target = $region20
      $region19: #{tpu_custom_call.1} parent=5 // pred_region
        // Predicated region
        $region21: #{tpu_custom_call.1} parent=19 // pred_check
          %p214 = pneg %p35
        $region22: #{tpu_custom_call.1} parent=19 // pred_check_branch
          %216 = sbr.rel (%p214) target = $region24
        $region23: #{tpu_custom_call.1} parent=19 // pred_region
          %p217 = scmp.lt.s32.totalorder %s15, 1
          %s218 = scalar_select %p217, %s15, 1
          %s219 = smul.addr %s218, 8
          %s220 = scalar_lea.vmem %s0, %s219
        $region24: #{tpu_custom_call.1} parent=19 // pred_fallthru
          _
        // Predicated region
        $region25: #{tpu_custom_call.1} parent=19 // pred_check
          %p221 = pneg %p61
        $region26: #{tpu_custom_call.1} parent=19 // pred_check_branch
          %223 = sbr.rel (%p221) target = $region28
        $region27: #{tpu_custom_call.1} parent=19 // pred_region
          %p224 = scmp.lt.s32.totalorder %s15, 1
          %s225 = scalar_select %p224, %s15, 1
          %s226 = smul.addr %s225, 8
          %s227 = scalar_lea.vmem %s1, %s226
        $region28: #{tpu_custom_call.1} parent=19 // pred_fallthru
          _
        // Predicated region
        $region29: #{tpu_custom_call.1} parent=19 // pred_check
          %p228 = pneg %p87
        $region30: #{tpu_custom_call.1} parent=19 // pred_check_branch
          %230 = sbr.rel (%p228) target = $region32
        $region31: #{tpu_custom_call.1} parent=19 // pred_region
          %p231 = scmp.lt.s32.totalorder %s15, 1
          %s232 = scalar_select %p231, %s15, 1
          %s233 = smul.addr %s232, 8
          %s234 = scalar_lea.vmem %s2, %s233
        $region32: #{tpu_custom_call.1} parent=19 // pred_fallthru
          _
        // Predicated region
        $region33: #{tpu_custom_call.1} parent=19 // pred_check
          %p235 = pneg %p113
        $region34: #{tpu_custom_call.1} parent=19 // pred_check_branch
          %237 = sbr.rel (%p235) target = $region36
        $region35: #{tpu_custom_call.1} parent=19 // pred_region
          %p238 = scmp.lt.s32.totalorder %s15, 1
          %s239 = scalar_select %p238, %s15, 1
          %s240 = smul.addr %s239, 8
          %s241 = scalar_lea.vmem %s3, %s240
        $region36: #{tpu_custom_call.1} parent=19 // pred_fallthru
          _
        // Predicated region
        $region37: #{tpu_custom_call.1} parent=19 // pred_check
          %p242 = pneg %p139
        $region38: #{tpu_custom_call.1} parent=19 // pred_check_branch
          %244 = sbr.rel (%p242) target = $region40
        $region39: #{tpu_custom_call.1} parent=19 // pred_region
          %p245 = scmp.lt.s32.totalorder %s15, 1
          %s246 = scalar_select %p245, %s15, 1
          %s247 = smul.addr %s246, 8
          %s248 = scalar_lea.vmem %s4, %s247
        $region40: #{tpu_custom_call.1} parent=19 // pred_fallthru
          _
      $region20: #{tpu_custom_call.1} parent=5 // pred_fallthru
        _
      %p249 = scmp.le.s32.totalorder 1, %s15
      %p250 = scmp.lt.s32.totalorder %s15, 3
      %p251 = pnand %p249, %p250
      %p252 = pneg %p251
      // Predicated region
      $region41: #{tpu_custom_call.1} parent=5 // pred_check
        _
      $region42: #{tpu_custom_call.1} parent=5 // pred_check_branch
        %254 = sbr.rel (%p251) target = $region44
      $region43: #{tpu_custom_call.1} parent=5 // pred_region
        %s255 = ssub.s32 %s15, 1
        %p256 = scmp.lt.s32.totalorder %s20, 1
        %s257 = scalar_select %p256, %s20, 1
        %s258 = smul.addr %s257, 8
        %s259 = scalar_lea.vmem %s0, %s258
        %p260 = pneg %p41
        %p261 = pneg %p38
        %p262 = scmp.lt.s32.totalorder %s20, 1
        %s263 = scalar_select %p262, %s20, 1
        %s264 = smul.addr %s263, 8
        %s265 = scalar_lea.vmem %s1, %s264
        %p266 = pneg %p67
        %p267 = pneg %p64
        %p268 = scmp.lt.s32.totalorder %s20, 1
        %s269 = scalar_select %p268, %s20, 1
        %s270 = smul.addr %s269, 8
        %s271 = scalar_lea.vmem %s2, %s270
        %p272 = pneg %p93
        %p273 = pneg %p90
        %p274 = scmp.lt.s32.totalorder %s20, 1
        %s275 = scalar_select %p274, %s20, 1
        %s276 = smul.addr %s275, 8
        %s277 = scalar_lea.vmem %s3, %s276
        %p278 = pneg %p119
        %p279 = pneg %p116
        %p280 = scmp.lt.s32.totalorder %s20, 1
        %s281 = scalar_select %p280, %s20, 1
        %s282 = smul.addr %s281, 8
        %s283 = scalar_lea.vmem %s4, %s282
        %p284 = pneg %p145
        %p285 = pneg %p142
        %p286 = pneg %p166
        %p287 = pneg %p163
        %p288 = pneg %p192
        %p289 = pneg %p189
        %s290 = sand.u32 %s179, 1
        %s291 = scalar_lea.sflag [#allocation3], %s290
        %s292 = sand.u32 %s179, 1
        %s293 = smul.addr %s292, 24
        %s294 = scalar_lea.vmem [#allocation2], %s293
        %p295 = scmp.lt.s32.totalorder %s20, 1
        %s296 = scalar_select %p295, %s20, 1
        %s297 = smul.addr %s296, 8
        %s298 = scalar_lea.vmem %s0, %s297
        %p299 = scmp.lt.s32.totalorder %s20, 1
        %s300 = scalar_select %p299, %s20, 1
        %s301 = smul.addr %s300, 8
        %s302 = scalar_lea.vmem %s1, %s301
        %p303 = scmp.lt.s32.totalorder %s20, 1
        %s304 = scalar_select %p303, %s20, 1
        %s305 = smul.addr %s304, 8
        %s306 = scalar_lea.vmem %s2, %s305
        %p307 = scmp.lt.s32.totalorder %s20, 1
        %s308 = scalar_select %p307, %s20, 1
        %s309 = smul.addr %s308, 8
        %s310 = scalar_lea.vmem %s3, %s309
        %p311 = scmp.lt.s32.totalorder %s20, 1
        %s312 = scalar_select %p311, %s20, 1
        %s313 = smul.addr %s312, 8
        %s314 = scalar_lea.vmem %s4, %s313
        %v315 = vld [vmem:[%s5] sm:$0xff]
        %v316 = vld [vmem:[%s5 + $0x8] sm:$0xff]
        %v317 = vld [vmem:[%s5 + $0x10] sm:$0xff]
        %v318 = vld [vmem:[%s5 + $0x18] sm:$0xff]
        %v319 = vlaneseq
        %v320 = vand.u32 %v319, 127
        %v321 = vld [vmem:[%s298] sm:$0xff]
        %322 = vset.pattern.permute.xlu0 0
        %323 = vperm.xlu0 %322, %v321
        %v324 = vpop.permute.xlu0 %323
        %vm325 = vcmp.eq.s32.totalorder %v320, %v324
        %v326 = vsel %vm325, 1, 0
        %v327 = vcvt.s32.f32 %v326
        %vm328 = vcmask 261120
        %v330 = vsel %vm328, %v327, 0
        %332 = vmatprep.subr.mxu0 0.0
        %v333 = vand.u32 %v315, 4294901760
        %334 = vmatpush1.msra.mxu0 %v333
        %335 = vmatprep.subr.mxu0 0.0
        %v336 = vand.u32 %v316, 4294901760
        %337 = vmatpush1.msra.mxu0 %v336
        %338 = vmatprep.subr.mxu0 0.0
        %v339 = vand.u32 %v317, 4294901760
        %340 = vmatpush1.msra.mxu0 %v339
        %341 = vmatprep.subr.mxu0 0.0
        %v342 = vand.u32 %v318, 4294901760
        %343 = vmatpush1.msra.mxu0 %v342
        %344 = vmatprep.subr.mxu0 0.0
        %345 = vmatpush1.msra.mxu0 0.0
        %346 = vmatprep.subr.mxu0 0.0
        %347 = vmatpush1.msra.mxu0 0.0
        %348 = vmatprep.subr.mxu0 0.0
        %349 = vmatpush1.msra.mxu0 0.0
        %350 = vmatprep.subr.mxu0 0.0
        %351 = vmatpush1.msra.mxu0 0.0
        %352 = vmatprep.subr.mxu0 0.0
        %353 = vmatpush1.msra.mxu0 0.0
        %354 = vmatprep.subr.mxu0 0.0
        %355 = vmatpush1.msra.mxu0 0.0
        %356 = vmatprep.subr.mxu0 0.0
        %357 = vmatpush1.msra.mxu0 0.0
        %358 = vmatprep.subr.mxu0 0.0
        %359 = vmatpush1.msra.mxu0 0.0
        %360 = vmatprep.subr.mxu0 0.0
        %361 = vmatpush1.msra.mxu0 0.0
        %362 = vmatprep.subr.mxu0 0.0
        %363 = vmatpush1.msra.mxu0 0.0
        %364 = vmatprep.subr.mxu0 0.0
        %365 = vmatpush1.msra.mxu0 0.0
        %366 = vmatprep.subr.mxu0 0.0
        %367 = vmatpush1.msra.mxu0 0.0
        %368 = vmatprep.subr.mxu0 0.0
        %369 = vmatpush1.msra.mxu0 0.0
        %370 = vmatprep.subr.mxu0 0.0
        %371 = vmatpush1.msra.mxu0 0.0
        %372 = vmatprep.subr.mxu0 0.0
        %373 = vmatpush1.msra.mxu0 0.0
        %374 = vmatprep.subr.mxu0 0.0
        %375 = vmatpush1.msra.mxu0 0.0
        %376 = vmatprep.subr.mxu0 0.0
        %377 = vmatpush1.msra.mxu0 0.0
        %378 = vmatprep.subr.mxu0 0.0
        %379 = vmatpush1.msra.mxu0 0.0
        %380 = vmatprep.subr.mxu0 0.0
        %381 = vmatpush1.msra.mxu0 0.0
        %382 = vmatprep.subr.mxu0 0.0
        %383 = vmatpush1.msra.mxu0 0.0
        %384 = vmatprep.subr.mxu0 0.0
        %385 = vmatpush1.msra.mxu0 0.0
        %386 = vmatprep.subr.mxu0 0.0
        %387 = vmatpush1.msra.mxu0 0.0
        %388 = vmatprep.subr.mxu0 0.0
        %389 = vmatpush1.msra.mxu0 0.0
        %390 = vmatprep.subr.mxu0 0.0
        %391 = vmatpush1.msra.mxu0 0.0
        %392 = vmatprep.subr.mxu0 0.0
        %393 = vmatpush1.msra.mxu0 0.0
        %394 = vmatprep.subr.mxu0 0.0
        %395 = vmatpush1.msra.mxu0 0.0
        %396 = vmatprep.subr.mxu0 0.0
        %397 = vmatpush1.msra.mxu0 0.0
        %398 = vmatprep.subr.mxu0 0.0
        %399 = vmatpush1.msra.mxu0 0.0
        %400 = vmatprep.mubr.f32.mxu0 0.0
        %v401 = vand.u32 %v330, 4294901760
        %v402 = vsub.f32 %v330, %v401
        %v403 = vand.u32 %v402, 4294901760
        %v404 = vsub.f32 %v402, %v403
        %v405 = vand.u32 %v404, 4294901760
        %406 = vmatmul.mubr.f32.gmra.mrb[0].mxu0 %v405
        %v407 = vpop.f32.mrb[0].mxu0
        %v408 = vadd.f32 0.0, %v407
        %v409 = vpop.f32.mrb[0].mxu0
        %410 = vdwg.mxu0
        %411 = vmatprep.subr.mxu0 0.0
        %v412 = vand.u32 %v315, 4294901760
        %v413 = vsub.f32 %v315, %v412
        %v414 = vand.u32 %v413, 4294901760
        %v415 = vsub.f32 %v413, %v414
        %v416 = vand.u32 %v415, 4294901760
        %417 = vmatpush1.msra.mxu0 %v416
        %418 = vmatprep.subr.mxu0 0.0
        %v419 = vand.u32 %v316, 4294901760
        %v420 = vsub.f32 %v316, %v419
        %v421 = vand.u32 %v420, 4294901760
        %v422 = vsub.f32 %v420, %v421
        %v423 = vand.u32 %v422, 4294901760
        %424 = vmatpush1.msra.mxu0 %v423
        %425 = vmatprep.subr.mxu0 0.0
        %v426 = vand.u32 %v317, 4294901760
        %v427 = vsub.f32 %v317, %v426
        %v428 = vand.u32 %v427, 4294901760
        %v429 = vsub.f32 %v427, %v428
        %v430 = vand.u32 %v429, 4294901760
        %431 = vmatpush1.msra.mxu0 %v430
        %432 = vmatprep.subr.mxu0 0.0
        %v433 = vand.u32 %v318, 4294901760
        %v434 = vsub.f32 %v318, %v433
        %v435 = vand.u32 %v434, 4294901760
        %v436 = vsub.f32 %v434, %v435
        %v437 = vand.u32 %v436, 4294901760
        %438 = vmatpush1.msra.mxu0 %v437
        %439 = vmatprep.subr.mxu0 0.0
        %440 = vmatpush1.msra.mxu0 0.0
        %441 = vmatprep.subr.mxu0 0.0
        %442 = vmatpush1.msra.mxu0 0.0
        %443 = vmatprep.subr.mxu0 0.0
        %444 = vmatpush1.msra.mxu0 0.0
        %445 = vmatprep.subr.mxu0 0.0
        %446 = vmatpush1.msra.mxu0 0.0
        %447 = vmatprep.subr.mxu0 0.0
        %448 = vmatpush1.msra.mxu0 0.0
        %449 = vmatprep.subr.mxu0 0.0
        %450 = vmatpush1.msra.mxu0 0.0
        %451 = vmatprep.subr.mxu0 0.0
        %452 = vmatpush1.msra.mxu0 0.0
        %453 = vmatprep.subr.mxu0 0.0
        %454 = vmatpush1.msra.mxu0 0.0
        %455 = vmatprep.subr.mxu0 0.0
        %456 = vmatpush1.msra.mxu0 0.0
        %457 = vmatprep.subr.mxu0 0.0
        %458 = vmatpush1.msra.mxu0 0.0
        %459 = vmatprep.subr.mxu0 0.0
        %460 = vmatpush1.msra.mxu0 0.0
        %461 = vmatprep.subr.mxu0 0.0
        %462 = vmatpush1.msra.mxu0 0.0
        %463 = vmatprep.subr.mxu0 0.0
        %464 = vmatpush1.msra.mxu0 0.0
        %465 = vmatprep.subr.mxu0 0.0
        %466 = vmatpush1.msra.mxu0 0.0
        %467 = vmatprep.subr.mxu0 0.0
        %468 = vmatpush1.msra.mxu0 0.0
        %469 = vmatprep.subr.mxu0 0.0
        %470 = vmatpush1.msra.mxu0 0.0
        %471 = vmatprep.subr.mxu0 0.0
        %472 = vmatpush1.msra.mxu0 0.0
        %473 = vmatprep.subr.mxu0 0.0
        %474 = vmatpush1.msra.mxu0 0.0
        %475 = vmatprep.subr.mxu0 0.0
        %476 = vmatpush1.msra.mxu0 0.0
        %477 = vmatprep.subr.mxu0 0.0
        %478 = vmatpush1.msra.mxu0 0.0
        %479 = vmatprep.subr.mxu0 0.0
        %480 = vmatpush1.msra.mxu0 0.0
        %481 = vmatprep.subr.mxu0 0.0
        %482 = vmatpush1.msra.mxu0 0.0
        %483 = vmatprep.subr.mxu0 0.0
        %484 = vmatpush1.msra.mxu0 0.0
        %485 = vmatprep.subr.mxu0 0.0
        %486 = vmatpush1.msra.mxu0 0.0
        %487 = vmatprep.subr.mxu0 0.0
        %488 = vmatpush1.msra.mxu0 0.0
        %489 = vmatprep.subr.mxu0 0.0
        %490 = vmatpush1.msra.mxu0 0.0
        %491 = vmatprep.subr.mxu0 0.0
        %492 = vmatpush1.msra.mxu0 0.0
        %493 = vmatprep.subr.mxu0 0.0
        %494 = vmatpush1.msra.mxu0 0.0
        %495 = vmatprep.mubr.f32.mxu0 0.0
        %v496 = vand.u32 %v330, 4294901760
        %497 = vmatmul.mubr.f32.gmra.mrb[0].mxu0 %v496
        %v498 = vpop.f32.mrb[0].mxu0
        %v499 = vadd.f32 %v408, %v498
        %v500 = vpop.f32.mrb[0].mxu0
        %501 = vdwg.mxu0
        %502 = vmatprep.subr.mxu0 0.0
        %v503 = vand.u32 %v315, 4294901760
        %v504 = vsub.f32 %v315, %v503
        %505 = vmatpush1.msra.mxu0 %v504
        %506 = vmatprep.subr.mxu0 0.0
        %v507 = vand.u32 %v316, 4294901760
        %v508 = vsub.f32 %v316, %v507
        %509 = vmatpush1.msra.mxu0 %v508
        %510 = vmatprep.subr.mxu0 0.0
        %v511 = vand.u32 %v317, 4294901760
        %v512 = vsub.f32 %v317, %v511
        %513 = vmatpush1.msra.mxu0 %v512
        %514 = vmatprep.subr.mxu0 0.0
        %v515 = vand.u32 %v318, 4294901760
        %v516 = vsub.f32 %v318, %v515
        %517 = vmatpush1.msra.mxu0 %v516
        %518 = vmatprep.subr.mxu0 0.0
        %519 = vmatpush1.msra.mxu0 0.0
        %520 = vmatprep.subr.mxu0 0.0
        %521 = vmatpush1.msra.mxu0 0.0
        %522 = vmatprep.subr.mxu0 0.0
        %523 = vmatpush1.msra.mxu0 0.0
        %524 = vmatprep.subr.mxu0 0.0
        %525 = vmatpush1.msra.mxu0 0.0
        %526 = vmatprep.subr.mxu0 0.0
        %527 = vmatpush1.msra.mxu0 0.0
        %528 = vmatprep.subr.mxu0 0.0
        %529 = vmatpush1.msra.mxu0 0.0
        %530 = vmatprep.subr.mxu0 0.0
        %531 = vmatpush1.msra.mxu0 0.0
        %532 = vmatprep.subr.mxu0 0.0
        %533 = vmatpush1.msra.mxu0 0.0
        %534 = vmatprep.subr.mxu0 0.0
        %535 = vmatpush1.msra.mxu0 0.0
        %536 = vmatprep.subr.mxu0 0.0
        %537 = vmatpush1.msra.mxu0 0.0
        %538 = vmatprep.subr.mxu0 0.0
        %539 = vmatpush1.msra.mxu0 0.0
        %540 = vmatprep.subr.mxu0 0.0
        %541 = vmatpush1.msra.mxu0 0.0
        %542 = vmatprep.subr.mxu0 0.0
        %543 = vmatpush1.msra.mxu0 0.0
        %544 = vmatprep.subr.mxu0 0.0
        %545 = vmatpush1.msra.mxu0 0.0
        %546 = vmatprep.subr.mxu0 0.0
        %547 = vmatpush1.msra.mxu0 0.0
        %548 = vmatprep.subr.mxu0 0.0
        %549 = vmatpush1.msra.mxu0 0.0
        %550 = vmatprep.subr.mxu0 0.0
        %551 = vmatpush1.msra.mxu0 0.0
        %552 = vmatprep.subr.mxu0 0.0
        %553 = vmatpush1.msra.mxu0 0.0
        %554 = vmatprep.subr.mxu0 0.0
        %555 = vmatpush1.msra.mxu0 0.0
        %556 = vmatprep.subr.mxu0 0.0
        %557 = vmatpush1.msra.mxu0 0.0
        %558 = vmatprep.subr.mxu0 0.0
        %559 = vmatpush1.msra.mxu0 0.0
        %560 = vmatprep.subr.mxu0 0.0
        %561 = vmatpush1.msra.mxu0 0.0
        %562 = vmatprep.subr.mxu0 0.0
        %563 = vmatpush1.msra.mxu0 0.0
        %564 = vmatprep.subr.mxu0 0.0
        %565 = vmatpush1.msra.mxu0 0.0
        %566 = vmatprep.subr.mxu0 0.0
        %567 = vmatpush1.msra.mxu0 0.0
        %568 = vmatprep.subr.mxu0 0.0
        %569 = vmatpush1.msra.mxu0 0.0
        %570 = vmatprep.subr.mxu0 0.0
        %571 = vmatpush1.msra.mxu0 0.0
        %572 = vmatprep.subr.mxu0 0.0
        %573 = vmatpush1.msra.mxu0 0.0
        %574 = vmatprep.mubr.f32.mxu0 0.0
        %v575 = vand.u32 %v330, 4294901760
        %v576 = vsub.f32 %v330, %v575
        %577 = vmatmul.mubr.f32.gmra.mrb[0].mxu0 %v576
        %v578 = vpop.f32.mrb[0].mxu0
        %v579 = vadd.f32 %v499, %v578
        %v580 = vpop.f32.mrb[0].mxu0
        %581 = vdwg.mxu0
        %582 = vmatprep.subr.mxu0 0.0
        %v583 = vand.u32 %v315, 4294901760
        %584 = vmatpush1.msra.mxu0 %v583
        %585 = vmatprep.subr.mxu0 0.0
        %v586 = vand.u32 %v316, 4294901760
        %587 = vmatpush1.msra.mxu0 %v586
        %588 = vmatprep.subr.mxu0 0.0
        %v589 = vand.u32 %v317, 4294901760
        %590 = vmatpush1.msra.mxu0 %v589
        %591 = vmatprep.subr.mxu0 0.0
        %v592 = vand.u32 %v318, 4294901760
        %593 = vmatpush1.msra.mxu0 %v592
        %594 = vmatprep.subr.mxu0 0.0
        %595 = vmatpush1.msra.mxu0 0.0
        %596 = vmatprep.subr.mxu0 0.0
        %597 = vmatpush1.msra.mxu0 0.0
        %598 = vmatprep.subr.mxu0 0.0
        %599 = vmatpush1.msra.mxu0 0.0
        %600 = vmatprep.subr.mxu0 0.0
        %601 = vmatpush1.msra.mxu0 0.0
        %602 = vmatprep.subr.mxu0 0.0
        %603 = vmatpush1.msra.mxu0 0.0
        %604 = vmatprep.subr.mxu0 0.0
        %605 = vmatpush1.msra.mxu0 0.0
        %606 = vmatprep.subr.mxu0 0.0
        %607 = vmatpush1.msra.mxu0 0.0
        %608 = vmatprep.subr.mxu0 0.0
        %609 = vmatpush1.msra.mxu0 0.0
        %610 = vmatprep.subr.mxu0 0.0
        %611 = vmatpush1.msra.mxu0 0.0
        %612 = vmatprep.subr.mxu0 0.0
        %613 = vmatpush1.msra.mxu0 0.0
        %614 = vmatprep.subr.mxu0 0.0
        %615 = vmatpush1.msra.mxu0 0.0
        %616 = vmatprep.subr.mxu0 0.0
        %617 = vmatpush1.msra.mxu0 0.0
        %618 = vmatprep.subr.mxu0 0.0
        %619 = vmatpush1.msra.mxu0 0.0
        %620 = vmatprep.subr.mxu0 0.0
        %621 = vmatpush1.msra.mxu0 0.0
        %622 = vmatprep.subr.mxu0 0.0
        %623 = vmatpush1.msra.mxu0 0.0
        %624 = vmatprep.subr.mxu0 0.0
        %625 = vmatpush1.msra.mxu0 0.0
        %626 = vmatprep.subr.mxu0 0.0
        %627 = vmatpush1.msra.mxu0 0.0
        %628 = vmatprep.subr.mxu0 0.0
        %629 = vmatpush1.msra.mxu0 0.0
        %630 = vmatprep.subr.mxu0 0.0
        %631 = vmatpush1.msra.mxu0 0.0
        %632 = vmatprep.subr.mxu0 0.0
        %633 = vmatpush1.msra.mxu0 0.0
        %634 = vmatprep.subr.mxu0 0.0
        %635 = vmatpush1.msra.mxu0 0.0
        %636 = vmatprep.subr.mxu0 0.0
        %637 = vmatpush1.msra.mxu0 0.0
        %638 = vmatprep.subr.mxu0 0.0
        %639 = vmatpush1.msra.mxu0 0.0
        %640 = vmatprep.subr.mxu0 0.0
        %641 = vmatpush1.msra.mxu0 0.0
        %642 = vmatprep.subr.mxu0 0.0
        %643 = vmatpush1.msra.mxu0 0.0
        %644 = vmatprep.subr.mxu0 0.0
        %645 = vmatpush1.msra.mxu0 0.0
        %646 = vmatprep.subr.mxu0 0.0
        %647 = vmatpush1.msra.mxu0 0.0
        %648 = vmatprep.subr.mxu0 0.0
        %649 = vmatpush1.msra.mxu0 0.0
        %650 = vmatprep.mubr.f32.mxu0 0.0
        %v651 = vand.u32 %v330, 4294901760
        %v652 = vsub.f32 %v330, %v651
        %v653 = vand.u32 %v652, 4294901760
        %654 = vmatmul.mubr.f32.gmra.mrb[0].mxu0 %v653
        %v655 = vpop.f32.mrb[0].mxu0
        %v656 = vadd.f32 %v579, %v655
        %v657 = vpop.f32.mrb[0].mxu0
        %658 = vdwg.mxu0
        %659 = vmatprep.subr.mxu0 0.0
        %v660 = vand.u32 %v315, 4294901760
        %v661 = vsub.f32 %v315, %v660
        %v662 = vand.u32 %v661, 4294901760
        %663 = vmatpush1.msra.mxu0 %v662
        %664 = vmatprep.subr.mxu0 0.0
        %v665 = vand.u32 %v316, 4294901760
        %v666 = vsub.f32 %v316, %v665
        %v667 = vand.u32 %v666, 4294901760
        %668 = vmatpush1.msra.mxu0 %v667
        %669 = vmatprep.subr.mxu0 0.0
        %v670 = vand.u32 %v317, 4294901760
        %v671 = vsub.f32 %v317, %v670
        %v672 = vand.u32 %v671, 4294901760
        %673 = vmatpush1.msra.mxu0 %v672
        %674 = vmatprep.subr.mxu0 0.0
        %v675 = vand.u32 %v318, 4294901760
        %v676 = vsub.f32 %v318, %v675
        %v677 = vand.u32 %v676, 4294901760
        %678 = vmatpush1.msra.mxu0 %v677
        %679 = vmatprep.subr.mxu0 0.0
        %680 = vmatpush1.msra.mxu0 0.0
        %681 = vmatprep.subr.mxu0 0.0
        %682 = vmatpush1.msra.mxu0 0.0
        %683 = vmatprep.subr.mxu0 0.0
        %684 = vmatpush1.msra.mxu0 0.0
        %685 = vmatprep.subr.mxu0 0.0
        %686 = vmatpush1.msra.mxu0 0.0
        %687 = vmatprep.subr.mxu0 0.0
        %688 = vmatpush1.msra.mxu0 0.0
        %689 = vmatprep.subr.mxu0 0.0
        %690 = vmatpush1.msra.mxu0 0.0
        %691 = vmatprep.subr.mxu0 0.0
        %692 = vmatpush1.msra.mxu0 0.0
        %693 = vmatprep.subr.mxu0 0.0
        %694 = vmatpush1.msra.mxu0 0.0
        %695 = vmatprep.subr.mxu0 0.0
        %696 = vmatpush1.msra.mxu0 0.0
        %697 = vmatprep.subr.mxu0 0.0
        %698 = vmatpush1.msra.mxu0 0.0
        %699 = vmatprep.subr.mxu0 0.0
        %700 = vmatpush1.msra.mxu0 0.0
        %701 = vmatprep.subr.mxu0 0.0
        %702 = vmatpush1.msra.mxu0 0.0
        %703 = vmatprep.subr.mxu0 0.0
        %704 = vmatpush1.msra.mxu0 0.0
        %705 = vmatprep.subr.mxu0 0.0
        %706 = vmatpush1.msra.mxu0 0.0
        %707 = vmatprep.subr.mxu0 0.0
        %708 = vmatpush1.msra.mxu0 0.0
        %709 = vmatprep.subr.mxu0 0.0
        %710 = vmatpush1.msra.mxu0 0.0
        %711 = vmatprep.subr.mxu0 0.0
        %712 = vmatpush1.msra.mxu0 0.0
        %713 = vmatprep.subr.mxu0 0.0
        %714 = vmatpush1.msra.mxu0 0.0
        %715 = vmatprep.subr.mxu0 0.0
        %716 = vmatpush1.msra.mxu0 0.0
        %717 = vmatprep.subr.mxu0 0.0
        %718 = vmatpush1.msra.mxu0 0.0
        %719 = vmatprep.subr.mxu0 0.0
        %720 = vmatpush1.msra.mxu0 0.0
        %721 = vmatprep.subr.mxu0 0.0
        %722 = vmatpush1.msra.mxu0 0.0
        %723 = vmatprep.subr.mxu0 0.0
        %724 = vmatpush1.msra.mxu0 0.0
        %725 = vmatprep.subr.mxu0 0.0
        %726 = vmatpush1.msra.mxu0 0.0
        %727 = vmatprep.subr.mxu0 0.0
        %728 = vmatpush1.msra.mxu0 0.0
        %729 = vmatprep.subr.mxu0 0.0
        %730 = vmatpush1.msra.mxu0 0.0
        %731 = vmatprep.subr.mxu0 0.0
        %732 = vmatpush1.msra.mxu0 0.0
        %733 = vmatprep.subr.mxu0 0.0
        %734 = vmatpush1.msra.mxu0 0.0
        %735 = vmatprep.mubr.f32.mxu0 0.0
        %v736 = vand.u32 %v330, 4294901760
        %737 = vmatmul.mubr.f32.gmra.mrb[0].mxu0 %v736
        %v738 = vpop.f32.mrb[0].mxu0
        %v739 = vadd.f32 %v656, %v738
        %v740 = vpop.f32.mrb[0].mxu0
        %741 = vdwg.mxu0
        %742 = vmatprep.subr.mxu0 0.0
        %v743 = vand.u32 %v315, 4294901760
        %744 = vmatpush1.msra.mxu0 %v743
        %745 = vmatprep.subr.mxu0 0.0
        %v746 = vand.u32 %v316, 4294901760
        %747 = vmatpush1.msra.mxu0 %v746
        %748 = vmatprep.subr.mxu0 0.0
        %v749 = vand.u32 %v317, 4294901760
        %750 = vmatpush1.msra.mxu0 %v749
        %751 = vmatprep.subr.mxu0 0.0
        %v752 = vand.u32 %v318, 4294901760
        %753 = vmatpush1.msra.mxu0 %v752
        %754 = vmatprep.subr.mxu0 0.0
        %755 = vmatpush1.msra.mxu0 0.0
        %756 = vmatprep.subr.mxu0 0.0
        %757 = vmatpush1.msra.mxu0 0.0
        %758 = vmatprep.subr.mxu0 0.0
        %759 = vmatpush1.msra.mxu0 0.0
        %760 = vmatprep.subr.mxu0 0.0
        %761 = vmatpush1.msra.mxu0 0.0
        %762 = vmatprep.subr.mxu0 0.0
        %763 = vmatpush1.msra.mxu0 0.0
        %764 = vmatprep.subr.mxu0 0.0
        %765 = vmatpush1.msra.mxu0 0.0
        %766 = vmatprep.subr.mxu0 0.0
        %767 = vmatpush1.msra.mxu0 0.0
        %768 = vmatprep.subr.mxu0 0.0
        %769 = vmatpush1.msra.mxu0 0.0
        %770 = vmatprep.subr.mxu0 0.0
        %771 = vmatpush1.msra.mxu0 0.0
        %772 = vmatprep.subr.mxu0 0.0
        %773 = vmatpush1.msra.mxu0 0.0
        %774 = vmatprep.subr.mxu0 0.0
        %775 = vmatpush1.msra.mxu0 0.0
        %776 = vmatprep.subr.mxu0 0.0
        %777 = vmatpush1.msra.mxu0 0.0
        %778 = vmatprep.subr.mxu0 0.0
        %779 = vmatpush1.msra.mxu0 0.0
        %780 = vmatprep.subr.mxu0 0.0
        %781 = vmatpush1.msra.mxu0 0.0
        %782 = vmatprep.subr.mxu0 0.0
        %783 = vmatpush1.msra.mxu0 0.0
        %784 = vmatprep.subr.mxu0 0.0
        %785 = vmatpush1.msra.mxu0 0.0
        %786 = vmatprep.subr.mxu0 0.0
        %787 = vmatpush1.msra.mxu0 0.0
        %788 = vmatprep.subr.mxu0 0.0
        %789 = vmatpush1.msra.mxu0 0.0
        %790 = vmatprep.subr.mxu0 0.0
        %791 = vmatpush1.msra.mxu0 0.0
        %792 = vmatprep.subr.mxu0 0.0
        %793 = vmatpush1.msra.mxu0 0.0
        %794 = vmatprep.subr.mxu0 0.0
        %795 = vmatpush1.msra.mxu0 0.0
        %796 = vmatprep.subr.mxu0 0.0
        %797 = vmatpush1.msra.mxu0 0.0
        %798 = vmatprep.subr.mxu0 0.0
        %799 = vmatpush1.msra.mxu0 0.0
        %800 = vmatprep.subr.mxu0 0.0
        %801 = vmatpush1.msra.mxu0 0.0
        %802 = vmatprep.subr.mxu0 0.0
        %803 = vmatpush1.msra.mxu0 0.0
        %804 = vmatprep.subr.mxu0 0.0
        %805 = vmatpush1.msra.mxu0 0.0
        %806 = vmatprep.subr.mxu0 0.0
        %807 = vmatpush1.msra.mxu0 0.0
        %808 = vmatprep.subr.mxu0 0.0
        %809 = vmatpush1.msra.mxu0 0.0
        %810 = vmatprep.mubr.f32.mxu0 0.0
        %v811 = vand.u32 %v330, 4294901760
        %812 = vmatmul.mubr.f32.gmra.mrb[0].mxu0 %v811
        %v813 = vpop.f32.mrb[0].mxu0
        %v814 = vadd.f32 %v739, %v813
        %v815 = vpop.f32.mrb[0].mxu0
        %816 = vdwg.mxu0
        %v817 = vld [vmem:[%s306] sm:$0xff]
        %818 = vset.pattern.permute.xlu0 0
        %819 = vperm.xlu0 %818, %v817
        %v820 = vpop.permute.xlu0 %819
        %vm821 = vcmp.eq.s32.totalorder %v320, %v820
        %v822 = vsel %vm821, 1, 0
        %v823 = vcvt.s32.f32 %v822
        %v825 = vsel %vm328, %v823, 0
        %827 = vmatprep.subr.mxu0 0.0
        %v828 = vand.u32 %v315, 4294901760
        %829 = vmatpush1.msra.mxu0 %v828
        %830 = vmatprep.subr.mxu0 0.0
        %v831 = vand.u32 %v316, 4294901760
        %832 = vmatpush1.msra.mxu0 %v831
        %833 = vmatprep.subr.mxu0 0.0
        %v834 = vand.u32 %v317, 4294901760
        %835 = vmatpush1.msra.mxu0 %v834
        %836 = vmatprep.subr.mxu0 0.0
        %v837 = vand.u32 %v318, 4294901760
        %838 = vmatpush1.msra.mxu0 %v837
        %839 = vmatprep.subr.mxu0 0.0
        %840 = vmatpush1.msra.mxu0 0.0
        %841 = vmatprep.subr.mxu0 0.0
        %842 = vmatpush1.msra.mxu0 0.0
        %843 = vmatprep.subr.mxu0 0.0
        %844 = vmatpush1.msra.mxu0 0.0
        %845 = vmatprep.subr.mxu0 0.0
        %846 = vmatpush1.msra.mxu0 0.0
        %847 = vmatprep.subr.mxu0 0.0
        %848 = vmatpush1.msra.mxu0 0.0
        %849 = vmatprep.subr.mxu0 0.0
        %850 = vmatpush1.msra.mxu0 0.0
        %851 = vmatprep.subr.mxu0 0.0
        %852 = vmatpush1.msra.mxu0 0.0
        %853 = vmatprep.subr.mxu0 0.0
        %854 = vmatpush1.msra.mxu0 0.0
        %855 = vmatprep.subr.mxu0 0.0
        %856 = vmatpush1.msra.mxu0 0.0
        %857 = vmatprep.subr.mxu0 0.0
        %858 = vmatpush1.msra.mxu0 0.0
        %859 = vmatprep.subr.mxu0 0.0
        %860 = vmatpush1.msra.mxu0 0.0
        %861 = vmatprep.subr.mxu0 0.0
        %862 = vmatpush1.msra.mxu0 0.0
        %863 = vmatprep.subr.mxu0 0.0
        %864 = vmatpush1.msra.mxu0 0.0
        %865 = vmatprep.subr.mxu0 0.0
        %866 = vmatpush1.msra.mxu0 0.0
        %867 = vmatprep.subr.mxu0 0.0
        %868 = vmatpush1.msra.mxu0 0.0
        %869 = vmatprep.subr.mxu0 0.0
        %870 = vmatpush1.msra.mxu0 0.0
        %871 = vmatprep.subr.mxu0 0.0
        %872 = vmatpush1.msra.mxu0 0.0
        %873 = vmatprep.subr.mxu0 0.0
        %874 = vmatpush1.msra.mxu0 0.0
        %875 = vmatprep.subr.mxu0 0.0
        %876 = vmatpush1.msra.mxu0 0.0
        %877 = vmatprep.subr.mxu0 0.0
        %878 = vmatpush1.msra.mxu0 0.0
        %879 = vmatprep.subr.mxu0 0.0
        %880 = vmatpush1.msra.mxu0 0.0
        %881 = vmatprep.subr.mxu0 0.0
        %882 = vmatpush1.msra.mxu0 0.0
        %883 = vmatprep.subr.mxu0 0.0
        %884 = vmatpush1.msra.mxu0 0.0
        %885 = vmatprep.subr.mxu0 0.0
        %886 = vmatpush1.msra.mxu0 0.0
        %887 = vmatprep.subr.mxu0 0.0
        %888 = vmatpush1.msra.mxu0 0.0
        %889 = vmatprep.subr.mxu0 0.0
        %890 = vmatpush1.msra.mxu0 0.0
        %891 = vmatprep.subr.mxu0 0.0
        %892 = vmatpush1.msra.mxu0 0.0
        %893 = vmatprep.subr.mxu0 0.0
        %894 = vmatpush1.msra.mxu0 0.0
        %895 = vmatprep.mubr.f32.mxu0 0.0
        %v896 = vand.u32 %v825, 4294901760
        %v897 = vsub.f32 %v825, %v896
        %v898 = vand.u32 %v897, 4294901760
        %v899 = vsub.f32 %v897, %v898
        %v900 = vand.u32 %v899, 4294901760
        %901 = vmatmul.mubr.f32.gmra.mrb[0].mxu0 %v900
        %v902 = vpop.f32.mrb[0].mxu0
        %v903 = vadd.f32 0.0, %v902
        %v904 = vpop.f32.mrb[0].mxu0
        %905 = vdwg.mxu0
        %906 = vmatprep.subr.mxu0 0.0
        %v907 = vand.u32 %v315, 4294901760
        %v908 = vsub.f32 %v315, %v907
        %v909 = vand.u32 %v908, 4294901760
        %v910 = vsub.f32 %v908, %v909
        %v911 = vand.u32 %v910, 4294901760
        %912 = vmatpush1.msra.mxu0 %v911
        %913 = vmatprep.subr.mxu0 0.0
        %v914 = vand.u32 %v316, 4294901760
        %v915 = vsub.f32 %v316, %v914
        %v916 = vand.u32 %v915, 4294901760
        %v917 = vsub.f32 %v915, %v916
        %v918 = vand.u32 %v917, 4294901760
        %919 = vmatpush1.msra.mxu0 %v918
        %920 = vmatprep.subr.mxu0 0.0
        %v921 = vand.u32 %v317, 4294901760
        %v922 = vsub.f32 %v317, %v921
        %v923 = vand.u32 %v922, 4294901760
        %v924 = vsub.f32 %v922, %v923
        %v925 = vand.u32 %v924, 4294901760
        %926 = vmatpush1.msra.mxu0 %v925
        %927 = vmatprep.subr.mxu0 0.0
        %v928 = vand.u32 %v318, 4294901760
        %v929 = vsub.f32 %v318, %v928
        %v930 = vand.u32 %v929, 4294901760
        %v931 = vsub.f32 %v929, %v930
        %v932 = vand.u32 %v931, 4294901760
        %933 = vmatpush1.msra.mxu0 %v932
        %934 = vmatprep.subr.mxu0 0.0
        %935 = vmatpush1.msra.mxu0 0.0
        %936 = vmatprep.subr.mxu0 0.0
        %937 = vmatpush1.msra.mxu0 0.0
        %938 = vmatprep.subr.mxu0 0.0
        %939 = vmatpush1.msra.mxu0 0.0
        %940 = vmatprep.subr.mxu0 0.0
        %941 = vmatpush1.msra.mxu0 0.0
        %942 = vmatprep.subr.mxu0 0.0
        %943 = vmatpush1.msra.mxu0 0.0
        %944 = vmatprep.subr.mxu0 0.0
        %945 = vmatpush1.msra.mxu0 0.0
        %946 = vmatprep.subr.mxu0 0.0
        %947 = vmatpush1.msra.mxu0 0.0
        %948 = vmatprep.subr.mxu0 0.0
        %949 = vmatpush1.msra.mxu0 0.0
        %950 = vmatprep.subr.mxu0 0.0
        %951 = vmatpush1.msra.mxu0 0.0
        %952 = vmatprep.subr.mxu0 0.0
        %953 = vmatpush1.msra.mxu0 0.0
        %954 = vmatprep.subr.mxu0 0.0
        %955 = vmatpush1.msra.mxu0 0.0
        %956 = vmatprep.subr.mxu0 0.0
        %957 = vmatpush1.msra.mxu0 0.0
        %958 = vmatprep.subr.mxu0 0.0
        %959 = vmatpush1.msra.mxu0 0.0
        %960 = vmatprep.subr.mxu0 0.0
        %961 = vmatpush1.msra.mxu0 0.0
        %962 = vmatprep.subr.mxu0 0.0
        %963 = vmatpush1.msra.mxu0 0.0
        %964 = vmatprep.subr.mxu0 0.0
        %965 = vmatpush1.msra.mxu0 0.0
        %966 = vmatprep.subr.mxu0 0.0
        %967 = vmatpush1.msra.mxu0 0.0
        %968 = vmatprep.subr.mxu0 0.0
        %969 = vmatpush1.msra.mxu0 0.0
        %970 = vmatprep.subr.mxu0 0.0
        %971 = vmatpush1.msra.mxu0 0.0
        %972 = vmatprep.subr.mxu0 0.0
        %973 = vmatpush1.msra.mxu0 0.0
        %974 = vmatprep.subr.mxu0 0.0
        %975 = vmatpush1.msra.mxu0 0.0
        %976 = vmatprep.subr.mxu0 0.0
        %977 = vmatpush1.msra.mxu0 0.0
        %978 = vmatprep.subr.mxu0 0.0
        %979 = vmatpush1.msra.mxu0 0.0
        %980 = vmatprep.subr.mxu0 0.0
        %981 = vmatpush1.msra.mxu0 0.0
        %982 = vmatprep.subr.mxu0 0.0
        %983 = vmatpush1.msra.mxu0 0.0
        %984 = vmatprep.subr.mxu0 0.0
        %985 = vmatpush1.msra.mxu0 0.0
        %986 = vmatprep.subr.mxu0 0.0
        %987 = vmatpush1.msra.mxu0 0.0
        %988 = vmatprep.subr.mxu0 0.0
        %989 = vmatpush1.msra.mxu0 0.0
        %990 = vmatprep.mubr.f32.mxu0 0.0
        %v991 = vand.u32 %v825, 4294901760
        %992 = vmatmul.mubr.f32.gmra.mrb[0].mxu0 %v991
        %v993 = vpop.f32.mrb[0].mxu0
        %v994 = vadd.f32 %v903, %v993
        %v995 = vpop.f32.mrb[0].mxu0
        %996 = vdwg.mxu0
        %997 = vmatprep.subr.mxu0 0.0
        %v998 = vand.u32 %v315, 4294901760
        %v999 = vsub.f32 %v315, %v998
        %1000 = vmatpush1.msra.mxu0 %v999
        %1001 = vmatprep.subr.mxu0 0.0
        %v1002 = vand.u32 %v316, 4294901760
        %v1003 = vsub.f32 %v316, %v1002
        %1004 = vmatpush1.msra.mxu0 %v1003
        %1005 = vmatprep.subr.mxu0 0.0
        %v1006 = vand.u32 %v317, 4294901760
        %v1007 = vsub.f32 %v317, %v1006
        %1008 = vmatpush1.msra.mxu0 %v1007
        %1009 = vmatprep.subr.mxu0 0.0
        %v1010 = vand.u32 %v318, 4294901760
        %v1011 = vsub.f32 %v318, %v1010
        %1012 = vmatpush1.msra.mxu0 %v1011
        %1013 = vmatprep.subr.mxu0 0.0
        %1014 = vmatpush1.msra.mxu0 0.0
        %1015 = vmatprep.subr.mxu0 0.0
        %1016 = vmatpush1.msra.mxu0 0.0
        %1017 = vmatprep.subr.mxu0 0.0
        %1018 = vmatpush1.msra.mxu0 0.0
        %1019 = vmatprep.subr.mxu0 0.0
        %1020 = vmatpush1.msra.mxu0 0.0
        %1021 = vmatprep.subr.mxu0 0.0
        %1022 = vmatpush1.msra.mxu0 0.0
        %1023 = vmatprep.subr.mxu0 0.0
        %1024 = vmatpush1.msra.mxu0 0.0
        %1025 = vmatprep.subr.mxu0 0.0
        %1026 = vmatpush1.msra.mxu0 0.0
        %1027 = vmatprep.subr.mxu0 0.0
        %1028 = vmatpush1.msra.mxu0 0.0
        %1029 = vmatprep.subr.mxu0 0.0
        %1030 = vmatpush1.msra.mxu0 0.0
        %1031 = vmatprep.subr.mxu0 0.0
        %1032 = vmatpush1.msra.mxu0 0.0
        %1033 = vmatprep.subr.mxu0 0.0
        %1034 = vmatpush1.msra.mxu0 0.0
        %1035 = vmatprep.subr.mxu0 0.0
        %1036 = vmatpush1.msra.mxu0 0.0
        %1037 = vmatprep.subr.mxu0 0.0
        %1038 = vmatpush1.msra.mxu0 0.0
        %1039 = vmatprep.subr.mxu0 0.0
        %1040 = vmatpush1.msra.mxu0 0.0
        %1041 = vmatprep.subr.mxu0 0.0
        %1042 = vmatpush1.msra.mxu0 0.0
        %1043 = vmatprep.subr.mxu0 0.0
        %1044 = vmatpush1.msra.mxu0 0.0
        %1045 = vmatprep.subr.mxu0 0.0
        %1046 = vmatpush1.msra.mxu0 0.0
        %1047 = vmatprep.subr.mxu0 0.0
        %1048 = vmatpush1.msra.mxu0 0.0
        %1049 = vmatprep.subr.mxu0 0.0
        %1050 = vmatpush1.msra.mxu0 0.0
        %1051 = vmatprep.subr.mxu0 0.0
        %1052 = vmatpush1.msra.mxu0 0.0
        %1053 = vmatprep.subr.mxu0 0.0
        %1054 = vmatpush1.msra.mxu0 0.0
        %1055 = vmatprep.subr.mxu0 0.0
        %1056 = vmatpush1.msra.mxu0 0.0
        %1057 = vmatprep.subr.mxu0 0.0
        %1058 = vmatpush1.msra.mxu0 0.0
        %1059 = vmatprep.subr.mxu0 0.0
        %1060 = vmatpush1.msra.mxu0 0.0
        %1061 = vmatprep.subr.mxu0 0.0
        %1062 = vmatpush1.msra.mxu0 0.0
        %1063 = vmatprep.subr.mxu0 0.0
        %1064 = vmatpush1.msra.mxu0 0.0
        %1065 = vmatprep.subr.mxu0 0.0
        %1066 = vmatpush1.msra.mxu0 0.0
        %1067 = vmatprep.subr.mxu0 0.0
        %1068 = vmatpush1.msra.mxu0 0.0
        %1069 = vmatprep.mubr.f32.mxu0 0.0
        %v1070 = vand.u32 %v825, 4294901760
        %v1071 = vsub.f32 %v825, %v1070
        %1072 = vmatmul.mubr.f32.gmra.mrb[0].mxu0 %v1071
        %v1073 = vpop.f32.mrb[0].mxu0
        %v1074 = vadd.f32 %v994, %v1073
        %v1075 = vpop.f32.mrb[0].mxu0
        %1076 = vdwg.mxu0
        %1077 = vmatprep.subr.mxu0 0.0
        %v1078 = vand.u32 %v315, 4294901760
        %1079 = vmatpush1.msra.mxu0 %v1078
        %1080 = vmatprep.subr.mxu0 0.0
        %v1081 = vand.u32 %v316, 4294901760
        %1082 = vmatpush1.msra.mxu0 %v1081
        %1083 = vmatprep.subr.mxu0 0.0
        %v1084 = vand.u32 %v317, 4294901760
        %1085 = vmatpush1.msra.mxu0 %v1084
        %1086 = vmatprep.subr.mxu0 0.0
        %v1087 = vand.u32 %v318, 4294901760
        %1088 = vmatpush1.msra.mxu0 %v1087
        %1089 = vmatprep.subr.mxu0 0.0
        %1090 = vmatpush1.msra.mxu0 0.0
        %1091 = vmatprep.subr.mxu0 0.0
        %1092 = vmatpush1.msra.mxu0 0.0
        %1093 = vmatprep.subr.mxu0 0.0
        %1094 = vmatpush1.msra.mxu0 0.0
        %1095 = vmatprep.subr.mxu0 0.0
        %1096 = vmatpush1.msra.mxu0 0.0
        %1097 = vmatprep.subr.mxu0 0.0
        %1098 = vmatpush1.msra.mxu0 0.0
        %1099 = vmatprep.subr.mxu0 0.0
        %1100 = vmatpush1.msra.mxu0 0.0
        %1101 = vmatprep.subr.mxu0 0.0
        %1102 = vmatpush1.msra.mxu0 0.0
        %1103 = vmatprep.subr.mxu0 0.0
        %1104 = vmatpush1.msra.mxu0 0.0
        %1105 = vmatprep.subr.mxu0 0.0
        %1106 = vmatpush1.msra.mxu0 0.0
        %1107 = vmatprep.subr.mxu0 0.0
        %1108 = vmatpush1.msra.mxu0 0.0
        %1109 = vmatprep.subr.mxu0 0.0
        %1110 = vmatpush1.msra.mxu0 0.0
        %1111 = vmatprep.subr.mxu0 0.0
        %1112 = vmatpush1.msra.mxu0 0.0
        %1113 = vmatprep.subr.mxu0 0.0
        %1114 = vmatpush1.msra.mxu0 0.0
        %1115 = vmatprep.subr.mxu0 0.0
        %1116 = vmatpush1.msra.mxu0 0.0
        %1117 = vmatprep.subr.mxu0 0.0
        %1118 = vmatpush1.msra.mxu0 0.0
        %1119 = vmatprep.subr.mxu0 0.0
        %1120 = vmatpush1.msra.mxu0 0.0
        %1121 = vmatprep.subr.mxu0 0.0
        %1122 = vmatpush1.msra.mxu0 0.0
        %1123 = vmatprep.subr.mxu0 0.0
        %1124 = vmatpush1.msra.mxu0 0.0
        %1125 = vmatprep.subr.mxu0 0.0
        %1126 = vmatpush1.msra.mxu0 0.0
        %1127 = vmatprep.subr.mxu0 0.0
        %1128 = vmatpush1.msra.mxu0 0.0
        %1129 = vmatprep.subr.mxu0 0.0
        %1130 = vmatpush1.msra.mxu0 0.0
        %1131 = vmatprep.subr.mxu0 0.0
        %1132 = vmatpush1.msra.mxu0 0.0
        %1133 = vmatprep.subr.mxu0 0.0
        %1134 = vmatpush1.msra.mxu0 0.0
        %1135 = vmatprep.subr.mxu0 0.0
        %1136 = vmatpush1.msra.mxu0 0.0
        %1137 = vmatprep.subr.mxu0 0.0
        %1138 = vmatpush1.msra.mxu0 0.0
        %1139 = vmatprep.subr.mxu0 0.0
        %1140 = vmatpush1.msra.mxu0 0.0
        %1141 = vmatprep.subr.mxu0 0.0
        %1142 = vmatpush1.msra.mxu0 0.0
        %1143 = vmatprep.subr.mxu0 0.0
        %1144 = vmatpush1.msra.mxu0 0.0
        %1145 = vmatprep.mubr.f32.mxu0 0.0
        %v1146 = vand.u32 %v825, 4294901760
        %v1147 = vsub.f32 %v825, %v1146
        %v1148 = vand.u32 %v1147, 4294901760
        %1149 = vmatmul.mubr.f32.gmra.mrb[0].mxu0 %v1148
        %v1150 = vpop.f32.mrb[0].mxu0
        %v1151 = vadd.f32 %v1074, %v1150
        %v1152 = vpop.f32.mrb[0].mxu0
        %1153 = vdwg.mxu0
        %1154 = vmatprep.subr.mxu0 0.0
        %v1155 = vand.u32 %v315, 4294901760
        %v1156 = vsub.f32 %v315, %v1155
        %v1157 = vand.u32 %v1156, 4294901760
        %1158 = vmatpush1.msra.mxu0 %v1157
        %1159 = vmatprep.subr.mxu0 0.0
        %v1160 = vand.u32 %v316, 4294901760
        %v1161 = vsub.f32 %v316, %v1160
        %v1162 = vand.u32 %v1161, 4294901760
        %1163 = vmatpush1.msra.mxu0 %v1162
        %1164 = vmatprep.subr.mxu0 0.0
        %v1165 = vand.u32 %v317, 4294901760
        %v1166 = vsub.f32 %v317, %v1165
        %v1167 = vand.u32 %v1166, 4294901760
        %1168 = vmatpush1.msra.mxu0 %v1167
        %1169 = vmatprep.subr.mxu0 0.0
        %v1170 = vand.u32 %v318, 4294901760
        %v1171 = vsub.f32 %v318, %v1170
        %v1172 = vand.u32 %v1171, 4294901760
        %1173 = vmatpush1.msra.mxu0 %v1172
        %1174 = vmatprep.subr.mxu0 0.0
        %1175 = vmatpush1.msra.mxu0 0.0
        %1176 = vmatprep.subr.mxu0 0.0
        %1177 = vmatpush1.msra.mxu0 0.0
        %1178 = vmatprep.subr.mxu0 0.0
        %1179 = vmatpush1.msra.mxu0 0.0
        %1180 = vmatprep.subr.mxu0 0.0
        %1181 = vmatpush1.msra.mxu0 0.0
        %1182 = vmatprep.subr.mxu0 0.0
        %1183 = vmatpush1.msra.mxu0 0.0
        %1184 = vmatprep.subr.mxu0 0.0
        %1185 = vmatpush1.msra.mxu0 0.0
        %1186 = vmatprep.subr.mxu0 0.0
        %1187 = vmatpush1.msra.mxu0 0.0
        %1188 = vmatprep.subr.mxu0 0.0
        %1189 = vmatpush1.msra.mxu0 0.0
        %1190 = vmatprep.subr.mxu0 0.0
        %1191 = vmatpush1.msra.mxu0 0.0
        %1192 = vmatprep.subr.mxu0 0.0
        %1193 = vmatpush1.msra.mxu0 0.0
        %1194 = vmatprep.subr.mxu0 0.0
        %1195 = vmatpush1.msra.mxu0 0.0
        %1196 = vmatprep.subr.mxu0 0.0
        %1197 = vmatpush1.msra.mxu0 0.0
        %1198 = vmatprep.subr.mxu0 0.0
        %1199 = vmatpush1.msra.mxu0 0.0
        %1200 = vmatprep.subr.mxu0 0.0
        %1201 = vmatpush1.msra.mxu0 0.0
        %1202 = vmatprep.subr.mxu0 0.0
        %1203 = vmatpush1.msra.mxu0 0.0
        %1204 = vmatprep.subr.mxu0 0.0
        %1205 = vmatpush1.msra.mxu0 0.0
        %1206 = vmatprep.subr.mxu0 0.0
        %1207 = vmatpush1.msra.mxu0 0.0
        %1208 = vmatprep.subr.mxu0 0.0
        %1209 = vmatpush1.msra.mxu0 0.0
        %1210 = vmatprep.subr.mxu0 0.0
        %1211 = vmatpush1.msra.mxu0 0.0
        %1212 = vmatprep.subr.mxu0 0.0
        %1213 = vmatpush1.msra.mxu0 0.0
        %1214 = vmatprep.subr.mxu0 0.0
        %1215 = vmatpush1.msra.mxu0 0.0
        %1216 = vmatprep.subr.mxu0 0.0
        %1217 = vmatpush1.msra.mxu0 0.0
        %1218 = vmatprep.subr.mxu0 0.0
        %1219 = vmatpush1.msra.mxu0 0.0
        %1220 = vmatprep.subr.mxu0 0.0
        %1221 = vmatpush1.msra.mxu0 0.0
        %1222 = vmatprep.subr.mxu0 0.0
        %1223 = vmatpush1.msra.mxu0 0.0
        %1224 = vmatprep.subr.mxu0 0.0
        %1225 = vmatpush1.msra.mxu0 0.0
        %1226 = vmatprep.subr.mxu0 0.0
        %1227 = vmatpush1.msra.mxu0 0.0
        %1228 = vmatprep.subr.mxu0 0.0
        %1229 = vmatpush1.msra.mxu0 0.0
        %1230 = vmatprep.mubr.f32.mxu0 0.0
        %v1231 = vand.u32 %v825, 4294901760
        %1232 = vmatmul.mubr.f32.gmra.mrb[0].mxu0 %v1231
        %v1233 = vpop.f32.mrb[0].mxu0
        %v1234 = vadd.f32 %v1151, %v1233
        %v1235 = vpop.f32.mrb[0].mxu0
        %1236 = vdwg.mxu0
        %1237 = vmatprep.subr.mxu0 0.0
        %v1238 = vand.u32 %v315, 4294901760
        %1239 = vmatpush1.msra.mxu0 %v1238
        %1240 = vmatprep.subr.mxu0 0.0
        %v1241 = vand.u32 %v316, 4294901760
        %1242 = vmatpush1.msra.mxu0 %v1241
        %1243 = vmatprep.subr.mxu0 0.0
        %v1244 = vand.u32 %v317, 4294901760
        %1245 = vmatpush1.msra.mxu0 %v1244
        %1246 = vmatprep.subr.mxu0 0.0
        %v1247 = vand.u32 %v318, 4294901760
        %1248 = vmatpush1.msra.mxu0 %v1247
        %1249 = vmatprep.subr.mxu0 0.0
        %1250 = vmatpush1.msra.mxu0 0.0
        %1251 = vmatprep.subr.mxu0 0.0
        %1252 = vmatpush1.msra.mxu0 0.0
        %1253 = vmatprep.subr.mxu0 0.0
        %1254 = vmatpush1.msra.mxu0 0.0
        %1255 = vmatprep.subr.mxu0 0.0
        %1256 = vmatpush1.msra.mxu0 0.0
        %1257 = vmatprep.subr.mxu0 0.0
        %1258 = vmatpush1.msra.mxu0 0.0
        %1259 = vmatprep.subr.mxu0 0.0
        %1260 = vmatpush1.msra.mxu0 0.0
        %1261 = vmatprep.subr.mxu0 0.0
        %1262 = vmatpush1.msra.mxu0 0.0
        %1263 = vmatprep.subr.mxu0 0.0
        %1264 = vmatpush1.msra.mxu0 0.0
        %1265 = vmatprep.subr.mxu0 0.0
        %1266 = vmatpush1.msra.mxu0 0.0
        %1267 = vmatprep.subr.mxu0 0.0
        %1268 = vmatpush1.msra.mxu0 0.0
        %1269 = vmatprep.subr.mxu0 0.0
        %1270 = vmatpush1.msra.mxu0 0.0
        %1271 = vmatprep.subr.mxu0 0.0
        %1272 = vmatpush1.msra.mxu0 0.0
        %1273 = vmatprep.subr.mxu0 0.0
        %1274 = vmatpush1.msra.mxu0 0.0
        %1275 = vmatprep.subr.mxu0 0.0
        %1276 = vmatpush1.msra.mxu0 0.0
        %1277 = vmatprep.subr.mxu0 0.0
        %1278 = vmatpush1.msra.mxu0 0.0
        %1279 = vmatprep.subr.mxu0 0.0
        %1280 = vmatpush1.msra.mxu0 0.0
        %1281 = vmatprep.subr.mxu0 0.0
        %1282 = vmatpush1.msra.mxu0 0.0
        %1283 = vmatprep.subr.mxu0 0.0
        %1284 = vmatpush1.msra.mxu0 0.0
        %1285 = vmatprep.subr.mxu0 0.0
        %1286 = vmatpush1.msra.mxu0 0.0
        %1287 = vmatprep.subr.mxu0 0.0
        %1288 = vmatpush1.msra.mxu0 0.0
        %1289 = vmatprep.subr.mxu0 0.0
        %1290 = vmatpush1.msra.mxu0 0.0
        %1291 = vmatprep.subr.mxu0 0.0
        %1292 = vmatpush1.msra.mxu0 0.0
        %1293 = vmatprep.subr.mxu0 0.0
        %1294 = vmatpush1.msra.mxu0 0.0
        %1295 = vmatprep.subr.mxu0 0.0
        %1296 = vmatpush1.msra.mxu0 0.0
        %1297 = vmatprep.subr.mxu0 0.0
        %1298 = vmatpush1.msra.mxu0 0.0
        %1299 = vmatprep.subr.mxu0 0.0
        %1300 = vmatpush1.msra.mxu0 0.0
        %1301 = vmatprep.subr.mxu0 0.0
        %1302 = vmatpush1.msra.mxu0 0.0
        %1303 = vmatprep.subr.mxu0 0.0
        %1304 = vmatpush1.msra.mxu0 0.0
        %1305 = vmatprep.mubr.f32.mxu0 0.0
        %v1306 = vand.u32 %v825, 4294901760
        %1307 = vmatmul.mubr.f32.gmra.mrb[0].mxu0 %v1306
        %v1308 = vpop.f32.mrb[0].mxu0
        %v1309 = vadd.f32 %v1234, %v1308
        %v1310 = vpop.f32.mrb[0].mxu0
        %1311 = vdwg.mxu0
        %v1312 = vld [vmem:[%s310] sm:$0xff]
        %1313 = vset.pattern.permute.xlu0 0
        %1314 = vperm.xlu0 %1313, %v1312
        %v1315 = vpop.permute.xlu0 %1314
        %vm1316 = vcmp.eq.s32.totalorder %v320, %v1315
        %v1317 = vsel %vm1316, 1, 0
        %v1318 = vcvt.s32.f32 %v1317
        %v1320 = vsel %vm328, %v1318, 0
        %1322 = vmatprep.subr.mxu0 0.0
        %v1323 = vand.u32 %v315, 4294901760
        %1324 = vmatpush1.msra.mxu0 %v1323
        %1325 = vmatprep.subr.mxu0 0.0
        %v1326 = vand.u32 %v316, 4294901760
        %1327 = vmatpush1.msra.mxu0 %v1326
        %1328 = vmatprep.subr.mxu0 0.0
        %v1329 = vand.u32 %v317, 4294901760
        %1330 = vmatpush1.msra.mxu0 %v1329
        %1331 = vmatprep.subr.mxu0 0.0
        %v1332 = vand.u32 %v318, 4294901760
        %1333 = vmatpush1.msra.mxu0 %v1332
        %1334 = vmatprep.subr.mxu0 0.0
        %1335 = vmatpush1.msra.mxu0 0.0
        %1336 = vmatprep.subr.mxu0 0.0
        %1337 = vmatpush1.msra.mxu0 0.0
        %1338 = vmatprep.subr.mxu0 0.0
        %1339 = vmatpush1.msra.mxu0 0.0
        %1340 = vmatprep.subr.mxu0 0.0
        %1341 = vmatpush1.msra.mxu0 0.0
        %1342 = vmatprep.subr.mxu0 0.0
        %1343 = vmatpush1.msra.mxu0 0.0
        %1344 = vmatprep.subr.mxu0 0.0
        %1345 = vmatpush1.msra.mxu0 0.0
        %1346 = vmatprep.subr.mxu0 0.0
        %1347 = vmatpush1.msra.mxu0 0.0
        %1348 = vmatprep.subr.mxu0 0.0
        %1349 = vmatpush1.msra.mxu0 0.0
        %1350 = vmatprep.subr.mxu0 0.0
        %1351 = vmatpush1.msra.mxu0 0.0
        %1352 = vmatprep.subr.mxu0 0.0
        %1353 = vmatpush1.msra.mxu0 0.0
        %1354 = vmatprep.subr.mxu0 0.0
        %1355 = vmatpush1.msra.mxu0 0.0
        %1356 = vmatprep.subr.mxu0 0.0
        %1357 = vmatpush1.msra.mxu0 0.0
        %1358 = vmatprep.subr.mxu0 0.0
        %1359 = vmatpush1.msra.mxu0 0.0
        %1360 = vmatprep.subr.mxu0 0.0
        %1361 = vmatpush1.msra.mxu0 0.0
        %1362 = vmatprep.subr.mxu0 0.0
        %1363 = vmatpush1.msra.mxu0 0.0
        %1364 = vmatprep.subr.mxu0 0.0
        %1365 = vmatpush1.msra.mxu0 0.0
        %1366 = vmatprep.subr.mxu0 0.0
        %1367 = vmatpush1.msra.mxu0 0.0
        %1368 = vmatprep.subr.mxu0 0.0
        %1369 = vmatpush1.msra.mxu0 0.0
        %1370 = vmatprep.subr.mxu0 0.0
        %1371 = vmatpush1.msra.mxu0 0.0
        %1372 = vmatprep.subr.mxu0 0.0
        %1373 = vmatpush1.msra.mxu0 0.0
        %1374 = vmatprep.subr.mxu0 0.0
        %1375 = vmatpush1.msra.mxu0 0.0
        %1376 = vmatprep.subr.mxu0 0.0
        %1377 = vmatpush1.msra.mxu0 0.0
        %1378 = vmatprep.subr.mxu0 0.0
        %1379 = vmatpush1.msra.mxu0 0.0
        %1380 = vmatprep.subr.mxu0 0.0
        %1381 = vmatpush1.msra.mxu0 0.0
        %1382 = vmatprep.subr.mxu0 0.0
        %1383 = vmatpush1.msra.mxu0 0.0
        %1384 = vmatprep.subr.mxu0 0.0
        %1385 = vmatpush1.msra.mxu0 0.0
        %1386 = vmatprep.subr.mxu0 0.0
        %1387 = vmatpush1.msra.mxu0 0.0
        %1388 = vmatprep.subr.mxu0 0.0
        %1389 = vmatpush1.msra.mxu0 0.0
        %1390 = vmatprep.mubr.f32.mxu0 0.0
        %v1391 = vand.u32 %v1320, 4294901760
        %v1392 = vsub.f32 %v1320, %v1391
        %v1393 = vand.u32 %v1392, 4294901760
        %v1394 = vsub.f32 %v1392, %v1393
        %v1395 = vand.u32 %v1394, 4294901760
        %1396 = vmatmul.mubr.f32.gmra.mrb[0].mxu0 %v1395
        %v1397 = vpop.f32.mrb[0].mxu0
        %v1398 = vadd.f32 0.0, %v1397
        %v1399 = vpop.f32.mrb[0].mxu0
        %1400 = vdwg.mxu0
        %1401 = vmatprep.subr.mxu0 0.0
        %v1402 = vand.u32 %v315, 4294901760
        %v1403 = vsub.f32 %v315, %v1402
        %v1404 = vand.u32 %v1403, 4294901760
        %v1405 = vsub.f32 %v1403, %v1404
        %v1406 = vand.u32 %v1405, 4294901760
        %1407 = vmatpush1.msra.mxu0 %v1406
        %1408 = vmatprep.subr.mxu0 0.0
        %v1409 = vand.u32 %v316, 4294901760
        %v1410 = vsub.f32 %v316, %v1409
        %v1411 = vand.u32 %v1410, 4294901760
        %v1412 = vsub.f32 %v1410, %v1411
        %v1413 = vand.u32 %v1412, 4294901760
        %1414 = vmatpush1.msra.mxu0 %v1413
        %1415 = vmatprep.subr.mxu0 0.0
        %v1416 = vand.u32 %v317, 4294901760
        %v1417 = vsub.f32 %v317, %v1416
        %v1418 = vand.u32 %v1417, 4294901760
        %v1419 = vsub.f32 %v1417, %v1418
        %v1420 = vand.u32 %v1419, 4294901760
        %1421 = vmatpush1.msra.mxu0 %v1420
        %1422 = vmatprep.subr.mxu0 0.0
        %v1423 = vand.u32 %v318, 4294901760
        %v1424 = vsub.f32 %v318, %v1423
        %v1425 = vand.u32 %v1424, 4294901760
        %v1426 = vsub.f32 %v1424, %v1425
        %v1427 = vand.u32 %v1426, 4294901760
        %1428 = vmatpush1.msra.mxu0 %v1427
        %1429 = vmatprep.subr.mxu0 0.0
        %1430 = vmatpush1.msra.mxu0 0.0
        %1431 = vmatprep.subr.mxu0 0.0
        %1432 = vmatpush1.msra.mxu0 0.0
        %1433 = vmatprep.subr.mxu0 0.0
        %1434 = vmatpush1.msra.mxu0 0.0
        %1435 = vmatprep.subr.mxu0 0.0
        %1436 = vmatpush1.msra.mxu0 0.0
        %1437 = vmatprep.subr.mxu0 0.0
        %1438 = vmatpush1.msra.mxu0 0.0
        %1439 = vmatprep.subr.mxu0 0.0
        %1440 = vmatpush1.msra.mxu0 0.0
        %1441 = vmatprep.subr.mxu0 0.0
        %1442 = vmatpush1.msra.mxu0 0.0
        %1443 = vmatprep.subr.mxu0 0.0
        %1444 = vmatpush1.msra.mxu0 0.0
        %1445 = vmatprep.subr.mxu0 0.0
        %1446 = vmatpush1.msra.mxu0 0.0
        %1447 = vmatprep.subr.mxu0 0.0
        %1448 = vmatpush1.msra.mxu0 0.0
        %1449 = vmatprep.subr.mxu0 0.0
        %1450 = vmatpush1.msra.mxu0 0.0
        %1451 = vmatprep.subr.mxu0 0.0
        %1452 = vmatpush1.msra.mxu0 0.0
        %1453 = vmatprep.subr.mxu0 0.0
        %1454 = vmatpush1.msra.mxu0 0.0
        %1455 = vmatprep.subr.mxu0 0.0
        %1456 = vmatpush1.msra.mxu0 0.0
        %1457 = vmatprep.subr.mxu0 0.0
        %1458 = vmatpush1.msra.mxu0 0.0
        %1459 = vmatprep.subr.mxu0 0.0
        %1460 = vmatpush1.msra.mxu0 0.0
        %1461 = vmatprep.subr.mxu0 0.0
        %1462 = vmatpush1.msra.mxu0 0.0
        %1463 = vmatprep.subr.mxu0 0.0
        %1464 = vmatpush1.msra.mxu0 0.0
        %1465 = vmatprep.subr.mxu0 0.0
        %1466 = vmatpush1.msra.mxu0 0.0
        %1467 = vmatprep.subr.mxu0 0.0
        %1468 = vmatpush1.msra.mxu0 0.0
        %1469 = vmatprep.subr.mxu0 0.0
        %1470 = vmatpush1.msra.mxu0 0.0
        %1471 = vmatprep.subr.mxu0 0.0
        %1472 = vmatpush1.msra.mxu0 0.0
        %1473 = vmatprep.subr.mxu0 0.0
        %1474 = vmatpush1.msra.mxu0 0.0
        %1475 = vmatprep.subr.mxu0 0.0
        %1476 = vmatpush1.msra.mxu0 0.0
        %1477 = vmatprep.subr.mxu0 0.0
        %1478 = vmatpush1.msra.mxu0 0.0
        %1479 = vmatprep.subr.mxu0 0.0
        %1480 = vmatpush1.msra.mxu0 0.0
        %1481 = vmatprep.subr.mxu0 0.0
        %1482 = vmatpush1.msra.mxu0 0.0
        %1483 = vmatprep.subr.mxu0 0.0
        %1484 = vmatpush1.msra.mxu0 0.0
        %1485 = vmatprep.mubr.f32.mxu0 0.0
        %v1486 = vand.u32 %v1320, 4294901760
        %1487 = vmatmul.mubr.f32.gmra.mrb[0].mxu0 %v1486
        %v1488 = vpop.f32.mrb[0].mxu0
        %v1489 = vadd.f32 %v1398, %v1488
        %v1490 = vpop.f32.mrb[0].mxu0
        %1491 = vdwg.mxu0
        %1492 = vmatprep.subr.mxu0 0.0
        %v1493 = vand.u32 %v315, 4294901760
        %v1494 = vsub.f32 %v315, %v1493
        %1495 = vmatpush1.msra.mxu0 %v1494
        %1496 = vmatprep.subr.mxu0 0.0
        %v1497 = vand.u32 %v316, 4294901760
        %v1498 = vsub.f32 %v316, %v1497
        %1499 = vmatpush1.msra.mxu0 %v1498
        %1500 = vmatprep.subr.mxu0 0.0
        %v1501 = vand.u32 %v317, 4294901760
        %v1502 = vsub.f32 %v317, %v1501
        %1503 = vmatpush1.msra.mxu0 %v1502
        %1504 = vmatprep.subr.mxu0 0.0
        %v1505 = vand.u32 %v318, 4294901760
        %v1506 = vsub.f32 %v318, %v1505
        %1507 = vmatpush1.msra.mxu0 %v1506
        %1508 = vmatprep.subr.mxu0 0.0
        %1509 = vmatpush1.msra.mxu0 0.0
        %1510 = vmatprep.subr.mxu0 0.0
        %1511 = vmatpush1.msra.mxu0 0.0
        %1512 = vmatprep.subr.mxu0 0.0
        %1513 = vmatpush1.msra.mxu0 0.0
        %1514 = vmatprep.subr.mxu0 0.0
        %1515 = vmatpush1.msra.mxu0 0.0
        %1516 = vmatprep.subr.mxu0 0.0
        %1517 = vmatpush1.msra.mxu0 0.0
        %1518 = vmatprep.subr.mxu0 0.0
        %1519 = vmatpush1.msra.mxu0 0.0
        %1520 = vmatprep.subr.mxu0 0.0
        %1521 = vmatpush1.msra.mxu0 0.0
        %1522 = vmatprep.subr.mxu0 0.0
        %1523 = vmatpush1.msra.mxu0 0.0
        %1524 = vmatprep.subr.mxu0 0.0
        %1525 = vmatpush1.msra.mxu0 0.0
        %1526 = vmatprep.subr.mxu0 0.0
        %1527 = vmatpush1.msra.mxu0 0.0
        %1528 = vmatprep.subr.mxu0 0.0
        %1529 = vmatpush1.msra.mxu0 0.0
        %1530 = vmatprep.subr.mxu0 0.0
        %1531 = vmatpush1.msra.mxu0 0.0
        %1532 = vmatprep.subr.mxu0 0.0
        %1533 = vmatpush1.msra.mxu0 0.0
        %1534 = vmatprep.subr.mxu0 0.0
        %1535 = vmatpush1.msra.mxu0 0.0
        %1536 = vmatprep.subr.mxu0 0.0
        %1537 = vmatpush1.msra.mxu0 0.0
        %1538 = vmatprep.subr.mxu0 0.0
        %1539 = vmatpush1.msra.mxu0 0.0
        %1540 = vmatprep.subr.mxu0 0.0
        %1541 = vmatpush1.msra.mxu0 0.0
        %1542 = vmatprep.subr.mxu0 0.0
        %1543 = vmatpush1.msra.mxu0 0.0
        %1544 = vmatprep.subr.mxu0 0.0
        %1545 = vmatpush1.msra.mxu0 0.0
        %1546 = vmatprep.subr.mxu0 0.0
        %1547 = vmatpush1.msra.mxu0 0.0
        %1548 = vmatprep.subr.mxu0 0.0
        %1549 = vmatpush1.msra.mxu0 0.0
        %1550 = vmatprep.subr.mxu0 0.0
        %1551 = vmatpush1.msra.mxu0 0.0
        %1552 = vmatprep.subr.mxu0 0.0
        %1553 = vmatpush1.msra.mxu0 0.0
        %1554 = vmatprep.subr.mxu0 0.0
        %1555 = vmatpush1.msra.mxu0 0.0
        %1556 = vmatprep.subr.mxu0 0.0
        %1557 = vmatpush1.msra.mxu0 0.0
        %1558 = vmatprep.subr.mxu0 0.0
        %1559 = vmatpush1.msra.mxu0 0.0
        %1560 = vmatprep.subr.mxu0 0.0
        %1561 = vmatpush1.msra.mxu0 0.0
        %1562 = vmatprep.subr.mxu0 0.0
        %1563 = vmatpush1.msra.mxu0 0.0
        %1564 = vmatprep.mubr.f32.mxu0 0.0
        %v1565 = vand.u32 %v1320, 4294901760
        %v1566 = vsub.f32 %v1320, %v1565
        %1567 = vmatmul.mubr.f32.gmra.mrb[0].mxu0 %v1566
        %v1568 = vpop.f32.mrb[0].mxu0
        %v1569 = vadd.f32 %v1489, %v1568
        %v1570 = vpop.f32.mrb[0].mxu0
        %1571 = vdwg.mxu0
        %1572 = vmatprep.subr.mxu0 0.0
        %v1573 = vand.u32 %v315, 4294901760
        %1574 = vmatpush1.msra.mxu0 %v1573
        %1575 = vmatprep.subr.mxu0 0.0
        %v1576 = vand.u32 %v316, 4294901760
        %1577 = vmatpush1.msra.mxu0 %v1576
        %1578 = vmatprep.subr.mxu0 0.0
        %v1579 = vand.u32 %v317, 4294901760
        %1580 = vmatpush1.msra.mxu0 %v1579
        %1581 = vmatprep.subr.mxu0 0.0
        %v1582 = vand.u32 %v318, 4294901760
        %1583 = vmatpush1.msra.mxu0 %v1582
        %1584 = vmatprep.subr.mxu0 0.0
        %1585 = vmatpush1.msra.mxu0 0.0
        %1586 = vmatprep.subr.mxu0 0.0
        %1587 = vmatpush1.msra.mxu0 0.0
        %1588 = vmatprep.subr.mxu0 0.0
        %1589 = vmatpush1.msra.mxu0 0.0
        %1590 = vmatprep.subr.mxu0 0.0
        %1591 = vmatpush1.msra.mxu0 0.0
        %1592 = vmatprep.subr.mxu0 0.0
        %1593 = vmatpush1.msra.mxu0 0.0
        %1594 = vmatprep.subr.mxu0 0.0
        %1595 = vmatpush1.msra.mxu0 0.0
        %1596 = vmatprep.subr.mxu0 0.0
        %1597 = vmatpush1.msra.mxu0 0.0
        %1598 = vmatprep.subr.mxu0 0.0
        %1599 = vmatpush1.msra.mxu0 0.0
        %1600 = vmatprep.subr.mxu0 0.0
        %1601 = vmatpush1.msra.mxu0 0.0
        %1602 = vmatprep.subr.mxu0 0.0
        %1603 = vmatpush1.msra.mxu0 0.0
        %1604 = vmatprep.subr.mxu0 0.0
        %1605 = vmatpush1.msra.mxu0 0.0
        %1606 = vmatprep.subr.mxu0 0.0
        %1607 = vmatpush1.msra.mxu0 0.0
        %1608 = vmatprep.subr.mxu0 0.0
        %1609 = vmatpush1.msra.mxu0 0.0
        %1610 = vmatprep.subr.mxu0 0.0
        %1611 = vmatpush1.msra.mxu0 0.0
        %1612 = vmatprep.subr.mxu0 0.0
        %1613 = vmatpush1.msra.mxu0 0.0
        %1614 = vmatprep.subr.mxu0 0.0
        %1615 = vmatpush1.msra.mxu0 0.0
        %1616 = vmatprep.subr.mxu0 0.0
        %1617 = vmatpush1.msra.mxu0 0.0
        %1618 = vmatprep.subr.mxu0 0.0
        %1619 = vmatpush1.msra.mxu0 0.0
        %1620 = vmatprep.subr.mxu0 0.0
        %1621 = vmatpush1.msra.mxu0 0.0
        %1622 = vmatprep.subr.mxu0 0.0
        %1623 = vmatpush1.msra.mxu0 0.0
        %1624 = vmatprep.subr.mxu0 0.0
        %1625 = vmatpush1.msra.mxu0 0.0
        %1626 = vmatprep.subr.mxu0 0.0
        %1627 = vmatpush1.msra.mxu0 0.0
        %1628 = vmatprep.subr.mxu0 0.0
        %1629 = vmatpush1.msra.mxu0 0.0
        %1630 = vmatprep.subr.mxu0 0.0
        %1631 = vmatpush1.msra.mxu0 0.0
        %1632 = vmatprep.subr.mxu0 0.0
        %1633 = vmatpush1.msra.mxu0 0.0
        %1634 = vmatprep.subr.mxu0 0.0
        %1635 = vmatpush1.msra.mxu0 0.0
        %1636 = vmatprep.subr.mxu0 0.0
        %1637 = vmatpush1.msra.mxu0 0.0
        %1638 = vmatprep.subr.mxu0 0.0
        %1639 = vmatpush1.msra.mxu0 0.0
        %1640 = vmatprep.mubr.f32.mxu0 0.0
        %v1641 = vand.u32 %v1320, 4294901760
        %v1642 = vsub.f32 %v1320, %v1641
        %v1643 = vand.u32 %v1642, 4294901760
        %1644 = vmatmul.mubr.f32.gmra.mrb[0].mxu0 %v1643
        %v1645 = vpop.f32.mrb[0].mxu0
        %v1646 = vadd.f32 %v1569, %v1645
        %v1647 = vpop.f32.mrb[0].mxu0
        %1648 = vdwg.mxu0
        %1649 = vmatprep.subr.mxu0 0.0
        %v1650 = vand.u32 %v315, 4294901760
        %v1651 = vsub.f32 %v315, %v1650
        %v1652 = vand.u32 %v1651, 4294901760
        %1653 = vmatpush1.msra.mxu0 %v1652
        %1654 = vmatprep.subr.mxu0 0.0
        %v1655 = vand.u32 %v316, 4294901760
        %v1656 = vsub.f32 %v316, %v1655
        %v1657 = vand.u32 %v1656, 4294901760
        %1658 = vmatpush1.msra.mxu0 %v1657
        %1659 = vmatprep.subr.mxu0 0.0
        %v1660 = vand.u32 %v317, 4294901760
        %v1661 = vsub.f32 %v317, %v1660
        %v1662 = vand.u32 %v1661, 4294901760
        %1663 = vmatpush1.msra.mxu0 %v1662
        %1664 = vmatprep.subr.mxu0 0.0
        %v1665 = vand.u32 %v318, 4294901760
        %v1666 = vsub.f32 %v318, %v1665
        %v1667 = vand.u32 %v1666, 4294901760
        %1668 = vmatpush1.msra.mxu0 %v1667
        %1669 = vmatprep.subr.mxu0 0.0
        %1670 = vmatpush1.msra.mxu0 0.0
        %1671 = vmatprep.subr.mxu0 0.0
        %1672 = vmatpush1.msra.mxu0 0.0
        %1673 = vmatprep.subr.mxu0 0.0
        %1674 = vmatpush1.msra.mxu0 0.0
        %1675 = vmatprep.subr.mxu0 0.0
        %1676 = vmatpush1.msra.mxu0 0.0
        %1677 = vmatprep.subr.mxu0 0.0
        %1678 = vmatpush1.msra.mxu0 0.0
        %1679 = vmatprep.subr.mxu0 0.0
        %1680 = vmatpush1.msra.mxu0 0.0
        %1681 = vmatprep.subr.mxu0 0.0
        %1682 = vmatpush1.msra.mxu0 0.0
        %1683 = vmatprep.subr.mxu0 0.0
        %1684 = vmatpush1.msra.mxu0 0.0
        %1685 = vmatprep.subr.mxu0 0.0
        %1686 = vmatpush1.msra.mxu0 0.0
        %1687 = vmatprep.subr.mxu0 0.0
        %1688 = vmatpush1.msra.mxu0 0.0
        %1689 = vmatprep.subr.mxu0 0.0
        %1690 = vmatpush1.msra.mxu0 0.0
        %1691 = vmatprep.subr.mxu0 0.0
        %1692 = vmatpush1.msra.mxu0 0.0
        %1693 = vmatprep.subr.mxu0 0.0
        %1694 = vmatpush1.msra.mxu0 0.0
        %1695 = vmatprep.subr.mxu0 0.0
        %1696 = vmatpush1.msra.mxu0 0.0
        %1697 = vmatprep.subr.mxu0 0.0
        %1698 = vmatpush1.msra.mxu0 0.0
        %1699 = vmatprep.subr.mxu0 0.0
        %1700 = vmatpush1.msra.mxu0 0.0
        %1701 = vmatprep.subr.mxu0 0.0
        %1702 = vmatpush1.msra.mxu0 0.0
        %1703 = vmatprep.subr.mxu0 0.0
        %1704 = vmatpush1.msra.mxu0 0.0
        %1705 = vmatprep.subr.mxu0 0.0
        %1706 = vmatpush1.msra.mxu0 0.0
        %1707 = vmatprep.subr.mxu0 0.0
        %1708 = vmatpush1.msra.mxu0 0.0
        %1709 = vmatprep.subr.mxu0 0.0
        %1710 = vmatpush1.msra.mxu0 0.0
        %1711 = vmatprep.subr.mxu0 0.0
        %1712 = vmatpush1.msra.mxu0 0.0
        %1713 = vmatprep.subr.mxu0 0.0
        %1714 = vmatpush1.msra.mxu0 0.0
        %1715 = vmatprep.subr.mxu0 0.0
        %1716 = vmatpush1.msra.mxu0 0.0
        %1717 = vmatprep.subr.mxu0 0.0
        %1718 = vmatpush1.msra.mxu0 0.0
        %1719 = vmatprep.subr.mxu0 0.0
        %1720 = vmatpush1.msra.mxu0 0.0
        %1721 = vmatprep.subr.mxu0 0.0
        %1722 = vmatpush1.msra.mxu0 0.0
        %1723 = vmatprep.subr.mxu0 0.0
        %1724 = vmatpush1.msra.mxu0 0.0
        %1725 = vmatprep.mubr.f32.mxu0 0.0
        %v1726 = vand.u32 %v1320, 4294901760
        %1727 = vmatmul.mubr.f32.gmra.mrb[0].mxu0 %v1726
        %v1728 = vpop.f32.mrb[0].mxu0
        %v1729 = vadd.f32 %v1646, %v1728
        %v1730 = vpop.f32.mrb[0].mxu0
        %1731 = vdwg.mxu0
        %1732 = vmatprep.subr.mxu0 0.0
        %v1733 = vand.u32 %v315, 4294901760
        %1734 = vmatpush1.msra.mxu0 %v1733
        %1735 = vmatprep.subr.mxu0 0.0
        %v1736 = vand.u32 %v316, 4294901760
        %1737 = vmatpush1.msra.mxu0 %v1736
        %1738 = vmatprep.subr.mxu0 0.0
        %v1739 = vand.u32 %v317, 4294901760
        %1740 = vmatpush1.msra.mxu0 %v1739
        %1741 = vmatprep.subr.mxu0 0.0
        %v1742 = vand.u32 %v318, 4294901760
        %1743 = vmatpush1.msra.mxu0 %v1742
        %1744 = vmatprep.subr.mxu0 0.0
        %1745 = vmatpush1.msra.mxu0 0.0
        %1746 = vmatprep.subr.mxu0 0.0
        %1747 = vmatpush1.msra.mxu0 0.0
        %1748 = vmatprep.subr.mxu0 0.0
        %1749 = vmatpush1.msra.mxu0 0.0
        %1750 = vmatprep.subr.mxu0 0.0
        %1751 = vmatpush1.msra.mxu0 0.0
        %1752 = vmatprep.subr.mxu0 0.0
        %1753 = vmatpush1.msra.mxu0 0.0
        %1754 = vmatprep.subr.mxu0 0.0
        %1755 = vmatpush1.msra.mxu0 0.0
        %1756 = vmatprep.subr.mxu0 0.0
        %1757 = vmatpush1.msra.mxu0 0.0
        %1758 = vmatprep.subr.mxu0 0.0
        %1759 = vmatpush1.msra.mxu0 0.0
        %1760 = vmatprep.subr.mxu0 0.0
        %1761 = vmatpush1.msra.mxu0 0.0
        %1762 = vmatprep.subr.mxu0 0.0
        %1763 = vmatpush1.msra.mxu0 0.0
        %1764 = vmatprep.subr.mxu0 0.0
        %1765 = vmatpush1.msra.mxu0 0.0
        %1766 = vmatprep.subr.mxu0 0.0
        %1767 = vmatpush1.msra.mxu0 0.0
        %1768 = vmatprep.subr.mxu0 0.0
        %1769 = vmatpush1.msra.mxu0 0.0
        %1770 = vmatprep.subr.mxu0 0.0
        %1771 = vmatpush1.msra.mxu0 0.0
        %1772 = vmatprep.subr.mxu0 0.0
        %1773 = vmatpush1.msra.mxu0 0.0
        %1774 = vmatprep.subr.mxu0 0.0
        %1775 = vmatpush1.msra.mxu0 0.0
        %1776 = vmatprep.subr.mxu0 0.0
        %1777 = vmatpush1.msra.mxu0 0.0
        %1778 = vmatprep.subr.mxu0 0.0
        %1779 = vmatpush1.msra.mxu0 0.0
        %1780 = vmatprep.subr.mxu0 0.0
        %1781 = vmatpush1.msra.mxu0 0.0
        %1782 = vmatprep.subr.mxu0 0.0
        %1783 = vmatpush1.msra.mxu0 0.0
        %1784 = vmatprep.subr.mxu0 0.0
        %1785 = vmatpush1.msra.mxu0 0.0
        %1786 = vmatprep.subr.mxu0 0.0
        %1787 = vmatpush1.msra.mxu0 0.0
        %1788 = vmatprep.subr.mxu0 0.0
        %1789 = vmatpush1.msra.mxu0 0.0
        %1790 = vmatprep.subr.mxu0 0.0
        %1791 = vmatpush1.msra.mxu0 0.0
        %1792 = vmatprep.subr.mxu0 0.0
        %1793 = vmatpush1.msra.mxu0 0.0
        %1794 = vmatprep.subr.mxu0 0.0
        %1795 = vmatpush1.msra.mxu0 0.0
        %1796 = vmatprep.subr.mxu0 0.0
        %1797 = vmatpush1.msra.mxu0 0.0
        %1798 = vmatprep.subr.mxu0 0.0
        %1799 = vmatpush1.msra.mxu0 0.0
        %1800 = vmatprep.mubr.f32.mxu0 0.0
        %v1801 = vand.u32 %v1320, 4294901760
        %1802 = vmatmul.mubr.f32.gmra.mrb[0].mxu0 %v1801
        %v1803 = vpop.f32.mrb[0].mxu0
        %v1804 = vadd.f32 %v1729, %v1803
        %v1805 = vpop.f32.mrb[0].mxu0
        %1806 = vdwg.mxu0
        %v1807 = vld [vmem:[%s302] sm:$0xff]
        %1808 = vset.pattern.permute.xlu0 0
        %1809 = vperm.xlu0 %1808, %v1807
        %v1810 = vpop.permute.xlu0 %1809
        %vm1811 = vcmp.eq.s32.totalorder %v320, %v1810
        %v1812 = vsel %vm1811, 1, 0
        %v1813 = vcvt.s32.f32 %v1812
        %v1815 = vsel %vm328, %v1813, 0
        %1817 = vmatprep.subr.mxu0 0.0
        %v1818 = vand.u32 %v315, 4294901760
        %1819 = vmatpush1.msra.mxu0 %v1818
        %1820 = vmatprep.subr.mxu0 0.0
        %v1821 = vand.u32 %v316, 4294901760
        %1822 = vmatpush1.msra.mxu0 %v1821
        %1823 = vmatprep.subr.mxu0 0.0
        %v1824 = vand.u32 %v317, 4294901760
        %1825 = vmatpush1.msra.mxu0 %v1824
        %1826 = vmatprep.subr.mxu0 0.0
        %v1827 = vand.u32 %v318, 4294901760
        %1828 = vmatpush1.msra.mxu0 %v1827
        %1829 = vmatprep.subr.mxu0 0.0
        %1830 = vmatpush1.msra.mxu0 0.0
        %1831 = vmatprep.subr.mxu0 0.0
        %1832 = vmatpush1.msra.mxu0 0.0
        %1833 = vmatprep.subr.mxu0 0.0
        %1834 = vmatpush1.msra.mxu0 0.0
        %1835 = vmatprep.subr.mxu0 0.0
        %1836 = vmatpush1.msra.mxu0 0.0
        %1837 = vmatprep.subr.mxu0 0.0
        %1838 = vmatpush1.msra.mxu0 0.0
        %1839 = vmatprep.subr.mxu0 0.0
        %1840 = vmatpush1.msra.mxu0 0.0
        %1841 = vmatprep.subr.mxu0 0.0
        %1842 = vmatpush1.msra.mxu0 0.0
        %1843 = vmatprep.subr.mxu0 0.0
        %1844 = vmatpush1.msra.mxu0 0.0
        %1845 = vmatprep.subr.mxu0 0.0
        %1846 = vmatpush1.msra.mxu0 0.0
        %1847 = vmatprep.subr.mxu0 0.0
        %1848 = vmatpush1.msra.mxu0 0.0
        %1849 = vmatprep.subr.mxu0 0.0
        %1850 = vmatpush1.msra.mxu0 0.0
        %1851 = vmatprep.subr.mxu0 0.0
        %1852 = vmatpush1.msra.mxu0 0.0
        %1853 = vmatprep.subr.mxu0 0.0
        %1854 = vmatpush1.msra.mxu0 0.0
        %1855 = vmatprep.subr.mxu0 0.0
        %1856 = vmatpush1.msra.mxu0 0.0
        %1857 = vmatprep.subr.mxu0 0.0
        %1858 = vmatpush1.msra.mxu0 0.0
        %1859 = vmatprep.subr.mxu0 0.0
        %1860 = vmatpush1.msra.mxu0 0.0
        %1861 = vmatprep.subr.mxu0 0.0
        %1862 = vmatpush1.msra.mxu0 0.0
        %1863 = vmatprep.subr.mxu0 0.0
        %1864 = vmatpush1.msra.mxu0 0.0
        %1865 = vmatprep.subr.mxu0 0.0
        %1866 = vmatpush1.msra.mxu0 0.0
        %1867 = vmatprep.subr.mxu0 0.0
        %1868 = vmatpush1.msra.mxu0 0.0
        %1869 = vmatprep.subr.mxu0 0.0
        %1870 = vmatpush1.msra.mxu0 0.0
        %1871 = vmatprep.subr.mxu0 0.0
        %1872 = vmatpush1.msra.mxu0 0.0
        %1873 = vmatprep.subr.mxu0 0.0
        %1874 = vmatpush1.msra.mxu0 0.0
        %1875 = vmatprep.subr.mxu0 0.0
        %1876 = vmatpush1.msra.mxu0 0.0
        %1877 = vmatprep.subr.mxu0 0.0
        %1878 = vmatpush1.msra.mxu0 0.0
        %1879 = vmatprep.subr.mxu0 0.0
        %1880 = vmatpush1.msra.mxu0 0.0
        %1881 = vmatprep.subr.mxu0 0.0
        %1882 = vmatpush1.msra.mxu0 0.0
        %1883 = vmatprep.subr.mxu0 0.0
        %1884 = vmatpush1.msra.mxu0 0.0
        %1885 = vmatprep.mubr.f32.mxu0 0.0
        %v1886 = vand.u32 %v1815, 4294901760
        %v1887 = vsub.f32 %v1815, %v1886
        %v1888 = vand.u32 %v1887, 4294901760
        %v1889 = vsub.f32 %v1887, %v1888
        %v1890 = vand.u32 %v1889, 4294901760
        %1891 = vmatmul.mubr.f32.gmra.mrb[0].mxu0 %v1890
        %v1892 = vpop.f32.mrb[0].mxu0
        %v1893 = vadd.f32 0.0, %v1892
        %v1894 = vpop.f32.mrb[0].mxu0
        %1895 = vdwg.mxu0
        %1896 = vmatprep.subr.mxu0 0.0
        %v1897 = vand.u32 %v315, 4294901760
        %v1898 = vsub.f32 %v315, %v1897
        %v1899 = vand.u32 %v1898, 4294901760
        %v1900 = vsub.f32 %v1898, %v1899
        %v1901 = vand.u32 %v1900, 4294901760
        %1902 = vmatpush1.msra.mxu0 %v1901
        %1903 = vmatprep.subr.mxu0 0.0
        %v1904 = vand.u32 %v316, 4294901760
        %v1905 = vsub.f32 %v316, %v1904
        %v1906 = vand.u32 %v1905, 4294901760
        %v1907 = vsub.f32 %v1905, %v1906
        %v1908 = vand.u32 %v1907, 4294901760
        %1909 = vmatpush1.msra.mxu0 %v1908
        %1910 = vmatprep.subr.mxu0 0.0
        %v1911 = vand.u32 %v317, 4294901760
        %v1912 = vsub.f32 %v317, %v1911
        %v1913 = vand.u32 %v1912, 4294901760
        %v1914 = vsub.f32 %v1912, %v1913
        %v1915 = vand.u32 %v1914, 4294901760
        %1916 = vmatpush1.msra.mxu0 %v1915
        %1917 = vmatprep.subr.mxu0 0.0
        %v1918 = vand.u32 %v318, 4294901760
        %v1919 = vsub.f32 %v318, %v1918
        %v1920 = vand.u32 %v1919, 4294901760
        %v1921 = vsub.f32 %v1919, %v1920
        %v1922 = vand.u32 %v1921, 4294901760
        %1923 = vmatpush1.msra.mxu0 %v1922
        %1924 = vmatprep.subr.mxu0 0.0
        %1925 = vmatpush1.msra.mxu0 0.0
        %1926 = vmatprep.subr.mxu0 0.0
        %1927 = vmatpush1.msra.mxu0 0.0
        %1928 = vmatprep.subr.mxu0 0.0
        %1929 = vmatpush1.msra.mxu0 0.0
        %1930 = vmatprep.subr.mxu0 0.0
        %1931 = vmatpush1.msra.mxu0 0.0
        %1932 = vmatprep.subr.mxu0 0.0
        %1933 = vmatpush1.msra.mxu0 0.0
        %1934 = vmatprep.subr.mxu0 0.0
        %1935 = vmatpush1.msra.mxu0 0.0
        %1936 = vmatprep.subr.mxu0 0.0
        %1937 = vmatpush1.msra.mxu0 0.0
        %1938 = vmatprep.subr.mxu0 0.0
        %1939 = vmatpush1.msra.mxu0 0.0
        %1940 = vmatprep.subr.mxu0 0.0
        %1941 = vmatpush1.msra.mxu0 0.0
        %1942 = vmatprep.subr.mxu0 0.0
        %1943 = vmatpush1.msra.mxu0 0.0
        %1944 = vmatprep.subr.mxu0 0.0
        %1945 = vmatpush1.msra.mxu0 0.0
        %1946 = vmatprep.subr.mxu0 0.0
        %1947 = vmatpush1.msra.mxu0 0.0
        %1948 = vmatprep.subr.mxu0 0.0
        %1949 = vmatpush1.msra.mxu0 0.0
        %1950 = vmatprep.subr.mxu0 0.0
        %1951 = vmatpush1.msra.mxu0 0.0
        %1952 = vmatprep.subr.mxu0 0.0
        %1953 = vmatpush1.msra.mxu0 0.0
        %1954 = vmatprep.subr.mxu0 0.0
        %1955 = vmatpush1.msra.mxu0 0.0
        %1956 = vmatprep.subr.mxu0 0.0
        %1957 = vmatpush1.msra.mxu0 0.0
        %1958 = vmatprep.subr.mxu0 0.0
        %1959 = vmatpush1.msra.mxu0 0.0
        %1960 = vmatprep.subr.mxu0 0.0
        %1961 = vmatpush1.msra.mxu0 0.0
        %1962 = vmatprep.subr.mxu0 0.0
        %1963 = vmatpush1.msra.mxu0 0.0
        %1964 = vmatprep.subr.mxu0 0.0
        %1965 = vmatpush1.msra.mxu0 0.0
        %1966 = vmatprep.subr.mxu0 0.0
        %1967 = vmatpush1.msra.mxu0 0.0
        %1968 = vmatprep.subr.mxu0 0.0
        %1969 = vmatpush1.msra.mxu0 0.0
        %1970 = vmatprep.subr.mxu0 0.0
        %1971 = vmatpush1.msra.mxu0 0.0
        %1972 = vmatprep.subr.mxu0 0.0
        %1973 = vmatpush1.msra.mxu0 0.0
        %1974 = vmatprep.subr.mxu0 0.0
        %1975 = vmatpush1.msra.mxu0 0.0
        %1976 = vmatprep.subr.mxu0 0.0
        %1977 = vmatpush1.msra.mxu0 0.0
        %1978 = vmatprep.subr.mxu0 0.0
        %1979 = vmatpush1.msra.mxu0 0.0
        %1980 = vmatprep.mubr.f32.mxu0 0.0
        %v1981 = vand.u32 %v1815, 4294901760
        %1982 = vmatmul.mubr.f32.gmra.mrb[0].mxu0 %v1981
        %v1983 = vpop.f32.mrb[0].mxu0
        %v1984 = vadd.f32 %v1893, %v1983
        %v1985 = vpop.f32.mrb[0].mxu0
        %1986 = vdwg.mxu0
        %1987 = vmatprep.subr.mxu0 0.0
        %v1988 = vand.u32 %v315, 4294901760
        %v1989 = vsub.f32 %v315, %v1988
        %1990 = vmatpush1.msra.mxu0 %v1989
        %1991 = vmatprep.subr.mxu0 0.0
        %v1992 = vand.u32 %v316, 4294901760
        %v1993 = vsub.f32 %v316, %v1992
        %1994 = vmatpush1.msra.mxu0 %v1993
        %1995 = vmatprep.subr.mxu0 0.0
        %v1996 = vand.u32 %v317, 4294901760
        %v1997 = vsub.f32 %v317, %v1996
        %1998 = vmatpush1.msra.mxu0 %v1997
        %1999 = vmatprep.subr.mxu0 0.0
        %v2000 = vand.u32 %v318, 4294901760
        %v2001 = vsub.f32 %v318, %v2000
        %2002 = vmatpush1.msra.mxu0 %v2001
        %2003 = vmatprep.subr.mxu0 0.0
        %2004 = vmatpush1.msra.mxu0 0.0
        %2005 = vmatprep.subr.mxu0 0.0
        %2006 = vmatpush1.msra.mxu0 0.0
        %2007 = vmatprep.subr.mxu0 0.0
        %2008 = vmatpush1.msra.mxu0 0.0
        %2009 = vmatprep.subr.mxu0 0.0
        %2010 = vmatpush1.msra.mxu0 0.0
        %2011 = vmatprep.subr.mxu0 0.0
        %2012 = vmatpush1.msra.mxu0 0.0
        %2013 = vmatprep.subr.mxu0 0.0
        %2014 = vmatpush1.msra.mxu0 0.0
        %2015 = vmatprep.subr.mxu0 0.0
        %2016 = vmatpush1.msra.mxu0 0.0
        %2017 = vmatprep.subr.mxu0 0.0
        %2018 = vmatpush1.msra.mxu0 0.0
        %2019 = vmatprep.subr.mxu0 0.0
        %2020 = vmatpush1.msra.mxu0 0.0
        %2021 = vmatprep.subr.mxu0 0.0
        %2022 = vmatpush1.msra.mxu0 0.0
        %2023 = vmatprep.subr.mxu0 0.0
        %2024 = vmatpush1.msra.mxu0 0.0
        %2025 = vmatprep.subr.mxu0 0.0
        %2026 = vmatpush1.msra.mxu0 0.0
        %2027 = vmatprep.subr.mxu0 0.0
        %2028 = vmatpush1.msra.mxu0 0.0
        %2029 = vmatprep.subr.mxu0 0.0
        %2030 = vmatpush1.msra.mxu0 0.0
        %2031 = vmatprep.subr.mxu0 0.0
        %2032 = vmatpush1.msra.mxu0 0.0
        %2033 = vmatprep.subr.mxu0 0.0
        %2034 = vmatpush1.msra.mxu0 0.0
        %2035 = vmatprep.subr.mxu0 0.0
        %2036 = vmatpush1.msra.mxu0 0.0
        %2037 = vmatprep.subr.mxu0 0.0
        %2038 = vmatpush1.msra.mxu0 0.0
        %2039 = vmatprep.subr.mxu0 0.0
        %2040 = vmatpush1.msra.mxu0 0.0
        %2041 = vmatprep.subr.mxu0 0.0
        %2042 = vmatpush1.msra.mxu0 0.0
        %2043 = vmatprep.subr.mxu0 0.0
        %2044 = vmatpush1.msra.mxu0 0.0
        %2045 = vmatprep.subr.mxu0 0.0
        %2046 = vmatpush1.msra.mxu0 0.0
        %2047 = vmatprep.subr.mxu0 0.0
        %2048 = vmatpush1.msra.mxu0 0.0
        %2049 = vmatprep.subr.mxu0 0.0
        %2050 = vmatpush1.msra.mxu0 0.0
        %2051 = vmatprep.subr.mxu0 0.0
        %2052 = vmatpush1.msra.mxu0 0.0
        %2053 = vmatprep.subr.mxu0 0.0
        %2054 = vmatpush1.msra.mxu0 0.0
        %2055 = vmatprep.subr.mxu0 0.0
        %2056 = vmatpush1.msra.mxu0 0.0
        %2057 = vmatprep.subr.mxu0 0.0
        %2058 = vmatpush1.msra.mxu0 0.0
        %2059 = vmatprep.mubr.f32.mxu0 0.0
        %v2060 = vand.u32 %v1815, 4294901760
        %v2061 = vsub.f32 %v1815, %v2060
        %2062 = vmatmul.mubr.f32.gmra.mrb[0].mxu0 %v2061
        %v2063 = vpop.f32.mrb[0].mxu0
        %v2064 = vadd.f32 %v1984, %v2063
        %v2065 = vpop.f32.mrb[0].mxu0
        %2066 = vdwg.mxu0
        %2067 = vmatprep.subr.mxu0 0.0
        %v2068 = vand.u32 %v315, 4294901760
        %2069 = vmatpush1.msra.mxu0 %v2068
        %2070 = vmatprep.subr.mxu0 0.0
        %v2071 = vand.u32 %v316, 4294901760
        %2072 = vmatpush1.msra.mxu0 %v2071
        %2073 = vmatprep.subr.mxu0 0.0
        %v2074 = vand.u32 %v317, 4294901760
        %2075 = vmatpush1.msra.mxu0 %v2074
        %2076 = vmatprep.subr.mxu0 0.0
        %v2077 = vand.u32 %v318, 4294901760
        %2078 = vmatpush1.msra.mxu0 %v2077
        %2079 = vmatprep.subr.mxu0 0.0
        %2080 = vmatpush1.msra.mxu0 0.0
        %2081 = vmatprep.subr.mxu0 0.0
        %2082 = vmatpush1.msra.mxu0 0.0
        %2083 = vmatprep.subr.mxu0 0.0
        %2084 = vmatpush1.msra.mxu0 0.0
        %2085 = vmatprep.subr.mxu0 0.0
        %2086 = vmatpush1.msra.mxu0 0.0
        %2087 = vmatprep.subr.mxu0 0.0
        %2088 = vmatpush1.msra.mxu0 0.0
        %2089 = vmatprep.subr.mxu0 0.0
        %2090 = vmatpush1.msra.mxu0 0.0
        %2091 = vmatprep.subr.mxu0 0.0
        %2092 = vmatpush1.msra.mxu0 0.0
        %2093 = vmatprep.subr.mxu0 0.0
        %2094 = vmatpush1.msra.mxu0 0.0
        %2095 = vmatprep.subr.mxu0 0.0
        %2096 = vmatpush1.msra.mxu0 0.0
        %2097 = vmatprep.subr.mxu0 0.0
        %2098 = vmatpush1.msra.mxu0 0.0
        %2099 = vmatprep.subr.mxu0 0.0
        %2100 = vmatpush1.msra.mxu0 0.0
        %2101 = vmatprep.subr.mxu0 0.0
        %2102 = vmatpush1.msra.mxu0 0.0
        %2103 = vmatprep.subr.mxu0 0.0
        %2104 = vmatpush1.msra.mxu0 0.0
        %2105 = vmatprep.subr.mxu0 0.0
        %2106 = vmatpush1.msra.mxu0 0.0
        %2107 = vmatprep.subr.mxu0 0.0
        %2108 = vmatpush1.msra.mxu0 0.0
        %2109 = vmatprep.subr.mxu0 0.0
        %2110 = vmatpush1.msra.mxu0 0.0
        %2111 = vmatprep.subr.mxu0 0.0
        %2112 = vmatpush1.msra.mxu0 0.0
        %2113 = vmatprep.subr.mxu0 0.0
        %2114 = vmatpush1.msra.mxu0 0.0
        %2115 = vmatprep.subr.mxu0 0.0
        %2116 = vmatpush1.msra.mxu0 0.0
        %2117 = vmatprep.subr.mxu0 0.0
        %2118 = vmatpush1.msra.mxu0 0.0
        %2119 = vmatprep.subr.mxu0 0.0
        %2120 = vmatpush1.msra.mxu0 0.0
        %2121 = vmatprep.subr.mxu0 0.0
        %2122 = vmatpush1.msra.mxu0 0.0
        %2123 = vmatprep.subr.mxu0 0.0
        %2124 = vmatpush1.msra.mxu0 0.0
        %2125 = vmatprep.subr.mxu0 0.0
        %2126 = vmatpush1.msra.mxu0 0.0
        %2127 = vmatprep.subr.mxu0 0.0
        %2128 = vmatpush1.msra.mxu0 0.0
        %2129 = vmatprep.subr.mxu0 0.0
        %2130 = vmatpush1.msra.mxu0 0.0
        %2131 = vmatprep.subr.mxu0 0.0
        %2132 = vmatpush1.msra.mxu0 0.0
        %2133 = vmatprep.subr.mxu0 0.0
        %2134 = vmatpush1.msra.mxu0 0.0
        %2135 = vmatprep.mubr.f32.mxu0 0.0
        %v2136 = vand.u32 %v1815, 4294901760
        %v2137 = vsub.f32 %v1815, %v2136
        %v2138 = vand.u32 %v2137, 4294901760
        %2139 = vmatmul.mubr.f32.gmra.mrb[0].mxu0 %v2138
        %v2140 = vpop.f32.mrb[0].mxu0
        %v2141 = vadd.f32 %v2064, %v2140
        %v2142 = vpop.f32.mrb[0].mxu0
        %2143 = vdwg.mxu0
        %2144 = vmatprep.subr.mxu0 0.0
        %v2145 = vand.u32 %v315, 4294901760
        %v2146 = vsub.f32 %v315, %v2145
        %v2147 = vand.u32 %v2146, 4294901760
        %2148 = vmatpush1.msra.mxu0 %v2147
        %2149 = vmatprep.subr.mxu0 0.0
        %v2150 = vand.u32 %v316, 4294901760
        %v2151 = vsub.f32 %v316, %v2150
        %v2152 = vand.u32 %v2151, 4294901760
        %2153 = vmatpush1.msra.mxu0 %v2152
        %2154 = vmatprep.subr.mxu0 0.0
        %v2155 = vand.u32 %v317, 4294901760
        %v2156 = vsub.f32 %v317, %v2155
        %v2157 = vand.u32 %v2156, 4294901760
        %2158 = vmatpush1.msra.mxu0 %v2157
        %2159 = vmatprep.subr.mxu0 0.0
        %v2160 = vand.u32 %v318, 4294901760
        %v2161 = vsub.f32 %v318, %v2160
        %v2162 = vand.u32 %v2161, 4294901760
        %2163 = vmatpush1.msra.mxu0 %v2162
        %2164 = vmatprep.subr.mxu0 0.0
        %2165 = vmatpush1.msra.mxu0 0.0
        %2166 = vmatprep.subr.mxu0 0.0
        %2167 = vmatpush1.msra.mxu0 0.0
        %2168 = vmatprep.subr.mxu0 0.0
        %2169 = vmatpush1.msra.mxu0 0.0
        %2170 = vmatprep.subr.mxu0 0.0
        %2171 = vmatpush1.msra.mxu0 0.0
        %2172 = vmatprep.subr.mxu0 0.0
        %2173 = vmatpush1.msra.mxu0 0.0
        %2174 = vmatprep.subr.mxu0 0.0
        %2175 = vmatpush1.msra.mxu0 0.0
        %2176 = vmatprep.subr.mxu0 0.0
        %2177 = vmatpush1.msra.mxu0 0.0
        %2178 = vmatprep.subr.mxu0 0.0
        %2179 = vmatpush1.msra.mxu0 0.0
        %2180 = vmatprep.subr.mxu0 0.0
        %2181 = vmatpush1.msra.mxu0 0.0
        %2182 = vmatprep.subr.mxu0 0.0
        %2183 = vmatpush1.msra.mxu0 0.0
        %2184 = vmatprep.subr.mxu0 0.0
        %2185 = vmatpush1.msra.mxu0 0.0
        %2186 = vmatprep.subr.mxu0 0.0
        %2187 = vmatpush1.msra.mxu0 0.0
        %2188 = vmatprep.subr.mxu0 0.0
        %2189 = vmatpush1.msra.mxu0 0.0
        %2190 = vmatprep.subr.mxu0 0.0
        %2191 = vmatpush1.msra.mxu0 0.0
        %2192 = vmatprep.subr.mxu0 0.0
        %2193 = vmatpush1.msra.mxu0 0.0
        %2194 = vmatprep.subr.mxu0 0.0
        %2195 = vmatpush1.msra.mxu0 0.0
        %2196 = vmatprep.subr.mxu0 0.0
        %2197 = vmatpush1.msra.mxu0 0.0
        %2198 = vmatprep.subr.mxu0 0.0
        %2199 = vmatpush1.msra.mxu0 0.0
        %2200 = vmatprep.subr.mxu0 0.0
        %2201 = vmatpush1.msra.mxu0 0.0
        %2202 = vmatprep.subr.mxu0 0.0
        %2203 = vmatpush1.msra.mxu0 0.0
        %2204 = vmatprep.subr.mxu0 0.0
        %2205 = vmatpush1.msra.mxu0 0.0
        %2206 = vmatprep.subr.mxu0 0.0
        %2207 = vmatpush1.msra.mxu0 0.0
        %2208 = vmatprep.subr.mxu0 0.0
        %2209 = vmatpush1.msra.mxu0 0.0
        %2210 = vmatprep.subr.mxu0 0.0
        %2211 = vmatpush1.msra.mxu0 0.0
        %2212 = vmatprep.subr.mxu0 0.0
        %2213 = vmatpush1.msra.mxu0 0.0
        %2214 = vmatprep.subr.mxu0 0.0
        %2215 = vmatpush1.msra.mxu0 0.0
        %2216 = vmatprep.subr.mxu0 0.0
        %2217 = vmatpush1.msra.mxu0 0.0
        %2218 = vmatprep.subr.mxu0 0.0
        %2219 = vmatpush1.msra.mxu0 0.0
        %2220 = vmatprep.mubr.f32.mxu0 0.0
        %v2221 = vand.u32 %v1815, 4294901760
        %2222 = vmatmul.mubr.f32.gmra.mrb[0].mxu0 %v2221
        %v2223 = vpop.f32.mrb[0].mxu0
        %v2224 = vadd.f32 %v2141, %v2223
        %v2225 = vpop.f32.mrb[0].mxu0
        %2226 = vdwg.mxu0
        %2227 = vmatprep.subr.mxu0 0.0
        %v2228 = vand.u32 %v315, 4294901760
        %2229 = vmatpush1.msra.mxu0 %v2228
        %2230 = vmatprep.subr.mxu0 0.0
        %v2231 = vand.u32 %v316, 4294901760
        %2232 = vmatpush1.msra.mxu0 %v2231
        %2233 = vmatprep.subr.mxu0 0.0
        %v2234 = vand.u32 %v317, 4294901760
        %2235 = vmatpush1.msra.mxu0 %v2234
        %2236 = vmatprep.subr.mxu0 0.0
        %v2237 = vand.u32 %v318, 4294901760
        %2238 = vmatpush1.msra.mxu0 %v2237
        %2239 = vmatprep.subr.mxu0 0.0
        %2240 = vmatpush1.msra.mxu0 0.0
        %2241 = vmatprep.subr.mxu0 0.0
        %2242 = vmatpush1.msra.mxu0 0.0
        %2243 = vmatprep.subr.mxu0 0.0
        %2244 = vmatpush1.msra.mxu0 0.0
        %2245 = vmatprep.subr.mxu0 0.0
        %2246 = vmatpush1.msra.mxu0 0.0
        %2247 = vmatprep.subr.mxu0 0.0
        %2248 = vmatpush1.msra.mxu0 0.0
        %2249 = vmatprep.subr.mxu0 0.0
        %2250 = vmatpush1.msra.mxu0 0.0
        %2251 = vmatprep.subr.mxu0 0.0
        %2252 = vmatpush1.msra.mxu0 0.0
        %2253 = vmatprep.subr.mxu0 0.0
        %2254 = vmatpush1.msra.mxu0 0.0
        %2255 = vmatprep.subr.mxu0 0.0
        %2256 = vmatpush1.msra.mxu0 0.0
        %2257 = vmatprep.subr.mxu0 0.0
        %2258 = vmatpush1.msra.mxu0 0.0
        %2259 = vmatprep.subr.mxu0 0.0
        %2260 = vmatpush1.msra.mxu0 0.0
        %2261 = vmatprep.subr.mxu0 0.0
        %2262 = vmatpush1.msra.mxu0 0.0
        %2263 = vmatprep.subr.mxu0 0.0
        %2264 = vmatpush1.msra.mxu0 0.0
        %2265 = vmatprep.subr.mxu0 0.0
        %2266 = vmatpush1.msra.mxu0 0.0
        %2267 = vmatprep.subr.mxu0 0.0
        %2268 = vmatpush1.msra.mxu0 0.0
        %2269 = vmatprep.subr.mxu0 0.0
        %2270 = vmatpush1.msra.mxu0 0.0
        %2271 = vmatprep.subr.mxu0 0.0
        %2272 = vmatpush1.msra.mxu0 0.0
        %2273 = vmatprep.subr.mxu0 0.0
        %2274 = vmatpush1.msra.mxu0 0.0
        %2275 = vmatprep.subr.mxu0 0.0
        %2276 = vmatpush1.msra.mxu0 0.0
        %2277 = vmatprep.subr.mxu0 0.0
        %2278 = vmatpush1.msra.mxu0 0.0
        %2279 = vmatprep.subr.mxu0 0.0
        %2280 = vmatpush1.msra.mxu0 0.0
        %2281 = vmatprep.subr.mxu0 0.0
        %2282 = vmatpush1.msra.mxu0 0.0
        %2283 = vmatprep.subr.mxu0 0.0
        %2284 = vmatpush1.msra.mxu0 0.0
        %2285 = vmatprep.subr.mxu0 0.0
        %2286 = vmatpush1.msra.mxu0 0.0
        %2287 = vmatprep.subr.mxu0 0.0
        %2288 = vmatpush1.msra.mxu0 0.0
        %2289 = vmatprep.subr.mxu0 0.0
        %2290 = vmatpush1.msra.mxu0 0.0
        %2291 = vmatprep.subr.mxu0 0.0
        %2292 = vmatpush1.msra.mxu0 0.0
        %2293 = vmatprep.subr.mxu0 0.0
        %2294 = vmatpush1.msra.mxu0 0.0
        %2295 = vmatprep.mubr.f32.mxu0 0.0
        %v2296 = vand.u32 %v1815, 4294901760
        %2297 = vmatmul.mubr.f32.gmra.mrb[0].mxu0 %v2296
        %v2298 = vpop.f32.mrb[0].mxu0
        %v2299 = vadd.f32 %v2224, %v2298
        %v2300 = vpop.f32.mrb[0].mxu0
        %2301 = vdwg.mxu0
        %v2302 = vld [vmem:[%s314] sm:$0xff]
        %2303 = vset.pattern.permute.xlu0 0
        %2304 = vperm.xlu0 %2303, %v2302
        %v2305 = vpop.permute.xlu0 %2304
        %vm2306 = vcmp.eq.s32.totalorder %v320, %v2305
        %v2307 = vsel %vm2306, 1, 0
        %v2308 = vcvt.s32.f32 %v2307
        %v2310 = vsel %vm328, %v2308, 0
        %2312 = vmatprep.subr.mxu0 0.0
        %v2313 = vand.u32 %v315, 4294901760
        %2314 = vmatpush1.msra.mxu0 %v2313
        %2315 = vmatprep.subr.mxu0 0.0
        %v2316 = vand.u32 %v316, 4294901760
        %2317 = vmatpush1.msra.mxu0 %v2316
        %2318 = vmatprep.subr.mxu0 0.0
        %v2319 = vand.u32 %v317, 4294901760
        %2320 = vmatpush1.msra.mxu0 %v2319
        %2321 = vmatprep.subr.mxu0 0.0
        %v2322 = vand.u32 %v318, 4294901760
        %2323 = vmatpush1.msra.mxu0 %v2322
        %2324 = vmatprep.subr.mxu0 0.0
        %2325 = vmatpush1.msra.mxu0 0.0
        %2326 = vmatprep.subr.mxu0 0.0
        %2327 = vmatpush1.msra.mxu0 0.0
        %2328 = vmatprep.subr.mxu0 0.0
        %2329 = vmatpush1.msra.mxu0 0.0
        %2330 = vmatprep.subr.mxu0 0.0
        %2331 = vmatpush1.msra.mxu0 0.0
        %2332 = vmatprep.subr.mxu0 0.0
        %2333 = vmatpush1.msra.mxu0 0.0
        %2334 = vmatprep.subr.mxu0 0.0
        %2335 = vmatpush1.msra.mxu0 0.0
        %2336 = vmatprep.subr.mxu0 0.0
        %2337 = vmatpush1.msra.mxu0 0.0
        %2338 = vmatprep.subr.mxu0 0.0
        %2339 = vmatpush1.msra.mxu0 0.0
        %2340 = vmatprep.subr.mxu0 0.0
        %2341 = vmatpush1.msra.mxu0 0.0
        %2342 = vmatprep.subr.mxu0 0.0
        %2343 = vmatpush1.msra.mxu0 0.0
        %2344 = vmatprep.subr.mxu0 0.0
        %2345 = vmatpush1.msra.mxu0 0.0
        %2346 = vmatprep.subr.mxu0 0.0
        %2347 = vmatpush1.msra.mxu0 0.0
        %2348 = vmatprep.subr.mxu0 0.0
        %2349 = vmatpush1.msra.mxu0 0.0
        %2350 = vmatprep.subr.mxu0 0.0
        %2351 = vmatpush1.msra.mxu0 0.0
        %2352 = vmatprep.subr.mxu0 0.0
        %2353 = vmatpush1.msra.mxu0 0.0
        %2354 = vmatprep.subr.mxu0 0.0
        %2355 = vmatpush1.msra.mxu0 0.0
        %2356 = vmatprep.subr.mxu0 0.0
        %2357 = vmatpush1.msra.mxu0 0.0
        %2358 = vmatprep.subr.mxu0 0.0
        %2359 = vmatpush1.msra.mxu0 0.0
        %2360 = vmatprep.subr.mxu0 0.0
        %2361 = vmatpush1.msra.mxu0 0.0
        %2362 = vmatprep.subr.mxu0 0.0
        %2363 = vmatpush1.msra.mxu0 0.0
        %2364 = vmatprep.subr.mxu0 0.0
        %2365 = vmatpush1.msra.mxu0 0.0
        %2366 = vmatprep.subr.mxu0 0.0
        %2367 = vmatpush1.msra.mxu0 0.0
        %2368 = vmatprep.subr.mxu0 0.0
        %2369 = vmatpush1.msra.mxu0 0.0
        %2370 = vmatprep.subr.mxu0 0.0
        %2371 = vmatpush1.msra.mxu0 0.0
        %2372 = vmatprep.subr.mxu0 0.0
        %2373 = vmatpush1.msra.mxu0 0.0
        %2374 = vmatprep.subr.mxu0 0.0
        %2375 = vmatpush1.msra.mxu0 0.0
        %2376 = vmatprep.subr.mxu0 0.0
        %2377 = vmatpush1.msra.mxu0 0.0
        %2378 = vmatprep.subr.mxu0 0.0
        %2379 = vmatpush1.msra.mxu0 0.0
        %2380 = vmatprep.mubr.f32.mxu0 0.0
        %v2381 = vand.u32 %v2310, 4294901760
        %v2382 = vsub.f32 %v2310, %v2381
        %v2383 = vand.u32 %v2382, 4294901760
        %v2384 = vsub.f32 %v2382, %v2383
        %v2385 = vand.u32 %v2384, 4294901760
        %2386 = vmatmul.mubr.f32.gmra.mrb[0].mxu0 %v2385
        %v2387 = vpop.f32.mrb[0].mxu0
        %v2388 = vadd.f32 0.0, %v2387
        %v2389 = vpop.f32.mrb[0].mxu0
        %2390 = vdwg.mxu0
        %2391 = vmatprep.subr.mxu0 0.0
        %v2392 = vand.u32 %v315, 4294901760
        %v2393 = vsub.f32 %v315, %v2392
        %v2394 = vand.u32 %v2393, 4294901760
        %v2395 = vsub.f32 %v2393, %v2394
        %v2396 = vand.u32 %v2395, 4294901760
        %2397 = vmatpush1.msra.mxu0 %v2396
        %2398 = vmatprep.subr.mxu0 0.0
        %v2399 = vand.u32 %v316, 4294901760
        %v2400 = vsub.f32 %v316, %v2399
        %v2401 = vand.u32 %v2400, 4294901760
        %v2402 = vsub.f32 %v2400, %v2401
        %v2403 = vand.u32 %v2402, 4294901760
        %2404 = vmatpush1.msra.mxu0 %v2403
        %2405 = vmatprep.subr.mxu0 0.0
        %v2406 = vand.u32 %v317, 4294901760
        %v2407 = vsub.f32 %v317, %v2406
        %v2408 = vand.u32 %v2407, 4294901760
        %v2409 = vsub.f32 %v2407, %v2408
        %v2410 = vand.u32 %v2409, 4294901760
        %2411 = vmatpush1.msra.mxu0 %v2410
        %2412 = vmatprep.subr.mxu0 0.0
        %v2413 = vand.u32 %v318, 4294901760
        %v2414 = vsub.f32 %v318, %v2413
        %v2415 = vand.u32 %v2414, 4294901760
        %v2416 = vsub.f32 %v2414, %v2415
        %v2417 = vand.u32 %v2416, 4294901760
        %2418 = vmatpush1.msra.mxu0 %v2417
        %2419 = vmatprep.subr.mxu0 0.0
        %2420 = vmatpush1.msra.mxu0 0.0
        %2421 = vmatprep.subr.mxu0 0.0
        %2422 = vmatpush1.msra.mxu0 0.0
        %2423 = vmatprep.subr.mxu0 0.0
        %2424 = vmatpush1.msra.mxu0 0.0
        %2425 = vmatprep.subr.mxu0 0.0
        %2426 = vmatpush1.msra.mxu0 0.0
        %2427 = vmatprep.subr.mxu0 0.0
        %2428 = vmatpush1.msra.mxu0 0.0
        %2429 = vmatprep.subr.mxu0 0.0
        %2430 = vmatpush1.msra.mxu0 0.0
        %2431 = vmatprep.subr.mxu0 0.0
        %2432 = vmatpush1.msra.mxu0 0.0
        %2433 = vmatprep.subr.mxu0 0.0
        %2434 = vmatpush1.msra.mxu0 0.0
        %2435 = vmatprep.subr.mxu0 0.0
        %2436 = vmatpush1.msra.mxu0 0.0
        %2437 = vmatprep.subr.mxu0 0.0
        %2438 = vmatpush1.msra.mxu0 0.0
        %2439 = vmatprep.subr.mxu0 0.0
        %2440 = vmatpush1.msra.mxu0 0.0
        %2441 = vmatprep.subr.mxu0 0.0
        %2442 = vmatpush1.msra.mxu0 0.0
        %2443 = vmatprep.subr.mxu0 0.0
        %2444 = vmatpush1.msra.mxu0 0.0
        %2445 = vmatprep.subr.mxu0 0.0
        %2446 = vmatpush1.msra.mxu0 0.0
        %2447 = vmatprep.subr.mxu0 0.0
        %2448 = vmatpush1.msra.mxu0 0.0
        %2449 = vmatprep.subr.mxu0 0.0
        %2450 = vmatpush1.msra.mxu0 0.0
        %2451 = vmatprep.subr.mxu0 0.0
        %2452 = vmatpush1.msra.mxu0 0.0
        %2453 = vmatprep.subr.mxu0 0.0
        %2454 = vmatpush1.msra.mxu0 0.0
        %2455 = vmatprep.subr.mxu0 0.0
        %2456 = vmatpush1.msra.mxu0 0.0
        %2457 = vmatprep.subr.mxu0 0.0
        %2458 = vmatpush1.msra.mxu0 0.0
        %2459 = vmatprep.subr.mxu0 0.0
        %2460 = vmatpush1.msra.mxu0 0.0
        %2461 = vmatprep.subr.mxu0 0.0
        %2462 = vmatpush1.msra.mxu0 0.0
        %2463 = vmatprep.subr.mxu0 0.0
        %2464 = vmatpush1.msra.mxu0 0.0
        %2465 = vmatprep.subr.mxu0 0.0
        %2466 = vmatpush1.msra.mxu0 0.0
        %2467 = vmatprep.subr.mxu0 0.0
        %2468 = vmatpush1.msra.mxu0 0.0
        %2469 = vmatprep.subr.mxu0 0.0
        %2470 = vmatpush1.msra.mxu0 0.0
        %2471 = vmatprep.subr.mxu0 0.0
        %2472 = vmatpush1.msra.mxu0 0.0
        %2473 = vmatprep.subr.mxu0 0.0
        %2474 = vmatpush1.msra.mxu0 0.0
        %2475 = vmatprep.mubr.f32.mxu0 0.0
        %v2476 = vand.u32 %v2310, 4294901760
        %2477 = vmatmul.mubr.f32.gmra.mrb[0].mxu0 %v2476
        %v2478 = vpop.f32.mrb[0].mxu0
        %v2479 = vadd.f32 %v2388, %v2478
        %v2480 = vpop.f32.mrb[0].mxu0
        %2481 = vdwg.mxu0
        %2482 = vmatprep.subr.mxu0 0.0
        %v2483 = vand.u32 %v315, 4294901760
        %v2484 = vsub.f32 %v315, %v2483
        %2485 = vmatpush1.msra.mxu0 %v2484
        %2486 = vmatprep.subr.mxu0 0.0
        %v2487 = vand.u32 %v316, 4294901760
        %v2488 = vsub.f32 %v316, %v2487
        %2489 = vmatpush1.msra.mxu0 %v2488
        %2490 = vmatprep.subr.mxu0 0.0
        %v2491 = vand.u32 %v317, 4294901760
        %v2492 = vsub.f32 %v317, %v2491
        %2493 = vmatpush1.msra.mxu0 %v2492
        %2494 = vmatprep.subr.mxu0 0.0
        %v2495 = vand.u32 %v318, 4294901760
        %v2496 = vsub.f32 %v318, %v2495
        %2497 = vmatpush1.msra.mxu0 %v2496
        %2498 = vmatprep.subr.mxu0 0.0
        %2499 = vmatpush1.msra.mxu0 0.0
        %2500 = vmatprep.subr.mxu0 0.0
        %2501 = vmatpush1.msra.mxu0 0.0
        %2502 = vmatprep.subr.mxu0 0.0
        %2503 = vmatpush1.msra.mxu0 0.0
        %2504 = vmatprep.subr.mxu0 0.0
        %2505 = vmatpush1.msra.mxu0 0.0
        %2506 = vmatprep.subr.mxu0 0.0
        %2507 = vmatpush1.msra.mxu0 0.0
        %2508 = vmatprep.subr.mxu0 0.0
        %2509 = vmatpush1.msra.mxu0 0.0
        %2510 = vmatprep.subr.mxu0 0.0
        %2511 = vmatpush1.msra.mxu0 0.0
        %2512 = vmatprep.subr.mxu0 0.0
        %2513 = vmatpush1.msra.mxu0 0.0
        %2514 = vmatprep.subr.mxu0 0.0
        %2515 = vmatpush1.msra.mxu0 0.0
        %2516 = vmatprep.subr.mxu0 0.0
        %2517 = vmatpush1.msra.mxu0 0.0
        %2518 = vmatprep.subr.mxu0 0.0
        %2519 = vmatpush1.msra.mxu0 0.0
        %2520 = vmatprep.subr.mxu0 0.0
        %2521 = vmatpush1.msra.mxu0 0.0
        %2522 = vmatprep.subr.mxu0 0.0
        %2523 = vmatpush1.msra.mxu0 0.0
        %2524 = vmatprep.subr.mxu0 0.0
        %2525 = vmatpush1.msra.mxu0 0.0
        %2526 = vmatprep.subr.mxu0 0.0
        %2527 = vmatpush1.msra.mxu0 0.0
        %2528 = vmatprep.subr.mxu0 0.0
        %2529 = vmatpush1.msra.mxu0 0.0
        %2530 = vmatprep.subr.mxu0 0.0
        %2531 = vmatpush1.msra.mxu0 0.0
        %2532 = vmatprep.subr.mxu0 0.0
        %2533 = vmatpush1.msra.mxu0 0.0
        %2534 = vmatprep.subr.mxu0 0.0
        %2535 = vmatpush1.msra.mxu0 0.0
        %2536 = vmatprep.subr.mxu0 0.0
        %2537 = vmatpush1.msra.mxu0 0.0
        %2538 = vmatprep.subr.mxu0 0.0
        %2539 = vmatpush1.msra.mxu0 0.0
        %2540 = vmatprep.subr.mxu0 0.0
        %2541 = vmatpush1.msra.mxu0 0.0
        %2542 = vmatprep.subr.mxu0 0.0
        %2543 = vmatpush1.msra.mxu0 0.0
        %2544 = vmatprep.subr.mxu0 0.0
        %2545 = vmatpush1.msra.mxu0 0.0
        %2546 = vmatprep.subr.mxu0 0.0
        %2547 = vmatpush1.msra.mxu0 0.0
        %2548 = vmatprep.subr.mxu0 0.0
        %2549 = vmatpush1.msra.mxu0 0.0
        %2550 = vmatprep.subr.mxu0 0.0
        %2551 = vmatpush1.msra.mxu0 0.0
        %2552 = vmatprep.subr.mxu0 0.0
        %2553 = vmatpush1.msra.mxu0 0.0
        %2554 = vmatprep.mubr.f32.mxu0 0.0
        %v2555 = vand.u32 %v2310, 4294901760
        %v2556 = vsub.f32 %v2310, %v2555
        %2557 = vmatmul.mubr.f32.gmra.mrb[0].mxu0 %v2556
        %v2558 = vpop.f32.mrb[0].mxu0
        %v2559 = vadd.f32 %v2479, %v2558
        %v2560 = vpop.f32.mrb[0].mxu0
        %2561 = vdwg.mxu0
        %2562 = vmatprep.subr.mxu0 0.0
        %v2563 = vand.u32 %v315, 4294901760
        %2564 = vmatpush1.msra.mxu0 %v2563
        %2565 = vmatprep.subr.mxu0 0.0
        %v2566 = vand.u32 %v316, 4294901760
        %2567 = vmatpush1.msra.mxu0 %v2566
        %2568 = vmatprep.subr.mxu0 0.0
        %v2569 = vand.u32 %v317, 4294901760
        %2570 = vmatpush1.msra.mxu0 %v2569
        %2571 = vmatprep.subr.mxu0 0.0
        %v2572 = vand.u32 %v318, 4294901760
        %2573 = vmatpush1.msra.mxu0 %v2572
        %2574 = vmatprep.subr.mxu0 0.0
        %2575 = vmatpush1.msra.mxu0 0.0
        %2576 = vmatprep.subr.mxu0 0.0
        %2577 = vmatpush1.msra.mxu0 0.0
        %2578 = vmatprep.subr.mxu0 0.0
        %2579 = vmatpush1.msra.mxu0 0.0
        %2580 = vmatprep.subr.mxu0 0.0
        %2581 = vmatpush1.msra.mxu0 0.0
        %2582 = vmatprep.subr.mxu0 0.0
        %2583 = vmatpush1.msra.mxu0 0.0
        %2584 = vmatprep.subr.mxu0 0.0
        %2585 = vmatpush1.msra.mxu0 0.0
        %2586 = vmatprep.subr.mxu0 0.0
        %2587 = vmatpush1.msra.mxu0 0.0
        %2588 = vmatprep.subr.mxu0 0.0
        %2589 = vmatpush1.msra.mxu0 0.0
        %2590 = vmatprep.subr.mxu0 0.0
        %2591 = vmatpush1.msra.mxu0 0.0
        %2592 = vmatprep.subr.mxu0 0.0
        %2593 = vmatpush1.msra.mxu0 0.0
        %2594 = vmatprep.subr.mxu0 0.0
        %2595 = vmatpush1.msra.mxu0 0.0
        %2596 = vmatprep.subr.mxu0 0.0
        %2597 = vmatpush1.msra.mxu0 0.0
        %2598 = vmatprep.subr.mxu0 0.0
        %2599 = vmatpush1.msra.mxu0 0.0
        %2600 = vmatprep.subr.mxu0 0.0
        %2601 = vmatpush1.msra.mxu0 0.0
        %2602 = vmatprep.subr.mxu0 0.0
        %2603 = vmatpush1.msra.mxu0 0.0
        %2604 = vmatprep.subr.mxu0 0.0
        %2605 = vmatpush1.msra.mxu0 0.0
        %2606 = vmatprep.subr.mxu0 0.0
        %2607 = vmatpush1.msra.mxu0 0.0
        %2608 = vmatprep.subr.mxu0 0.0
        %2609 = vmatpush1.msra.mxu0 0.0
        %2610 = vmatprep.subr.mxu0 0.0
        %2611 = vmatpush1.msra.mxu0 0.0
        %2612 = vmatprep.subr.mxu0 0.0
        %2613 = vmatpush1.msra.mxu0 0.0
        %2614 = vmatprep.subr.mxu0 0.0
        %2615 = vmatpush1.msra.mxu0 0.0
        %2616 = vmatprep.subr.mxu0 0.0
        %2617 = vmatpush1.msra.mxu0 0.0
        %2618 = vmatprep.subr.mxu0 0.0
        %2619 = vmatpush1.msra.mxu0 0.0
        %2620 = vmatprep.subr.mxu0 0.0
        %2621 = vmatpush1.msra.mxu0 0.0
        %2622 = vmatprep.subr.mxu0 0.0
        %2623 = vmatpush1.msra.mxu0 0.0
        %2624 = vmatprep.subr.mxu0 0.0
        %2625 = vmatpush1.msra.mxu0 0.0
        %2626 = vmatprep.subr.mxu0 0.0
        %2627 = vmatpush1.msra.mxu0 0.0
        %2628 = vmatprep.subr.mxu0 0.0
        %2629 = vmatpush1.msra.mxu0 0.0
        %2630 = vmatprep.mubr.f32.mxu0 0.0
        %v2631 = vand.u32 %v2310, 4294901760
        %v2632 = vsub.f32 %v2310, %v2631
        %v2633 = vand.u32 %v2632, 4294901760
        %2634 = vmatmul.mubr.f32.gmra.mrb[0].mxu0 %v2633
        %v2635 = vpop.f32.mrb[0].mxu0
        %v2636 = vadd.f32 %v2559, %v2635
        %v2637 = vpop.f32.mrb[0].mxu0
        %2638 = vdwg.mxu0
        %2639 = vmatprep.subr.mxu0 0.0
        %v2640 = vand.u32 %v315, 4294901760
        %v2641 = vsub.f32 %v315, %v2640
        %v2642 = vand.u32 %v2641, 4294901760
        %2643 = vmatpush1.msra.mxu0 %v2642
        %2644 = vmatprep.subr.mxu0 0.0
        %v2645 = vand.u32 %v316, 4294901760
        %v2646 = vsub.f32 %v316, %v2645
        %v2647 = vand.u32 %v2646, 4294901760
        %2648 = vmatpush1.msra.mxu0 %v2647
        %2649 = vmatprep.subr.mxu0 0.0
        %v2650 = vand.u32 %v317, 4294901760
        %v2651 = vsub.f32 %v317, %v2650
        %v2652 = vand.u32 %v2651, 4294901760
        %2653 = vmatpush1.msra.mxu0 %v2652
        %2654 = vmatprep.subr.mxu0 0.0
        %v2655 = vand.u32 %v318, 4294901760
        %v2656 = vsub.f32 %v318, %v2655
        %v2657 = vand.u32 %v2656, 4294901760
        %2658 = vmatpush1.msra.mxu0 %v2657
        %2659 = vmatprep.subr.mxu0 0.0
        %2660 = vmatpush1.msra.mxu0 0.0
        %2661 = vmatprep.subr.mxu0 0.0
        %2662 = vmatpush1.msra.mxu0 0.0
        %2663 = vmatprep.subr.mxu0 0.0
        %2664 = vmatpush1.msra.mxu0 0.0
        %2665 = vmatprep.subr.mxu0 0.0
        %2666 = vmatpush1.msra.mxu0 0.0
        %2667 = vmatprep.subr.mxu0 0.0
        %2668 = vmatpush1.msra.mxu0 0.0
        %2669 = vmatprep.subr.mxu0 0.0
        %2670 = vmatpush1.msra.mxu0 0.0
        %2671 = vmatprep.subr.mxu0 0.0
        %2672 = vmatpush1.msra.mxu0 0.0
        %2673 = vmatprep.subr.mxu0 0.0
        %2674 = vmatpush1.msra.mxu0 0.0
        %2675 = vmatprep.subr.mxu0 0.0
        %2676 = vmatpush1.msra.mxu0 0.0
        %2677 = vmatprep.subr.mxu0 0.0
        %2678 = vmatpush1.msra.mxu0 0.0
        %2679 = vmatprep.subr.mxu0 0.0
        %2680 = vmatpush1.msra.mxu0 0.0
        %2681 = vmatprep.subr.mxu0 0.0
        %2682 = vmatpush1.msra.mxu0 0.0
        %2683 = vmatprep.subr.mxu0 0.0
        %2684 = vmatpush1.msra.mxu0 0.0
        %2685 = vmatprep.subr.mxu0 0.0
        %2686 = vmatpush1.msra.mxu0 0.0
        %2687 = vmatprep.subr.mxu0 0.0
        %2688 = vmatpush1.msra.mxu0 0.0
        %2689 = vmatprep.subr.mxu0 0.0
        %2690 = vmatpush1.msra.mxu0 0.0
        %2691 = vmatprep.subr.mxu0 0.0
        %2692 = vmatpush1.msra.mxu0 0.0
        %2693 = vmatprep.subr.mxu0 0.0
        %2694 = vmatpush1.msra.mxu0 0.0
        %2695 = vmatprep.subr.mxu0 0.0
        %2696 = vmatpush1.msra.mxu0 0.0
        %2697 = vmatprep.subr.mxu0 0.0
        %2698 = vmatpush1.msra.mxu0 0.0
        %2699 = vmatprep.subr.mxu0 0.0
        %2700 = vmatpush1.msra.mxu0 0.0
        %2701 = vmatprep.subr.mxu0 0.0
        %2702 = vmatpush1.msra.mxu0 0.0
        %2703 = vmatprep.subr.mxu0 0.0
        %2704 = vmatpush1.msra.mxu0 0.0
        %2705 = vmatprep.subr.mxu0 0.0
        %2706 = vmatpush1.msra.mxu0 0.0
        %2707 = vmatprep.subr.mxu0 0.0
        %2708 = vmatpush1.msra.mxu0 0.0
        %2709 = vmatprep.subr.mxu0 0.0
        %2710 = vmatpush1.msra.mxu0 0.0
        %2711 = vmatprep.subr.mxu0 0.0
        %2712 = vmatpush1.msra.mxu0 0.0
        %2713 = vmatprep.subr.mxu0 0.0
        %2714 = vmatpush1.msra.mxu0 0.0
        %2715 = vmatprep.mubr.f32.mxu0 0.0
        %v2716 = vand.u32 %v2310, 4294901760
        %2717 = vmatmul.mubr.f32.gmra.mrb[0].mxu0 %v2716
        %v2718 = vpop.f32.mrb[0].mxu0
        %v2719 = vadd.f32 %v2636, %v2718
        %v2720 = vpop.f32.mrb[0].mxu0
        %2721 = vdwg.mxu0
        %2722 = vmatprep.subr.mxu0 0.0
        %v2723 = vand.u32 %v315, 4294901760
        %2724 = vmatpush1.msra.mxu0 %v2723
        %2725 = vmatprep.subr.mxu0 0.0
        %v2726 = vand.u32 %v316, 4294901760
        %2727 = vmatpush1.msra.mxu0 %v2726
        %2728 = vmatprep.subr.mxu0 0.0
        %v2729 = vand.u32 %v317, 4294901760
        %2730 = vmatpush1.msra.mxu0 %v2729
        %2731 = vmatprep.subr.mxu0 0.0
        %v2732 = vand.u32 %v318, 4294901760
        %2733 = vmatpush1.msra.mxu0 %v2732
        %2734 = vmatprep.subr.mxu0 0.0
        %2735 = vmatpush1.msra.mxu0 0.0
        %2736 = vmatprep.subr.mxu0 0.0
        %2737 = vmatpush1.msra.mxu0 0.0
        %2738 = vmatprep.subr.mxu0 0.0
        %2739 = vmatpush1.msra.mxu0 0.0
        %2740 = vmatprep.subr.mxu0 0.0
        %2741 = vmatpush1.msra.mxu0 0.0
        %2742 = vmatprep.subr.mxu0 0.0
        %2743 = vmatpush1.msra.mxu0 0.0
        %2744 = vmatprep.subr.mxu0 0.0
        %2745 = vmatpush1.msra.mxu0 0.0
        %2746 = vmatprep.subr.mxu0 0.0
        %2747 = vmatpush1.msra.mxu0 0.0
        %2748 = vmatprep.subr.mxu0 0.0
        %2749 = vmatpush1.msra.mxu0 0.0
        %2750 = vmatprep.subr.mxu0 0.0
        %2751 = vmatpush1.msra.mxu0 0.0
        %2752 = vmatprep.subr.mxu0 0.0
        %2753 = vmatpush1.msra.mxu0 0.0
        %2754 = vmatprep.subr.mxu0 0.0
        %2755 = vmatpush1.msra.mxu0 0.0
        %2756 = vmatprep.subr.mxu0 0.0
        %2757 = vmatpush1.msra.mxu0 0.0
        %2758 = vmatprep.subr.mxu0 0.0
        %2759 = vmatpush1.msra.mxu0 0.0
        %2760 = vmatprep.subr.mxu0 0.0
        %2761 = vmatpush1.msra.mxu0 0.0
        %2762 = vmatprep.subr.mxu0 0.0
        %2763 = vmatpush1.msra.mxu0 0.0
        %2764 = vmatprep.subr.mxu0 0.0
        %2765 = vmatpush1.msra.mxu0 0.0
        %2766 = vmatprep.subr.mxu0 0.0
        %2767 = vmatpush1.msra.mxu0 0.0
        %2768 = vmatprep.subr.mxu0 0.0
        %2769 = vmatpush1.msra.mxu0 0.0
        %2770 = vmatprep.subr.mxu0 0.0
        %2771 = vmatpush1.msra.mxu0 0.0
        %2772 = vmatprep.subr.mxu0 0.0
        %2773 = vmatpush1.msra.mxu0 0.0
        %2774 = vmatprep.subr.mxu0 0.0
        %2775 = vmatpush1.msra.mxu0 0.0
        %2776 = vmatprep.subr.mxu0 0.0
        %2777 = vmatpush1.msra.mxu0 0.0
        %2778 = vmatprep.subr.mxu0 0.0
        %2779 = vmatpush1.msra.mxu0 0.0
        %2780 = vmatprep.subr.mxu0 0.0
        %2781 = vmatpush1.msra.mxu0 0.0
        %2782 = vmatprep.subr.mxu0 0.0
        %2783 = vmatpush1.msra.mxu0 0.0
        %2784 = vmatprep.subr.mxu0 0.0
        %2785 = vmatpush1.msra.mxu0 0.0
        %2786 = vmatprep.subr.mxu0 0.0
        %2787 = vmatpush1.msra.mxu0 0.0
        %2788 = vmatprep.subr.mxu0 0.0
        %2789 = vmatpush1.msra.mxu0 0.0
        %2790 = vmatprep.mubr.f32.mxu0 0.0
        %v2791 = vand.u32 %v2310, 4294901760
        %2792 = vmatmul.mubr.f32.gmra.mrb[0].mxu0 %v2791
        %v2793 = vpop.f32.mrb[0].mxu0
        %v2794 = vadd.f32 %v2719, %v2793
        %v2795 = vpop.f32.mrb[0].mxu0
        %2796 = vdwg.mxu0
        %v2797 = vmax.f32 %v1309, 0.0
        %v2798 = vmax.f32 %v814, 0.0
        %v2799 = vsub.f32 %v1309, %v1804
        %v2800 = vmul.f32 %v2797, 0.45
        %v2801 = vmul.f32 %v2799, 0.5
        %v2802 = vand.u32 2147483647, %v2801
        %vm2803 = vcmp.le.f32.partialorder %v2802, 0.7853982
        %vm2804 = vcmp.lt.s32.totalorder %v2801, 0
        %v2805 = vand.u32 %v2801, 2139095040
        %v2806 = vshrl.u32 %v2805, 23
        %v2807 = vsub.s32 %v2806, 127
        %v2808 = vand.u32 2147483647, %v2801
        %v2809 = vand.u32 %v2808, 8388607
        %v2810 = vor.u32 %v2809, 8388608
        %v2811 = vsub.s32 0, %v2810
        %v2812 = vadd.s32 %v2807, 1
        %vm2813 = vcmp.gt.s32.totalorder %v2812, 0
        %v2814 = vsel %vm2813, %v2812, 0
        %v2815 = vshrl.u32 %v2814, 5
        %v2816 = vand.u32 %v2814, 31
        %v2817 = vsub.s32 32, %v2816
        %v2818 = vshrl.u32 683565275, %v2817
        %v2819 = vshll.u32 683565275, %v2816
        %v2820 = vshrl.u32 2475754826, %v2817
        %v2821 = vor.u32 %v2819, %v2820
        %v2822 = vshll.u32 2475754826, %v2816
        %v2823 = vshrl.u32 2131351028, %v2817
        %v2824 = vor.u32 %v2822, %v2823
        %v2825 = vshll.u32 2131351028, %v2816
        %v2826 = vshrl.u32 2102212464, %v2817
        %v2827 = vor.u32 %v2825, %v2826
        %v2828 = vshll.u32 2102212464, %v2816
        %v2829 = vshrl.u32 920167782, %v2817
        %v2830 = vor.u32 %v2828, %v2829
        %v2831 = vshll.u32 920167782, %v2816
        %v2832 = vshrl.u32 1326507024, %v2817
        %v2833 = vor.u32 %v2831, %v2832
        %vm2834 = vcmp.lt.s32.totalorder %v2815, 1
        %vm2835 = vcmp.lt.s32.totalorder %v2815, 2
        %vm2836 = vcmp.lt.s32.totalorder %v2815, 3
        %vm2837 = vcmp.lt.s32.totalorder %v2815, 4
        %v2838 = vsel %vm2834, %v2818, %v2821
        %v2839 = vsel %vm2837, %v2827, 2102212464
        %v2840 = vsel %vm2836, %v2824, %v2839
        %v2841 = vsel %vm2835, %v2838, %v2840
        %v2842 = vsel %vm2834, %v2821, %v2824
        %v2843 = vsel %vm2837, %v2830, 920167782
        %v2844 = vsel %vm2836, %v2827, %v2843
        %v2845 = vsel %vm2835, %v2842, %v2844
        %v2846 = vsel %vm2834, %v2824, %v2827
        %v2847 = vsel %vm2837, %v2833, 1326507024
        %v2848 = vsel %vm2836, %v2830, %v2847
        %v2849 = vsel %vm2835, %v2846, %v2848
        %v2850 = vshll.u32 %v2810, 8
        %v2851 = vmul.u32.u64.compose %v2850, %v2849
        %v2852 = vextract.low.u32 %v2851
        %v2853 = vextract.high.u32 %v2851
        %v2854 = vmul.u32.u64.compose %v2850, %v2845
        %v2855 = vextract.low.u32 %v2854
        %v2856 = vextract.high.u32 %v2854
        %v2857 = vmul.u32 %v2850, %v2841
        %v2858 = vadd.s32 %v2853, %v2855
        %vm2859 = vc.u32 %v2853, %v2855
        %v2860 = vadd.s32 %v2856, 1
        %v2861 = vsel %vm2859, %v2860, %v2856
        %v2862 = vadd.s32 %v2857, %v2861
        %v2863 = vadd.s32 %v2862, 536870912
        %v2864 = vshrl.u32 %v2863, 30
        %v2865 = vshll.u32 %v2864, 30
        %v2866 = vsub.s32 %v2862, %v2865
        %vm2867 = vcmp.lt.s32.totalorder %v2866, 0
        %v2868 = vsub.s32 0, %v2866
        %v2869 = vsel %vm2867, %v2868, %v2866
        %v2870 = vclz %v2869
        %v2871 = vsub.s32 %v2870, 2
        %vm2872 = vcmp.gt.s32.totalorder 0, %v2871
        %v2873 = vsel %vm2872, 0, %v2871
        %v2874 = vsub.s32 32, %v2873
        %v2875 = vshll.u32 %v2866, %v2873
        %v2876 = vshrl.u32 %v2858, %v2874
        %v2877 = vor.u32 %v2875, %v2876
        %v2878 = vsub.s32 4294967266, %v2873
        %v2879 = vadd.s32 %v2878, 127
        %v2880 = vshll.u32 %v2879, 23
        %v2881 = vor.u32 4788187, %v2880
        %v2882 = vand.u32 2147483647, %v2881
        %v2884 = vcvt.s32.f32 %v2877
        %v2885 = vmul.f32 %v2884, %v2882
        %v2886 = vxor.u32 %v2885, 2147483648
        %v2887 = vsel %vm2804, %v2886, %v2885
        %v2888 = vsub.s32 4, %v2864
        %v2889 = vsel %vm2804, %v2888, %v2864
        %v2890 = vsel %vm2803, %v2801, %v2887
        %v2891 = vsel %vm2803, 0, %v2889
        %v2892 = vcosq.f32.pop %v2890
        %v2893 = vsinq.f32.pop %v2890
        %vm2894 = vweird.f32 %v2801
        %v2895 = vadd.s32 %v2891, 3
        %v2896 = vand.u32 %v2895, 3
        %vm2897 = vcmp.lt.s32.totalorder %v2896, 2
        %vm2898 = vcmp.eq.s32.totalorder %v2896, 0
        %v2899 = vxor.u32 %v2893, 2147483648
        %v2900 = vsel %vm2898, %v2892, %v2899
        %vm2901 = vcmp.eq.s32.totalorder %v2896, 2
        %v2902 = vxor.u32 %v2892, 2147483648
        %v2903 = vsel %vm2901, %v2902, %v2893
        %v2904 = vsel %vm2897, %v2900, %v2903
        %v2905 = vsel %vm2894, nan, %v2904
        %v2906 = vand.u32 2147483647, %v2905
        %2908 = vrot.lane.b32.xlu0 %v2906, 96
        %v2909 = vpop.permute.xlu0 %2908
        %v2911 = vmul.f32 %v2800, %v2909
        %v2912 = vand.u32 2147483647, %v814
        %vm2913 = vcmp.le.f32.partialorder %v2912, 0.7853982
        %vm2914 = vcmp.lt.s32.totalorder %v814, 0
        %v2915 = vand.u32 %v814, 2139095040
        %v2916 = vshrl.u32 %v2915, 23
        %v2917 = vsub.s32 %v2916, 127
        %v2918 = vand.u32 2147483647, %v814
        %v2919 = vand.u32 %v2918, 8388607
        %v2920 = vor.u32 %v2919, 8388608
        %v2921 = vsub.s32 0, %v2920
        %v2922 = vadd.s32 %v2917, 1
        %vm2923 = vcmp.gt.s32.totalorder %v2922, 0
        %v2924 = vsel %vm2923, %v2922, 0
        %v2925 = vshrl.u32 %v2924, 5
        %v2926 = vand.u32 %v2924, 31
        %v2927 = vsub.s32 32, %v2926
        %v2928 = vshrl.u32 683565275, %v2927
        %v2929 = vshll.u32 683565275, %v2926
        %v2930 = vshrl.u32 2475754826, %v2927
        %v2931 = vor.u32 %v2929, %v2930
        %v2932 = vshll.u32 2475754826, %v2926
        %v2933 = vshrl.u32 2131351028, %v2927
        %v2934 = vor.u32 %v2932, %v2933
        %v2935 = vshll.u32 2131351028, %v2926
        %v2936 = vshrl.u32 2102212464, %v2927
        %v2937 = vor.u32 %v2935, %v2936
        %v2938 = vshll.u32 2102212464, %v2926
        %v2939 = vshrl.u32 920167782, %v2927
        %v2940 = vor.u32 %v2938, %v2939
        %v2941 = vshll.u32 920167782, %v2926
        %v2942 = vshrl.u32 1326507024, %v2927
        %v2943 = vor.u32 %v2941, %v2942
        %vm2944 = vcmp.lt.s32.totalorder %v2925, 1
        %vm2945 = vcmp.lt.s32.totalorder %v2925, 2
        %vm2946 = vcmp.lt.s32.totalorder %v2925, 3
        %vm2947 = vcmp.lt.s32.totalorder %v2925, 4
        %v2948 = vsel %vm2944, %v2928, %v2931
        %v2949 = vsel %vm2947, %v2937, 2102212464
        %v2950 = vsel %vm2946, %v2934, %v2949
        %v2951 = vsel %vm2945, %v2948, %v2950
        %v2952 = vsel %vm2944, %v2931, %v2934
        %v2953 = vsel %vm2947, %v2940, 920167782
        %v2954 = vsel %vm2946, %v2937, %v2953
        %v2955 = vsel %vm2945, %v2952, %v2954
        %v2956 = vsel %vm2944, %v2934, %v2937
        %v2957 = vsel %vm2947, %v2943, 1326507024
        %v2958 = vsel %vm2946, %v2940, %v2957
        %v2959 = vsel %vm2945, %v2956, %v2958
        %v2960 = vshll.u32 %v2920, 8
        %v2961 = vmul.u32.u64.compose %v2960, %v2959
        %v2962 = vextract.low.u32 %v2961
        %v2963 = vextract.high.u32 %v2961
        %v2964 = vmul.u32.u64.compose %v2960, %v2955
        %v2965 = vextract.low.u32 %v2964
        %v2966 = vextract.high.u32 %v2964
        %v2967 = vmul.u32 %v2960, %v2951
        %v2968 = vadd.s32 %v2963, %v2965
        %vm2969 = vc.u32 %v2963, %v2965
        %v2970 = vadd.s32 %v2966, 1
        %v2971 = vsel %vm2969, %v2970, %v2966
        %v2972 = vadd.s32 %v2967, %v2971
        %v2973 = vadd.s32 %v2972, 536870912
        %v2974 = vshrl.u32 %v2973, 30
        %v2975 = vshll.u32 %v2974, 30
        %v2976 = vsub.s32 %v2972, %v2975
        %vm2977 = vcmp.lt.s32.totalorder %v2976, 0
        %v2978 = vsub.s32 0, %v2976
        %v2979 = vsel %vm2977, %v2978, %v2976
        %v2980 = vclz %v2979
        %v2981 = vsub.s32 %v2980, 2
        %vm2982 = vcmp.gt.s32.totalorder 0, %v2981
        %v2983 = vsel %vm2982, 0, %v2981
        %v2984 = vsub.s32 32, %v2983
        %v2985 = vshll.u32 %v2976, %v2983
        %v2986 = vshrl.u32 %v2968, %v2984
        %v2987 = vor.u32 %v2985, %v2986
        %v2988 = vsub.s32 4294967266, %v2983
        %v2989 = vadd.s32 %v2988, 127
        %v2990 = vshll.u32 %v2989, 23
        %v2991 = vor.u32 4788187, %v2990
        %v2992 = vand.u32 2147483647, %v2991
        %v2994 = vcvt.s32.f32 %v2987
        %v2995 = vmul.f32 %v2994, %v2992
        %v2996 = vxor.u32 %v2995, 2147483648
        %v2997 = vsel %vm2914, %v2996, %v2995
        %v2998 = vsub.s32 4, %v2974
        %v2999 = vsel %vm2914, %v2998, %v2974
        %v3000 = vsel %vm2913, %v814, %v2997
        %v3001 = vsel %vm2913, 0, %v2999
        %v3002 = vcosq.f32.pop %v3000
        %v3003 = vsinq.f32.pop %v3000
        %vm3004 = vweird.f32 %v814
        %v3005 = vand.u32 %v3001, 3
        %vm3006 = vcmp.lt.s32.totalorder %v3005, 2
        %vm3007 = vcmp.eq.s32.totalorder %v3005, 0
        %v3008 = vxor.u32 %v3003, 2147483648
        %v3009 = vsel %vm3007, %v3002, %v3008
        %vm3010 = vcmp.eq.s32.totalorder %v3005, 2
        %v3011 = vxor.u32 %v3002, 2147483648
        %v3012 = vsel %vm3010, %v3011, %v3003
        %v3013 = vsel %vm3006, %v3009, %v3012
        %v3014 = vsel %vm3004, nan, %v3013
        %3016 = vrot.lane.b32.xlu0 %v3014, 96
        %v3017 = vpop.permute.xlu0 %3016
        %v3019 = vmul.f32 %v2911, %v3017
        %v3020 = vand.u32 2147483647, %v814
        %vm3021 = vcmp.le.f32.partialorder %v3020, 0.7853982
        %vm3022 = vcmp.lt.s32.totalorder %v814, 0
        %v3023 = vand.u32 %v814, 2139095040
        %v3024 = vshrl.u32 %v3023, 23
        %v3025 = vsub.s32 %v3024, 127
        %v3026 = vand.u32 2147483647, %v814
        %v3027 = vand.u32 %v3026, 8388607
        %v3028 = vor.u32 %v3027, 8388608
        %v3029 = vsub.s32 0, %v3028
        %v3030 = vadd.s32 %v3025, 1
        %vm3031 = vcmp.gt.s32.totalorder %v3030, 0
        %v3032 = vsel %vm3031, %v3030, 0
        %v3033 = vshrl.u32 %v3032, 5
        %v3034 = vand.u32 %v3032, 31
        %v3035 = vsub.s32 32, %v3034
        %v3036 = vshrl.u32 683565275, %v3035
        %v3037 = vshll.u32 683565275, %v3034
        %v3038 = vshrl.u32 2475754826, %v3035
        %v3039 = vor.u32 %v3037, %v3038
        %v3040 = vshll.u32 2475754826, %v3034
        %v3041 = vshrl.u32 2131351028, %v3035
        %v3042 = vor.u32 %v3040, %v3041
        %v3043 = vshll.u32 2131351028, %v3034
        %v3044 = vshrl.u32 2102212464, %v3035
        %v3045 = vor.u32 %v3043, %v3044
        %v3046 = vshll.u32 2102212464, %v3034
        %v3047 = vshrl.u32 920167782, %v3035
        %v3048 = vor.u32 %v3046, %v3047
        %v3049 = vshll.u32 920167782, %v3034
        %v3050 = vshrl.u32 1326507024, %v3035
        %v3051 = vor.u32 %v3049, %v3050
        %vm3052 = vcmp.lt.s32.totalorder %v3033, 1
        %vm3053 = vcmp.lt.s32.totalorder %v3033, 2
        %vm3054 = vcmp.lt.s32.totalorder %v3033, 3
        %vm3055 = vcmp.lt.s32.totalorder %v3033, 4
        %v3056 = vsel %vm3052, %v3036, %v3039
        %v3057 = vsel %vm3055, %v3045, 2102212464
        %v3058 = vsel %vm3054, %v3042, %v3057
        %v3059 = vsel %vm3053, %v3056, %v3058
        %v3060 = vsel %vm3052, %v3039, %v3042
        %v3061 = vsel %vm3055, %v3048, 920167782
        %v3062 = vsel %vm3054, %v3045, %v3061
        %v3063 = vsel %vm3053, %v3060, %v3062
        %v3064 = vsel %vm3052, %v3042, %v3045
        %v3065 = vsel %vm3055, %v3051, 1326507024
        %v3066 = vsel %vm3054, %v3048, %v3065
        %v3067 = vsel %vm3053, %v3064, %v3066
        %v3068 = vshll.u32 %v3028, 8
        %v3069 = vmul.u32.u64.compose %v3068, %v3067
        %v3070 = vextract.low.u32 %v3069
        %v3071 = vextract.high.u32 %v3069
        %v3072 = vmul.u32.u64.compose %v3068, %v3063
        %v3073 = vextract.low.u32 %v3072
        %v3074 = vextract.high.u32 %v3072
        %v3075 = vmul.u32 %v3068, %v3059
        %v3076 = vadd.s32 %v3071, %v3073
        %vm3077 = vc.u32 %v3071, %v3073
        %v3078 = vadd.s32 %v3074, 1
        %v3079 = vsel %vm3077, %v3078, %v3074
        %v3080 = vadd.s32 %v3075, %v3079
        %v3081 = vadd.s32 %v3080, 536870912
        %v3082 = vshrl.u32 %v3081, 30
        %v3083 = vshll.u32 %v3082, 30
        %v3084 = vsub.s32 %v3080, %v3083
        %vm3085 = vcmp.lt.s32.totalorder %v3084, 0
        %v3086 = vsub.s32 0, %v3084
        %v3087 = vsel %vm3085, %v3086, %v3084
        %v3088 = vclz %v3087
        %v3089 = vsub.s32 %v3088, 2
        %vm3090 = vcmp.gt.s32.totalorder 0, %v3089
        %v3091 = vsel %vm3090, 0, %v3089
        %v3092 = vsub.s32 32, %v3091
        %v3093 = vshll.u32 %v3084, %v3091
        %v3094 = vshrl.u32 %v3076, %v3092
        %v3095 = vor.u32 %v3093, %v3094
        %v3096 = vsub.s32 4294967266, %v3091
        %v3097 = vadd.s32 %v3096, 127
        %v3098 = vshll.u32 %v3097, 23
        %v3099 = vor.u32 4788187, %v3098
        %v3100 = vand.u32 2147483647, %v3099
        %v3102 = vcvt.s32.f32 %v3095
        %v3103 = vmul.f32 %v3102, %v3100
        %v3104 = vxor.u32 %v3103, 2147483648
        %v3105 = vsel %vm3022, %v3104, %v3103
        %v3106 = vsub.s32 4, %v3082
        %v3107 = vsel %vm3022, %v3106, %v3082
        %v3108 = vsel %vm3021, %v814, %v3105
        %v3109 = vsel %vm3021, 0, %v3107
        %v3110 = vcosq.f32.pop %v3108
        %v3111 = vsinq.f32.pop %v3108
        %vm3112 = vweird.f32 %v814
        %v3113 = vadd.s32 %v3109, 3
        %v3114 = vand.u32 %v3113, 3
        %vm3115 = vcmp.lt.s32.totalorder %v3114, 2
        %vm3116 = vcmp.eq.s32.totalorder %v3114, 0
        %v3117 = vxor.u32 %v3111, 2147483648
        %v3118 = vsel %vm3116, %v3110, %v3117
        %vm3119 = vcmp.eq.s32.totalorder %v3114, 2
        %v3120 = vxor.u32 %v3110, 2147483648
        %v3121 = vsel %vm3119, %v3120, %v3111
        %v3122 = vsel %vm3115, %v3118, %v3121
        %v3123 = vsel %vm3112, nan, %v3122
        %3125 = vrot.lane.b32.xlu0 %v3123, 96
        %v3126 = vpop.permute.xlu0 %3125
        %v3128 = vmul.f32 %v2911, %v3126
        %3130 = vrot.lane.b32.xlu0 %v1309, 64
        %v3131 = vpop.permute.xlu0 %3130
        %v3133 = vadd.f32 %v3019, %v3131
        %3134 = vrot.lane.b32.xlu0 %v1309, 32
        %v3135 = vpop.permute.xlu0 %3134
        %v3137 = vadd.f32 %v3128, %v3135
        %3139 = vrot.lane.b32.xlu0 %v3137, 32
        %v3140 = vpop.permute.xlu0 %3139
        %3143 = vrot.lane.b32.xlu0 %v2798, 32
        %v3144 = vpop.permute.xlu0 %3143
        %3147 = vrot.lane.b32.xlu0 %v2299, 64
        %v3148 = vpop.permute.xlu0 %3147
        %v3150 = vsel %vm328, %v3133, %v3140
        %vm3151 = vcmask 523264
        %v3152 = vsel %vm3151, %v3150, %v814
        %vm3153 = vcmask 785408
        %v3154 = vsel %vm3153, %v3152, %v814
        %v3155 = vsel %vm328, %v2911, %v3144
        %v3156 = vsel %vm3151, %v3155, %v2794
        %v3157 = vsel %vm3153, %v3156, %v2794
        %3158 = vst [vmem:[%s294] sm:$0xff] %v3154
        %3159 = vst [vmem:[%s294 + $0x8] sm:$0xff] %v3157
        %3160 = vst.msk [vmem:[%s294 + $0x10] sm:$0xff] %vm3151, %v3148
        %s3161 = sand.u32 %s179, 1
        %s3162 = scalar_lea.sflag [#allocation3], %s3161
        %s3163 = sand.u32 %s179, 1
        %s3164 = smul.addr %s3163, 24
        %s3165 = scalar_lea.vmem [#allocation2], %s3164
        // Predicated region
        $region45: #{tpu_custom_call.1} parent=43 // pred_check
          %p3166 = pneg %p189
        $region46: #{tpu_custom_call.1} parent=43 // pred_check_branch
          %3168 = sbr.rel (%p3166) target = $region48
        $region47: #{tpu_custom_call.1} parent=43 // pred_region
          %s3170 = ssub.s32 384, 384
          %3171 = vsyncadd %s3162, %s3170
          %s3172 = smul.addr %s20, 3
          %s3173 = smul.addr %s3172, 128
          %s3174 = scalar_lea.hbm %s6, %s3173
          %s3176 = sshll.u32 %s3165, 4
          %s3177 = int_to_ptr.vmem [resolvable:$true] %s3176
          %3179 = dma.vmem_to_hbm [thread:$0]  %s3177, 384, %s3174, %s3162
        $region48: #{tpu_custom_call.1} parent=43 // pred_fallthru
          _
      $region44: #{tpu_custom_call.1} parent=5 // pred_fallthru
        _
      %p3180 = scmp.le.s32.totalorder 2, %s15
      // Predicated region
      $region49: #{tpu_custom_call.1} parent=5 // pred_check
        %p3181 = pneg %p3180
      $region50: #{tpu_custom_call.1} parent=5 // pred_check_branch
        %3183 = sbr.rel (%p3181) target = $region52
      $region51: #{tpu_custom_call.1} parent=5 // pred_region
        %s3184 = ssub.s32 %s15, 2
        // Predicated region
        $region53: #{tpu_custom_call.1} parent=51 // pred_check
          %p3185 = pneg %p195
        $region54: #{tpu_custom_call.1} parent=51 // pred_check_branch
          %3187 = sbr.rel (%p3185) target = $region56
        $region55: #{tpu_custom_call.1} parent=51 // pred_region
          %s3188 = sand.u32 %s180, 1
          %s3189 = scalar_lea.sflag [#allocation3], %s3188
          %s3190 = sand.u32 %s180, 1
          %s3191 = smul.addr %s3190, 24
          %s3192 = scalar_lea.vmem [#allocation2], %s3191
          %3193 = dma.done %s3189, 384
        $region56: #{tpu_custom_call.1} parent=51 // pred_fallthru
          _
      $region52: #{tpu_custom_call.1} parent=5 // pred_fallthru
        _
    $region6: #{tpu_custom_call.1} parent=1 // loop_footer
      %s19 = sadd.s32 1, %s15
    $region7: #{tpu_custom_call.1} parent=1 // loop_footer_branch
      %14 = sbr.rel target = $region3
    $region8: #{tpu_custom_call.1} parent=1 // loop_exit
      _
    %3194 = vsyncpa [#allocation3], 1
    %s3195 = scalar_lea.sflag [#allocation3], 1
    %3196 = vsyncpa %s3195, 1

</llo_original>
